<compile_context>
chip_gen: v7x
topology: tpu7x:2x2x1
jax: 0.10.0
libtpu: 0.0.40
codegen_flags: <defaults>
</compile_context>

<pallas_src>
import jax
import jax.numpy as jnp
from jax.experimental import pallas as pl
from jax.experimental.pallas import tpu as pltpu


FEAT_SEQ = 200                      # pretrained output "seq" dim
FEAT_DIM = 32                       # pretrained output feature dim
IN_FEATURES = FEAT_SEQ * FEAT_DIM   # 6400
NUM_CLASSES = 10
ROW_ALIGN = 16                      # bf16 sublane packing (16 rows / vreg)


def _round_up(x, m):
    return ((x + m - 1) // m) * m


def _cdiv(a, b):
    return -(-a // b)


def _tpu_config():
    """(batch-tile target, scoped-VMEM budget, tensorcores to split over)."""
    try:
        kind = jax.devices()[0].device_kind.lower()
    except Exception:  # pragma: no cover - defensive default
        kind = ""
    if "v7" in kind:
        # 64 MiB VMEM / TC, ~3.2 TB/s HBM, 2 TCs per chip -> split the batch.
        return 512, 40 << 20, 2
    if "v6" in kind:
        return 512, 48 << 20, 1
    if "v5" in kind:
        return 512, 40 << 20, 1
    # Unknown chip: conservative tile, default-ish scoped budget.
    return 256, 32 << 20, 1


def _pick_tile(batch, tb_target, num_cores):
    """Batch tile: multiple of 16, <= tb_target; on multi-TC chips cap it so
    the grid has an even number (>= 2) of tiles for balanced core sharding."""
    if num_cores > 1 and batch > ROW_ALIGN:
        pairs = max(1, _cdiv(batch, num_cores * tb_target))
        tb = _round_up(_cdiv(batch, num_cores * pairs), ROW_ALIGN)
    else:
        tb = min(tb_target, _round_up(batch, ROW_ALIGN))
    return max(ROW_ALIGN, min(tb, tb_target))


def prepare_classify_params(weight, bias, compute_dtype=jnp.bfloat16):
    """Hoisted out of the per-call path (done once at param-load time).

    weight: (10, 6400) PyTorch-layout Linear weight.
    bias:   (10,)
    Returns (w_t, b2d) with w_t: (6400, 10) in compute_dtype, b2d: (1, 10) f32.
    """
    w_t = jnp.asarray(weight).astype(compute_dtype).T          # (6400, 10)
    b2d = jnp.asarray(bias, dtype=jnp.float32).reshape(1, NUM_CLASSES)
    return w_t, b2d


def _classify_kernel(x_ref, w_ref, b_ref, o_ref):
    # x_ref: (TB, 6400) bf16 in VMEM   w_ref: (6400, 10) bf16, resident
    # b_ref: (1, 10) f32               o_ref: (TB, 10) f32
    logits = jnp.dot(x_ref[...], w_ref[...],
                     preferred_element_type=jnp.float32) + b_ref[...]
    # Numerically-stable softmax over last axis (nn.Softmax() dim=1 for 2D).
    # Exact divide: essentially free on this DMA-bound kernel and keeps rows
    # summing to 1 exactly.
    m = jnp.max(logits, axis=-1, keepdims=True)
    e = jnp.exp(logits - m)
    o_ref[...] = (e / jnp.sum(e, axis=-1, keepdims=True)).astype(o_ref.dtype)


def classify_net_forward(features, w_t, b2d):
    """features: (B, 200, 32); w_t: (6400, 10) pre-transposed; b2d: (1, 10)."""
    B = features.shape[0]
    compute_dtype = w_t.dtype
    x_flat = features.reshape(B, IN_FEATURES)                  # Flatten (free)
    if x_flat.dtype != compute_dtype:
        x_flat = x_flat.astype(compute_dtype)                  # see TODO above

    tb_target, vmem_bytes, num_cores = _tpu_config()
    tb = _pick_tile(B, tb_target, num_cores)
    num_tiles = pl.cdiv(B, tb)      # ragged last tile handled by the pipeline

    itemsize = jnp.dtype(compute_dtype).itemsize
    cost = pl.CostEstimate(
        flops=2 * B * IN_FEATURES * NUM_CLASSES,
        transcendentals=B * NUM_CLASSES,
        bytes_accessed=(B * IN_FEATURES * itemsize          # activation stream
                        + IN_FEATURES * NUM_CLASSES * itemsize  # resident weight
                        + B * NUM_CLASSES * 4),              # f32 output
    )

    return pl.pallas_call(
        _classify_kernel,
        out_shape=jax.ShapeDtypeStruct((B, NUM_CLASSES), jnp.float32),
        grid_spec=pltpu.PrefetchScalarGridSpec(
            num_scalar_prefetch=0,
            grid=(num_tiles,),
            in_specs=[
                pl.BlockSpec((tb, IN_FEATURES), lambda i: (i, 0)),
                pl.BlockSpec((IN_FEATURES, NUM_CLASSES), lambda i: (0, 0)),
                pl.BlockSpec((1, NUM_CLASSES), lambda i: (0, 0)),
            ],
            out_specs=pl.BlockSpec((tb, NUM_CLASSES), lambda i: (i, 0)),
        ),
        compiler_params=pltpu.CompilerParams(
            dimension_semantics=("parallel",),  # shards tiles across TCs on v7x
            vmem_limit_bytes=vmem_bytes,
        ),
        cost_estimate=cost,
    )(x_flat, w_t, b2d)


if __name__ == "__main__":
    key = jax.random.PRNGKey(0)
    k_x, k_w, k_b = jax.random.split(key, 3)

    # Small deterministic example inputs (pretrained-module output shape).
    B = 2
    features = jax.random.normal(k_x, (B, FEAT_SEQ, FEAT_DIM), dtype=jnp.float32)

    # Deterministic Linear(6400, 10) parameters (PyTorch-style uniform init).
    bound = 1.0 / (IN_FEATURES ** 0.5)
    weight = jax.random.uniform(k_w, (NUM_CLASSES, IN_FEATURES),
                                dtype=jnp.float32, minval=-bound, maxval=bound)
    bias = jax.random.uniform(k_b, (NUM_CLASSES,),
                              dtype=jnp.float32, minval=-bound, maxval=bound)

    # Params are prepared ONCE (transpose + bf16 cast hoisted off the hot path).
    w_t, b2d = prepare_classify_params(weight, bias, compute_dtype=jnp.bfloat16)

    out = jax.block_until_ready(classify_net_forward(features, w_t, b2d))
    assert out.shape == (B, NUM_CLASSES)

    # Reference 1: identical bf16-quantized inputs, f32 math (tight tolerance).
    xq = features.reshape(B, -1).astype(jnp.bfloat16).astype(jnp.float32)
    wq = w_t.astype(jnp.float32)
    ref_bf16 = jax.nn.softmax(xq @ wq + bias, axis=-1)
    # Reference 2: the original full-f32 module math (looser, bf16 streaming).
    ref_f32 = jax.nn.softmax(features.reshape(B, -1) @ weight.T + bias, axis=-1)

    assert jnp.allclose(out, ref_bf16, atol=2e-3, rtol=2e-3), "mismatch vs bf16 reference"
    assert jnp.allclose(out, ref_f32, atol=2e-2, rtol=2e-2), "mismatch vs f32 reference"
    assert jnp.allclose(jnp.sum(out, axis=-1), 1.0, atol=1e-5), "softmax rows must sum to 1"

    print("KERNEL_OK")
</pallas_src>

<mosaic_0001>
module attributes {stable_mosaic.version = 11 : i64} {
  func.func @_classify_kernel(%arg0: i32, %arg1: memref<16x6400xbf16, #tpu.memory_space<vmem>>, %arg2: memref<6400x10xbf16, #tpu.memory_space<vmem>>, %arg3: memref<1x10xf32, #tpu.memory_space<vmem>>, %arg4: memref<16x10xf32, #tpu.memory_space<vmem>>) attributes {dimension_semantics = [#tpu.dimension_semantics<parallel>], iteration_bounds = array<i64: 1>, scalar_prefetch = 0 : i64, scratch_operands = 0 : i64, tpu.core_type = #tpu.core_type<tc>, window_params = [{transform_indices = @transform_0, window_bounds = array<i64: 16, 6400>}, {pipeline_mode = #tpu.pipeline_mode<synchronous>, transform_indices = @transform_1, window_bounds = array<i64: 6400, 10>}, {pipeline_mode = #tpu.pipeline_mode<synchronous>, transform_indices = @transform_2, window_bounds = array<i64: 1, 10>}, {transform_indices = @transform_3, window_bounds = array<i64: 16, 10>}]} {
    %c0 = arith.constant 0 : index
    %c0_0 = arith.constant 0 : index
    %0 = vector.load %arg1[%c0, %c0_0] : memref<16x6400xbf16, #tpu.memory_space<vmem>>, vector<16x6400xbf16>
    %c0_1 = arith.constant 0 : index
    %c0_2 = arith.constant 0 : index
    %1 = vector.load %arg2[%c0_1, %c0_2] : memref<6400x10xbf16, #tpu.memory_space<vmem>>, vector<6400x10xbf16>
    %cst = arith.constant dense<0.000000e+00> : vector<16x10xf32>
    %2 = tpu.matmul %0, %1, %cst {dimension_numbers = #tpu.dot_dimension_numbers<[1], [0], [0], [1], [0, 0, 1, 1], [], []>} : vector<16x6400xbf16>, vector<6400x10xbf16>, vector<16x10xf32> -> vector<16x10xf32>
    %c0_3 = arith.constant 0 : index
    %c0_4 = arith.constant 0 : index
    %3 = vector.load %arg3[%c0_3, %c0_4] : memref<1x10xf32, #tpu.memory_space<vmem>>, vector<1x10xf32>
    %4 = vector.broadcast %3 : vector<1x10xf32> to vector<16x10xf32>
    %5 = arith.addf %2, %4 : vector<16x10xf32>
    %cst_5 = arith.constant dense<0xFF800000> : vector<16xf32>
    %6 = vector.multi_reduction <maximumf>, %5, %cst_5 [1] : vector<16x10xf32> to vector<16xf32>
    %7 = vector.shape_cast %6 : vector<16xf32> to vector<16x1xf32>
    %8 = vector.broadcast %7 : vector<16x1xf32> to vector<16x10xf32>
    %9 = arith.subf %5, %8 : vector<16x10xf32>
    %10 = math.exp %9 : vector<16x10xf32>
    %cst_6 = arith.constant dense<0.000000e+00> : vector<16xf32>
    %11 = vector.multi_reduction <add>, %10, %cst_6 [1] : vector<16x10xf32> to vector<16xf32>
    %12 = vector.shape_cast %11 : vector<16xf32> to vector<16x1xf32>
    %13 = vector.broadcast %12 : vector<16x1xf32> to vector<16x10xf32>
    %14 = arith.divf %10, %13 : vector<16x10xf32>
    %c0_7 = arith.constant 0 : index
    %c0_8 = arith.constant 0 : index
    %15 = vector.load %arg4[%c0_7, %c0_8] : memref<16x10xf32, #tpu.memory_space<vmem>>, vector<16x10xf32>
    tpu.vector_store %arg4[%c0_7, %c0_8], %14 {strides = array<i32>} : memref<16x10xf32, #tpu.memory_space<vmem>>, vector<16x10xf32>,
    return
  }
  func.func @transform_0(%arg0: i32) -> (i32, i32) {
    %c0_i32 = arith.constant 0 : i32
    %c0_i32_0 = arith.constant 0 : i32
    return %arg0, %c0_i32 : i32, i32
  }
  func.func @transform_1(%arg0: i32) -> (i32, i32) {
    %c0_i32 = arith.constant 0 : i32
    %c0_i32_0 = arith.constant 0 : i32
    %c0_i32_1 = arith.constant 0 : i32
    return %c0_i32, %c0_i32_0 : i32, i32
  }
  func.func @transform_2(%arg0: i32) -> (i32, i32) {
    %c0_i32 = arith.constant 0 : i32
    %c0_i32_0 = arith.constant 0 : i32
    %c0_i32_1 = arith.constant 0 : i32
    return %c0_i32, %c0_i32_0 : i32, i32
  }
  func.func @transform_3(%arg0: i32) -> (i32, i32) {
    %c0_i32 = arith.constant 0 : i32
    %c0_i32_0 = arith.constant 0 : i32
    return %arg0, %c0_i32 : i32, i32
  }
}

</mosaic_0001>

<llo_original>
// kernel: tpu_custom_call.1
$region0: #{tpu_custom_call.1}
  #allocation0 [shape = 'u32[]', space=smem, size = 0x4, offset = 0x4, fixed_abs, tag = 'smem constant byte address 0x4 - core index']
  #allocation1 [shape = 'u32[144,128]{1,0:T(1,128)}', space=vmem, size = 0x12000, scoped, tag = 'internal scratch']
  %s0 = inlined_call_operand.vmem [shape: bf16[2,6400], index: 0, kind: input, shape index: {}]
  %s1 = inlined_call_operand.vmem [shape: bf16[6400,10], index: 1, kind: input, shape index: {}]
  %s2 = inlined_call_operand.vmem [shape: f32[1,10], index: 2, kind: input, shape index: {}]
  %s3 = inlined_call_operand.hbm [shape: f32[2,10], index: 3, kind: output, shape index: {}]
  %s4 = sld [smem:[#allocation0]]
  $region22: #{tpu_custom_call.1} parent=0
    _
  %s6 = ssub.s32 1, %s4
  %s7 = scalar_select 0, %s6, %s4
  $region1: #{tpu_custom_call.1} parent=0
    #allocation2 [shape = 'u8[8192]{0}', space=vmem, size = 0x2000, scoped, tag = 'output window, operand 0, single buffered']
    #allocation3 [shape = 's32[1]{0}', space=sflag, size = 0x4, scoped, tag = 'scoped memory for tpu_custom_call.1']
    %8 = vsyncpa [#allocation3], 0
    // Predicated region
    $region2: #{tpu_custom_call.1} parent=1 // pred_check
      _
    $region3: #{tpu_custom_call.1} parent=1 // pred_check_branch
      %10 = sbr.rel (0) target = $region5
    $region4: #{tpu_custom_call.1} parent=1 // pred_region
      _
    $region5: #{tpu_custom_call.1} parent=1 // pred_fallthru
      _
    // Predicated region
    $region6: #{tpu_custom_call.1} parent=1 // pred_check
      _
    $region7: #{tpu_custom_call.1} parent=1 // pred_check_branch
      %12 = sbr.rel (0) target = $region9
    $region8: #{tpu_custom_call.1} parent=1 // pred_region
      _
    $region9: #{tpu_custom_call.1} parent=1 // pred_fallthru
      _
    // Predicated region
    $region10: #{tpu_custom_call.1} parent=1 // pred_check
      _
    $region11: #{tpu_custom_call.1} parent=1 // pred_check_branch
      %14 = sbr.rel (0) target = $region13
    $region12: #{tpu_custom_call.1} parent=1 // pred_region
      _
    $region13: #{tpu_custom_call.1} parent=1 // pred_fallthru
      _
    %v16 = vld [vmem:[%s0] sm:$0xff]
    %v17 = vld [vmem:[%s0 + $0x8] sm:$0xff]
    %v18 = vld [vmem:[%s0 + $0x10] sm:$0xff]
    %v19 = vld [vmem:[%s0 + $0x18] sm:$0xff]
    %v20 = vld [vmem:[%s0 + $0x20] sm:$0xff]
    %v21 = vld [vmem:[%s0 + $0x28] sm:$0xff]
    %v22 = vld [vmem:[%s0 + $0x30] sm:$0x3]
    %v23 = vld [vmem:[%s0 + $0x32] sm:$0xff]
    %v24 = vld [vmem:[%s0 + $0x3a] sm:$0xff]
    %v25 = vld [vmem:[%s0 + $0x42] sm:$0xff]
    %v26 = vld [vmem:[%s0 + $0x4a] sm:$0xff]
    %v27 = vld [vmem:[%s0 + $0x52] sm:$0xff]
    %v28 = vld [vmem:[%s0 + $0x5a] sm:$0xff]
    %v29 = vld [vmem:[%s0 + $0x62] sm:$0x3]
    %v30 = vld [vmem:[%s0 + $0x64] sm:$0xff]
    %v31 = vld [vmem:[%s0 + $0x6c] sm:$0xff]
    %v32 = vld [vmem:[%s0 + $0x74] sm:$0xff]
    %v33 = vld [vmem:[%s0 + $0x7c] sm:$0xff]
    %v34 = vld [vmem:[%s0 + $0x84] sm:$0xff]
    %v35 = vld [vmem:[%s0 + $0x8c] sm:$0xff]
    %v36 = vld [vmem:[%s0 + $0x94] sm:$0x3]
    %v37 = vld [vmem:[%s0 + $0x96] sm:$0xff]
    %v38 = vld [vmem:[%s0 + $0x9e] sm:$0xff]
    %v39 = vld [vmem:[%s0 + $0xa6] sm:$0xff]
    %v40 = vld [vmem:[%s0 + $0xae] sm:$0xff]
    %v41 = vld [vmem:[%s0 + $0xb6] sm:$0xff]
    %v42 = vld [vmem:[%s0 + $0xbe] sm:$0xff]
    %v43 = vld [vmem:[%s0 + $0xc6] sm:$0x3]
    %v44 = vld [vmem:[%s0 + $0xc8] sm:$0xff]
    %v45 = vld [vmem:[%s0 + $0xd0] sm:$0xff]
    %v46 = vld [vmem:[%s0 + $0xd8] sm:$0xff]
    %v47 = vld [vmem:[%s0 + $0xe0] sm:$0xff]
    %v48 = vld [vmem:[%s0 + $0xe8] sm:$0xff]
    %v49 = vld [vmem:[%s0 + $0xf0] sm:$0xff]
    %v50 = vld [vmem:[%s0 + $0xf8] sm:$0x3]
    %v51 = vld [vmem:[%s0 + $0xfa] sm:$0xff]
    %v52 = vld [vmem:[%s0 + $0x102] sm:$0xff]
    %v53 = vld [vmem:[%s0 + $0x10a] sm:$0xff]
    %v54 = vld [vmem:[%s0 + $0x112] sm:$0xff]
    %v55 = vld [vmem:[%s0 + $0x11a] sm:$0xff]
    %v56 = vld [vmem:[%s0 + $0x122] sm:$0xff]
    %v57 = vld [vmem:[%s0 + $0x12a] sm:$0x3]
    %v58 = vld [vmem:[%s0 + $0x12c] sm:$0xff]
    %v59 = vld [vmem:[%s0 + $0x134] sm:$0xff]
    %v60 = vld [vmem:[%s0 + $0x13c] sm:$0xff]
    %v61 = vld [vmem:[%s0 + $0x144] sm:$0xff]
    %v62 = vld [vmem:[%s0 + $0x14c] sm:$0xff]
    %v63 = vld [vmem:[%s0 + $0x154] sm:$0xff]
    %v64 = vld [vmem:[%s0 + $0x15c] sm:$0x3]
    %v65 = vld [vmem:[%s0 + $0x15e] sm:$0xff]
    %v66 = vld [vmem:[%s0 + $0x166] sm:$0xff]
    %v67 = vld [vmem:[%s0 + $0x16e] sm:$0xff]
    %v68 = vld [vmem:[%s0 + $0x176] sm:$0xff]
    %v69 = vld [vmem:[%s0 + $0x17e] sm:$0xff]
    %v70 = vld [vmem:[%s0 + $0x186] sm:$0xff]
    %v71 = vld [vmem:[%s0 + $0x18e] sm:$0x3]
    %v72 = vld [vmem:[%s1] sm:$0xf]
    %v73 = vld [vmem:[%s1 + $0x4] sm:$0xf]
    %v74 = vld [vmem:[%s1 + $0x8] sm:$0xf]
    %v75 = vld [vmem:[%s1 + $0xc] sm:$0xf]
    %v76 = vld [vmem:[%s1 + $0x10] sm:$0xf]
    %v77 = vld [vmem:[%s1 + $0x14] sm:$0xf]
    %v78 = vld [vmem:[%s1 + $0x18] sm:$0xf]
    %v79 = vld [vmem:[%s1 + $0x1c] sm:$0xf]
    %v80 = vld [vmem:[%s1 + $0x20] sm:$0xf]
    %v81 = vld [vmem:[%s1 + $0x24] sm:$0xf]
    %v82 = vld [vmem:[%s1 + $0x28] sm:$0xf]
    %v83 = vld [vmem:[%s1 + $0x2c] sm:$0xf]
    %v84 = vld [vmem:[%s1 + $0x30] sm:$0xf]
    %v85 = vld [vmem:[%s1 + $0x34] sm:$0xf]
    %v86 = vld [vmem:[%s1 + $0x38] sm:$0xf]
    %v87 = vld [vmem:[%s1 + $0x3c] sm:$0xf]
    %v88 = vld [vmem:[%s1 + $0x40] sm:$0xf]
    %v89 = vld [vmem:[%s1 + $0x44] sm:$0xf]
    %v90 = vld [vmem:[%s1 + $0x48] sm:$0xf]
    %v91 = vld [vmem:[%s1 + $0x4c] sm:$0xf]
    %v92 = vld [vmem:[%s1 + $0x50] sm:$0xf]
    %v93 = vld [vmem:[%s1 + $0x54] sm:$0xf]
    %v94 = vld [vmem:[%s1 + $0x58] sm:$0xf]
    %v95 = vld [vmem:[%s1 + $0x5c] sm:$0xf]
    %v96 = vld [vmem:[%s1 + $0x60] sm:$0xf]
    %v97 = vld [vmem:[%s1 + $0x64] sm:$0xf]
    %v98 = vld [vmem:[%s1 + $0x68] sm:$0xf]
    %v99 = vld [vmem:[%s1 + $0x6c] sm:$0xf]
    %v100 = vld [vmem:[%s1 + $0x70] sm:$0xf]
    %v101 = vld [vmem:[%s1 + $0x74] sm:$0xf]
    %v102 = vld [vmem:[%s1 + $0x78] sm:$0xf]
    %v103 = vld [vmem:[%s1 + $0x7c] sm:$0xf]
    %v104 = vld [vmem:[%s1 + $0x80] sm:$0xf]
    %v105 = vld [vmem:[%s1 + $0x84] sm:$0xf]
    %v106 = vld [vmem:[%s1 + $0x88] sm:$0xf]
    %v107 = vld [vmem:[%s1 + $0x8c] sm:$0xf]
    %v108 = vld [vmem:[%s1 + $0x90] sm:$0xf]
    %v109 = vld [vmem:[%s1 + $0x94] sm:$0xf]
    %v110 = vld [vmem:[%s1 + $0x98] sm:$0xf]
    %v111 = vld [vmem:[%s1 + $0x9c] sm:$0xf]
    %v112 = vld [vmem:[%s1 + $0xa0] sm:$0xf]
    %v113 = vld [vmem:[%s1 + $0xa4] sm:$0xf]
    %v114 = vld [vmem:[%s1 + $0xa8] sm:$0xf]
    %v115 = vld [vmem:[%s1 + $0xac] sm:$0xf]
    %v116 = vld [vmem:[%s1 + $0xb0] sm:$0xf]
    %v117 = vld [vmem:[%s1 + $0xb4] sm:$0xf]
    %v118 = vld [vmem:[%s1 + $0xb8] sm:$0xf]
    %v119 = vld [vmem:[%s1 + $0xbc] sm:$0xf]
    %v120 = vld [vmem:[%s1 + $0xc0] sm:$0xf]
    %v121 = vld [vmem:[%s1 + $0xc4] sm:$0xf]
    %v122 = vld [vmem:[%s1 + $0xc8] sm:$0xf]
    %v123 = vld [vmem:[%s1 + $0xcc] sm:$0xf]
    %v124 = vld [vmem:[%s1 + $0xd0] sm:$0xf]
    %v125 = vld [vmem:[%s1 + $0xd4] sm:$0xf]
    %v126 = vld [vmem:[%s1 + $0xd8] sm:$0xf]
    %v127 = vld [vmem:[%s1 + $0xdc] sm:$0xf]
    %v128 = vld [vmem:[%s1 + $0xe0] sm:$0xf]
    %v129 = vld [vmem:[%s1 + $0xe4] sm:$0xf]
    %v130 = vld [vmem:[%s1 + $0xe8] sm:$0xf]
    %v131 = vld [vmem:[%s1 + $0xec] sm:$0xf]
    %v132 = vld [vmem:[%s1 + $0xf0] sm:$0xf]
    %v133 = vld [vmem:[%s1 + $0xf4] sm:$0xf]
    %v134 = vld [vmem:[%s1 + $0xf8] sm:$0xf]
    %v135 = vld [vmem:[%s1 + $0xfc] sm:$0xf]
    %v136 = vld [vmem:[%s1 + $0x100] sm:$0xf]
    %v137 = vld [vmem:[%s1 + $0x104] sm:$0xf]
    %v138 = vld [vmem:[%s1 + $0x108] sm:$0xf]
    %v139 = vld [vmem:[%s1 + $0x10c] sm:$0xf]
    %v140 = vld [vmem:[%s1 + $0x110] sm:$0xf]
    %v141 = vld [vmem:[%s1 + $0x114] sm:$0xf]
    %v142 = vld [vmem:[%s1 + $0x118] sm:$0xf]
    %v143 = vld [vmem:[%s1 + $0x11c] sm:$0xf]
    %v144 = vld [vmem:[%s1 + $0x120] sm:$0xf]
    %v145 = vld [vmem:[%s1 + $0x124] sm:$0xf]
    %v146 = vld [vmem:[%s1 + $0x128] sm:$0xf]
    %v147 = vld [vmem:[%s1 + $0x12c] sm:$0xf]
    %v148 = vld [vmem:[%s1 + $0x130] sm:$0xf]
    %v149 = vld [vmem:[%s1 + $0x134] sm:$0xf]
    %v150 = vld [vmem:[%s1 + $0x138] sm:$0xf]
    %v151 = vld [vmem:[%s1 + $0x13c] sm:$0xf]
    %v152 = vld [vmem:[%s1 + $0x140] sm:$0xf]
    %v153 = vld [vmem:[%s1 + $0x144] sm:$0xf]
    %v154 = vld [vmem:[%s1 + $0x148] sm:$0xf]
    %v155 = vld [vmem:[%s1 + $0x14c] sm:$0xf]
    %v156 = vld [vmem:[%s1 + $0x150] sm:$0xf]
    %v157 = vld [vmem:[%s1 + $0x154] sm:$0xf]
    %v158 = vld [vmem:[%s1 + $0x158] sm:$0xf]
    %v159 = vld [vmem:[%s1 + $0x15c] sm:$0xf]
    %v160 = vld [vmem:[%s1 + $0x160] sm:$0xf]
    %v161 = vld [vmem:[%s1 + $0x164] sm:$0xf]
    %v162 = vld [vmem:[%s1 + $0x168] sm:$0xf]
    %v163 = vld [vmem:[%s1 + $0x16c] sm:$0xf]
    %v164 = vld [vmem:[%s1 + $0x170] sm:$0xf]
    %v165 = vld [vmem:[%s1 + $0x174] sm:$0xf]
    %v166 = vld [vmem:[%s1 + $0x178] sm:$0xf]
    %v167 = vld [vmem:[%s1 + $0x17c] sm:$0xf]
    %v168 = vld [vmem:[%s1 + $0x180] sm:$0xf]
    %v169 = vld [vmem:[%s1 + $0x184] sm:$0xf]
    %v170 = vld [vmem:[%s1 + $0x188] sm:$0xf]
    %v171 = vld [vmem:[%s1 + $0x18c] sm:$0xf]
    %v172 = vld [vmem:[%s1 + $0x190] sm:$0xf]
    %v173 = vld [vmem:[%s1 + $0x194] sm:$0xf]
    %v174 = vld [vmem:[%s1 + $0x198] sm:$0xf]
    %v175 = vld [vmem:[%s1 + $0x19c] sm:$0xf]
    %v176 = vld [vmem:[%s1 + $0x1a0] sm:$0xf]
    %v177 = vld [vmem:[%s1 + $0x1a4] sm:$0xf]
    %v178 = vld [vmem:[%s1 + $0x1a8] sm:$0xf]
    %v179 = vld [vmem:[%s1 + $0x1ac] sm:$0xf]
    %v180 = vld [vmem:[%s1 + $0x1b0] sm:$0xf]
    %v181 = vld [vmem:[%s1 + $0x1b4] sm:$0xf]
    %v182 = vld [vmem:[%s1 + $0x1b8] sm:$0xf]
    %v183 = vld [vmem:[%s1 + $0x1bc] sm:$0xf]
    %v184 = vld [vmem:[%s1 + $0x1c0] sm:$0xf]
    %v185 = vld [vmem:[%s1 + $0x1c4] sm:$0xf]
    %v186 = vld [vmem:[%s1 + $0x1c8] sm:$0xf]
    %v187 = vld [vmem:[%s1 + $0x1cc] sm:$0xf]
    %v188 = vld [vmem:[%s1 + $0x1d0] sm:$0xf]
    %v189 = vld [vmem:[%s1 + $0x1d4] sm:$0xf]
    %v190 = vld [vmem:[%s1 + $0x1d8] sm:$0xf]
    %v191 = vld [vmem:[%s1 + $0x1dc] sm:$0xf]
    %v192 = vld [vmem:[%s1 + $0x1e0] sm:$0xf]
    %v193 = vld [vmem:[%s1 + $0x1e4] sm:$0xf]
    %v194 = vld [vmem:[%s1 + $0x1e8] sm:$0xf]
    %v195 = vld [vmem:[%s1 + $0x1ec] sm:$0xf]
    %v196 = vld [vmem:[%s1 + $0x1f0] sm:$0xf]
    %v197 = vld [vmem:[%s1 + $0x1f4] sm:$0xf]
    %v198 = vld [vmem:[%s1 + $0x1f8] sm:$0xf]
    %v199 = vld [vmem:[%s1 + $0x1fc] sm:$0xf]
    %v200 = vld [vmem:[%s1 + $0x200] sm:$0xf]
    %v201 = vld [vmem:[%s1 + $0x204] sm:$0xf]
    %v202 = vld [vmem:[%s1 + $0x208] sm:$0xf]
    %v203 = vld [vmem:[%s1 + $0x20c] sm:$0xf]
    %v204 = vld [vmem:[%s1 + $0x210] sm:$0xf]
    %v205 = vld [vmem:[%s1 + $0x214] sm:$0xf]
    %v206 = vld [vmem:[%s1 + $0x218] sm:$0xf]
    %v207 = vld [vmem:[%s1 + $0x21c] sm:$0xf]
    %v208 = vld [vmem:[%s1 + $0x220] sm:$0xf]
    %v209 = vld [vmem:[%s1 + $0x224] sm:$0xf]
    %v210 = vld [vmem:[%s1 + $0x228] sm:$0xf]
    %v211 = vld [vmem:[%s1 + $0x22c] sm:$0xf]
    %v212 = vld [vmem:[%s1 + $0x230] sm:$0xf]
    %v213 = vld [vmem:[%s1 + $0x234] sm:$0xf]
    %v214 = vld [vmem:[%s1 + $0x238] sm:$0xf]
    %v215 = vld [vmem:[%s1 + $0x23c] sm:$0xf]
    %v216 = vld [vmem:[%s1 + $0x240] sm:$0xf]
    %v217 = vld [vmem:[%s1 + $0x244] sm:$0xf]
    %v218 = vld [vmem:[%s1 + $0x248] sm:$0xf]
    %v219 = vld [vmem:[%s1 + $0x24c] sm:$0xf]
    %v220 = vld [vmem:[%s1 + $0x250] sm:$0xf]
    %v221 = vld [vmem:[%s1 + $0x254] sm:$0xf]
    %v222 = vld [vmem:[%s1 + $0x258] sm:$0xf]
    %v223 = vld [vmem:[%s1 + $0x25c] sm:$0xf]
    %v224 = vld [vmem:[%s1 + $0x260] sm:$0xf]
    %v225 = vld [vmem:[%s1 + $0x264] sm:$0xf]
    %v226 = vld [vmem:[%s1 + $0x268] sm:$0xf]
    %v227 = vld [vmem:[%s1 + $0x26c] sm:$0xf]
    %v228 = vld [vmem:[%s1 + $0x270] sm:$0xf]
    %v229 = vld [vmem:[%s1 + $0x274] sm:$0xf]
    %v230 = vld [vmem:[%s1 + $0x278] sm:$0xf]
    %v231 = vld [vmem:[%s1 + $0x27c] sm:$0xf]
    %v232 = vld [vmem:[%s1 + $0x280] sm:$0xf]
    %v233 = vld [vmem:[%s1 + $0x284] sm:$0xf]
    %v234 = vld [vmem:[%s1 + $0x288] sm:$0xf]
    %v235 = vld [vmem:[%s1 + $0x28c] sm:$0xf]
    %v236 = vld [vmem:[%s1 + $0x290] sm:$0xf]
    %v237 = vld [vmem:[%s1 + $0x294] sm:$0xf]
    %v238 = vld [vmem:[%s1 + $0x298] sm:$0xf]
    %v239 = vld [vmem:[%s1 + $0x29c] sm:$0xf]
    %v240 = vld [vmem:[%s1 + $0x2a0] sm:$0xf]
    %v241 = vld [vmem:[%s1 + $0x2a4] sm:$0xf]
    %v242 = vld [vmem:[%s1 + $0x2a8] sm:$0xf]
    %v243 = vld [vmem:[%s1 + $0x2ac] sm:$0xf]
    %v244 = vld [vmem:[%s1 + $0x2b0] sm:$0xf]
    %v245 = vld [vmem:[%s1 + $0x2b4] sm:$0xf]
    %v246 = vld [vmem:[%s1 + $0x2b8] sm:$0xf]
    %v247 = vld [vmem:[%s1 + $0x2bc] sm:$0xf]
    %v248 = vld [vmem:[%s1 + $0x2c0] sm:$0xf]
    %v249 = vld [vmem:[%s1 + $0x2c4] sm:$0xf]
    %v250 = vld [vmem:[%s1 + $0x2c8] sm:$0xf]
    %v251 = vld [vmem:[%s1 + $0x2cc] sm:$0xf]
    %v252 = vld [vmem:[%s1 + $0x2d0] sm:$0xf]
    %v253 = vld [vmem:[%s1 + $0x2d4] sm:$0xf]
    %v254 = vld [vmem:[%s1 + $0x2d8] sm:$0xf]
    %v255 = vld [vmem:[%s1 + $0x2dc] sm:$0xf]
    %v256 = vld [vmem:[%s1 + $0x2e0] sm:$0xf]
    %v257 = vld [vmem:[%s1 + $0x2e4] sm:$0xf]
    %v258 = vld [vmem:[%s1 + $0x2e8] sm:$0xf]
    %v259 = vld [vmem:[%s1 + $0x2ec] sm:$0xf]
    %v260 = vld [vmem:[%s1 + $0x2f0] sm:$0xf]
    %v261 = vld [vmem:[%s1 + $0x2f4] sm:$0xf]
    %v262 = vld [vmem:[%s1 + $0x2f8] sm:$0xf]
    %v263 = vld [vmem:[%s1 + $0x2fc] sm:$0xf]
    %v264 = vld [vmem:[%s1 + $0x300] sm:$0xf]
    %v265 = vld [vmem:[%s1 + $0x304] sm:$0xf]
    %v266 = vld [vmem:[%s1 + $0x308] sm:$0xf]
    %v267 = vld [vmem:[%s1 + $0x30c] sm:$0xf]
    %v268 = vld [vmem:[%s1 + $0x310] sm:$0xf]
    %v269 = vld [vmem:[%s1 + $0x314] sm:$0xf]
    %v270 = vld [vmem:[%s1 + $0x318] sm:$0xf]
    %v271 = vld [vmem:[%s1 + $0x31c] sm:$0xf]
    %v272 = vld [vmem:[%s1 + $0x320] sm:$0xf]
    %v273 = vld [vmem:[%s1 + $0x324] sm:$0xf]
    %v274 = vld [vmem:[%s1 + $0x328] sm:$0xf]
    %v275 = vld [vmem:[%s1 + $0x32c] sm:$0xf]
    %v276 = vld [vmem:[%s1 + $0x330] sm:$0xf]
    %v277 = vld [vmem:[%s1 + $0x334] sm:$0xf]
    %v278 = vld [vmem:[%s1 + $0x338] sm:$0xf]
    %v279 = vld [vmem:[%s1 + $0x33c] sm:$0xf]
    %v280 = vld [vmem:[%s1 + $0x340] sm:$0xf]
    %v281 = vld [vmem:[%s1 + $0x344] sm:$0xf]
    %v282 = vld [vmem:[%s1 + $0x348] sm:$0xf]
    %v283 = vld [vmem:[%s1 + $0x34c] sm:$0xf]
    %v284 = vld [vmem:[%s1 + $0x350] sm:$0xf]
    %v285 = vld [vmem:[%s1 + $0x354] sm:$0xf]
    %v286 = vld [vmem:[%s1 + $0x358] sm:$0xf]
    %v287 = vld [vmem:[%s1 + $0x35c] sm:$0xf]
    %v288 = vld [vmem:[%s1 + $0x360] sm:$0xf]
    %v289 = vld [vmem:[%s1 + $0x364] sm:$0xf]
    %v290 = vld [vmem:[%s1 + $0x368] sm:$0xf]
    %v291 = vld [vmem:[%s1 + $0x36c] sm:$0xf]
    %v292 = vld [vmem:[%s1 + $0x370] sm:$0xf]
    %v293 = vld [vmem:[%s1 + $0x374] sm:$0xf]
    %v294 = vld [vmem:[%s1 + $0x378] sm:$0xf]
    %v295 = vld [vmem:[%s1 + $0x37c] sm:$0xf]
    %v296 = vld [vmem:[%s1 + $0x380] sm:$0xf]
    %v297 = vld [vmem:[%s1 + $0x384] sm:$0xf]
    %v298 = vld [vmem:[%s1 + $0x388] sm:$0xf]
    %v299 = vld [vmem:[%s1 + $0x38c] sm:$0xf]
    %v300 = vld [vmem:[%s1 + $0x390] sm:$0xf]
    %v301 = vld [vmem:[%s1 + $0x394] sm:$0xf]
    %v302 = vld [vmem:[%s1 + $0x398] sm:$0xf]
    %v303 = vld [vmem:[%s1 + $0x39c] sm:$0xf]
    %v304 = vld [vmem:[%s1 + $0x3a0] sm:$0xf]
    %v305 = vld [vmem:[%s1 + $0x3a4] sm:$0xf]
    %v306 = vld [vmem:[%s1 + $0x3a8] sm:$0xf]
    %v307 = vld [vmem:[%s1 + $0x3ac] sm:$0xf]
    %v308 = vld [vmem:[%s1 + $0x3b0] sm:$0xf]
    %v309 = vld [vmem:[%s1 + $0x3b4] sm:$0xf]
    %v310 = vld [vmem:[%s1 + $0x3b8] sm:$0xf]
    %v311 = vld [vmem:[%s1 + $0x3bc] sm:$0xf]
    %v312 = vld [vmem:[%s1 + $0x3c0] sm:$0xf]
    %v313 = vld [vmem:[%s1 + $0x3c4] sm:$0xf]
    %v314 = vld [vmem:[%s1 + $0x3c8] sm:$0xf]
    %v315 = vld [vmem:[%s1 + $0x3cc] sm:$0xf]
    %v316 = vld [vmem:[%s1 + $0x3d0] sm:$0xf]
    %v317 = vld [vmem:[%s1 + $0x3d4] sm:$0xf]
    %v318 = vld [vmem:[%s1 + $0x3d8] sm:$0xf]
    %v319 = vld [vmem:[%s1 + $0x3dc] sm:$0xf]
    %v320 = vld [vmem:[%s1 + $0x3e0] sm:$0xf]
    %v321 = vld [vmem:[%s1 + $0x3e4] sm:$0xf]
    %v322 = vld [vmem:[%s1 + $0x3e8] sm:$0xf]
    %v323 = vld [vmem:[%s1 + $0x3ec] sm:$0xf]
    %v324 = vld [vmem:[%s1 + $0x3f0] sm:$0xf]
    %v325 = vld [vmem:[%s1 + $0x3f4] sm:$0xf]
    %v326 = vld [vmem:[%s1 + $0x3f8] sm:$0xf]
    %v327 = vld [vmem:[%s1 + $0x3fc] sm:$0xf]
    %v328 = vld [vmem:[%s1 + $0x400] sm:$0xf]
    %v329 = vld [vmem:[%s1 + $0x404] sm:$0xf]
    %v330 = vld [vmem:[%s1 + $0x408] sm:$0xf]
    %v331 = vld [vmem:[%s1 + $0x40c] sm:$0xf]
    %v332 = vld [vmem:[%s1 + $0x410] sm:$0xf]
    %v333 = vld [vmem:[%s1 + $0x414] sm:$0xf]
    %v334 = vld [vmem:[%s1 + $0x418] sm:$0xf]
    %v335 = vld [vmem:[%s1 + $0x41c] sm:$0xf]
    %v336 = vld [vmem:[%s1 + $0x420] sm:$0xf]
    %v337 = vld [vmem:[%s1 + $0x424] sm:$0xf]
    %v338 = vld [vmem:[%s1 + $0x428] sm:$0xf]
    %v339 = vld [vmem:[%s1 + $0x42c] sm:$0xf]
    %v340 = vld [vmem:[%s1 + $0x430] sm:$0xf]
    %v341 = vld [vmem:[%s1 + $0x434] sm:$0xf]
    %v342 = vld [vmem:[%s1 + $0x438] sm:$0xf]
    %v343 = vld [vmem:[%s1 + $0x43c] sm:$0xf]
    %v344 = vld [vmem:[%s1 + $0x440] sm:$0xf]
    %v345 = vld [vmem:[%s1 + $0x444] sm:$0xf]
    %v346 = vld [vmem:[%s1 + $0x448] sm:$0xf]
    %v347 = vld [vmem:[%s1 + $0x44c] sm:$0xf]
    %v348 = vld [vmem:[%s1 + $0x450] sm:$0xf]
    %v349 = vld [vmem:[%s1 + $0x454] sm:$0xf]
    %v350 = vld [vmem:[%s1 + $0x458] sm:$0xf]
    %v351 = vld [vmem:[%s1 + $0x45c] sm:$0xf]
    %v352 = vld [vmem:[%s1 + $0x460] sm:$0xf]
    %v353 = vld [vmem:[%s1 + $0x464] sm:$0xf]
    %v354 = vld [vmem:[%s1 + $0x468] sm:$0xf]
    %v355 = vld [vmem:[%s1 + $0x46c] sm:$0xf]
    %v356 = vld [vmem:[%s1 + $0x470] sm:$0xf]
    %v357 = vld [vmem:[%s1 + $0x474] sm:$0xf]
    %v358 = vld [vmem:[%s1 + $0x478] sm:$0xf]
    %v359 = vld [vmem:[%s1 + $0x47c] sm:$0xf]
    %v360 = vld [vmem:[%s1 + $0x480] sm:$0xf]
    %v361 = vld [vmem:[%s1 + $0x484] sm:$0xf]
    %v362 = vld [vmem:[%s1 + $0x488] sm:$0xf]
    %v363 = vld [vmem:[%s1 + $0x48c] sm:$0xf]
    %v364 = vld [vmem:[%s1 + $0x490] sm:$0xf]
    %v365 = vld [vmem:[%s1 + $0x494] sm:$0xf]
    %v366 = vld [vmem:[%s1 + $0x498] sm:$0xf]
    %v367 = vld [vmem:[%s1 + $0x49c] sm:$0xf]
    %v368 = vld [vmem:[%s1 + $0x4a0] sm:$0xf]
    %v369 = vld [vmem:[%s1 + $0x4a4] sm:$0xf]
    %v370 = vld [vmem:[%s1 + $0x4a8] sm:$0xf]
    %v371 = vld [vmem:[%s1 + $0x4ac] sm:$0xf]
    %v372 = vld [vmem:[%s1 + $0x4b0] sm:$0xf]
    %v373 = vld [vmem:[%s1 + $0x4b4] sm:$0xf]
    %v374 = vld [vmem:[%s1 + $0x4b8] sm:$0xf]
    %v375 = vld [vmem:[%s1 + $0x4bc] sm:$0xf]
    %v376 = vld [vmem:[%s1 + $0x4c0] sm:$0xf]
    %v377 = vld [vmem:[%s1 + $0x4c4] sm:$0xf]
    %v378 = vld [vmem:[%s1 + $0x4c8] sm:$0xf]
    %v379 = vld [vmem:[%s1 + $0x4cc] sm:$0xf]
    %v380 = vld [vmem:[%s1 + $0x4d0] sm:$0xf]
    %v381 = vld [vmem:[%s1 + $0x4d4] sm:$0xf]
    %v382 = vld [vmem:[%s1 + $0x4d8] sm:$0xf]
    %v383 = vld [vmem:[%s1 + $0x4dc] sm:$0xf]
    %v384 = vld [vmem:[%s1 + $0x4e0] sm:$0xf]
    %v385 = vld [vmem:[%s1 + $0x4e4] sm:$0xf]
    %v386 = vld [vmem:[%s1 + $0x4e8] sm:$0xf]
    %v387 = vld [vmem:[%s1 + $0x4ec] sm:$0xf]
    %v388 = vld [vmem:[%s1 + $0x4f0] sm:$0xf]
    %v389 = vld [vmem:[%s1 + $0x4f4] sm:$0xf]
    %v390 = vld [vmem:[%s1 + $0x4f8] sm:$0xf]
    %v391 = vld [vmem:[%s1 + $0x4fc] sm:$0xf]
    %v392 = vld [vmem:[%s1 + $0x500] sm:$0xf]
    %v393 = vld [vmem:[%s1 + $0x504] sm:$0xf]
    %v394 = vld [vmem:[%s1 + $0x508] sm:$0xf]
    %v395 = vld [vmem:[%s1 + $0x50c] sm:$0xf]
    %v396 = vld [vmem:[%s1 + $0x510] sm:$0xf]
    %v397 = vld [vmem:[%s1 + $0x514] sm:$0xf]
    %v398 = vld [vmem:[%s1 + $0x518] sm:$0xf]
    %v399 = vld [vmem:[%s1 + $0x51c] sm:$0xf]
    %v400 = vld [vmem:[%s1 + $0x520] sm:$0xf]
    %v401 = vld [vmem:[%s1 + $0x524] sm:$0xf]
    %v402 = vld [vmem:[%s1 + $0x528] sm:$0xf]
    %v403 = vld [vmem:[%s1 + $0x52c] sm:$0xf]
    %v404 = vld [vmem:[%s1 + $0x530] sm:$0xf]
    %v405 = vld [vmem:[%s1 + $0x534] sm:$0xf]
    %v406 = vld [vmem:[%s1 + $0x538] sm:$0xf]
    %v407 = vld [vmem:[%s1 + $0x53c] sm:$0xf]
    %v408 = vld [vmem:[%s1 + $0x540] sm:$0xf]
    %v409 = vld [vmem:[%s1 + $0x544] sm:$0xf]
    %v410 = vld [vmem:[%s1 + $0x548] sm:$0xf]
    %v411 = vld [vmem:[%s1 + $0x54c] sm:$0xf]
    %v412 = vld [vmem:[%s1 + $0x550] sm:$0xf]
    %v413 = vld [vmem:[%s1 + $0x554] sm:$0xf]
    %v414 = vld [vmem:[%s1 + $0x558] sm:$0xf]
    %v415 = vld [vmem:[%s1 + $0x55c] sm:$0xf]
    %v416 = vld [vmem:[%s1 + $0x560] sm:$0xf]
    %v417 = vld [vmem:[%s1 + $0x564] sm:$0xf]
    %v418 = vld [vmem:[%s1 + $0x568] sm:$0xf]
    %v419 = vld [vmem:[%s1 + $0x56c] sm:$0xf]
    %v420 = vld [vmem:[%s1 + $0x570] sm:$0xf]
    %v421 = vld [vmem:[%s1 + $0x574] sm:$0xf]
    %v422 = vld [vmem:[%s1 + $0x578] sm:$0xf]
    %v423 = vld [vmem:[%s1 + $0x57c] sm:$0xf]
    %v424 = vld [vmem:[%s1 + $0x580] sm:$0xf]
    %v425 = vld [vmem:[%s1 + $0x584] sm:$0xf]
    %v426 = vld [vmem:[%s1 + $0x588] sm:$0xf]
    %v427 = vld [vmem:[%s1 + $0x58c] sm:$0xf]
    %v428 = vld [vmem:[%s1 + $0x590] sm:$0xf]
    %v429 = vld [vmem:[%s1 + $0x594] sm:$0xf]
    %v430 = vld [vmem:[%s1 + $0x598] sm:$0xf]
    %v431 = vld [vmem:[%s1 + $0x59c] sm:$0xf]
    %v432 = vld [vmem:[%s1 + $0x5a0] sm:$0xf]
    %v433 = vld [vmem:[%s1 + $0x5a4] sm:$0xf]
    %v434 = vld [vmem:[%s1 + $0x5a8] sm:$0xf]
    %v435 = vld [vmem:[%s1 + $0x5ac] sm:$0xf]
    %v436 = vld [vmem:[%s1 + $0x5b0] sm:$0xf]
    %v437 = vld [vmem:[%s1 + $0x5b4] sm:$0xf]
    %v438 = vld [vmem:[%s1 + $0x5b8] sm:$0xf]
    %v439 = vld [vmem:[%s1 + $0x5bc] sm:$0xf]
    %v440 = vld [vmem:[%s1 + $0x5c0] sm:$0xf]
    %v441 = vld [vmem:[%s1 + $0x5c4] sm:$0xf]
    %v442 = vld [vmem:[%s1 + $0x5c8] sm:$0xf]
    %v443 = vld [vmem:[%s1 + $0x5cc] sm:$0xf]
    %v444 = vld [vmem:[%s1 + $0x5d0] sm:$0xf]
    %v445 = vld [vmem:[%s1 + $0x5d4] sm:$0xf]
    %v446 = vld [vmem:[%s1 + $0x5d8] sm:$0xf]
    %v447 = vld [vmem:[%s1 + $0x5dc] sm:$0xf]
    %v448 = vld [vmem:[%s1 + $0x5e0] sm:$0xf]
    %v449 = vld [vmem:[%s1 + $0x5e4] sm:$0xf]
    %v450 = vld [vmem:[%s1 + $0x5e8] sm:$0xf]
    %v451 = vld [vmem:[%s1 + $0x5ec] sm:$0xf]
    %v452 = vld [vmem:[%s1 + $0x5f0] sm:$0xf]
    %v453 = vld [vmem:[%s1 + $0x5f4] sm:$0xf]
    %v454 = vld [vmem:[%s1 + $0x5f8] sm:$0xf]
    %v455 = vld [vmem:[%s1 + $0x5fc] sm:$0xf]
    %v456 = vld [vmem:[%s1 + $0x600] sm:$0xf]
    %v457 = vld [vmem:[%s1 + $0x604] sm:$0xf]
    %v458 = vld [vmem:[%s1 + $0x608] sm:$0xf]
    %v459 = vld [vmem:[%s1 + $0x60c] sm:$0xf]
    %v460 = vld [vmem:[%s1 + $0x610] sm:$0xf]
    %v461 = vld [vmem:[%s1 + $0x614] sm:$0xf]
    %v462 = vld [vmem:[%s1 + $0x618] sm:$0xf]
    %v463 = vld [vmem:[%s1 + $0x61c] sm:$0xf]
    %v464 = vld [vmem:[%s1 + $0x620] sm:$0xf]
    %v465 = vld [vmem:[%s1 + $0x624] sm:$0xf]
    %v466 = vld [vmem:[%s1 + $0x628] sm:$0xf]
    %v467 = vld [vmem:[%s1 + $0x62c] sm:$0xf]
    %v468 = vld [vmem:[%s1 + $0x630] sm:$0xf]
    %v469 = vld [vmem:[%s1 + $0x634] sm:$0xf]
    %v470 = vld [vmem:[%s1 + $0x638] sm:$0xf]
    %v471 = vld [vmem:[%s1 + $0x63c] sm:$0xf]
    %v472 = vld [vmem:[%s1 + $0x640] sm:$0xf]
    %v473 = vld [vmem:[%s1 + $0x644] sm:$0xf]
    %v474 = vld [vmem:[%s1 + $0x648] sm:$0xf]
    %v475 = vld [vmem:[%s1 + $0x64c] sm:$0xf]
    %v476 = vld [vmem:[%s1 + $0x650] sm:$0xf]
    %v477 = vld [vmem:[%s1 + $0x654] sm:$0xf]
    %v478 = vld [vmem:[%s1 + $0x658] sm:$0xf]
    %v479 = vld [vmem:[%s1 + $0x65c] sm:$0xf]
    %v480 = vld [vmem:[%s1 + $0x660] sm:$0xf]
    %v481 = vld [vmem:[%s1 + $0x664] sm:$0xf]
    %v482 = vld [vmem:[%s1 + $0x668] sm:$0xf]
    %v483 = vld [vmem:[%s1 + $0x66c] sm:$0xf]
    %v484 = vld [vmem:[%s1 + $0x670] sm:$0xf]
    %v485 = vld [vmem:[%s1 + $0x674] sm:$0xf]
    %v486 = vld [vmem:[%s1 + $0x678] sm:$0xf]
    %v487 = vld [vmem:[%s1 + $0x67c] sm:$0xf]
    %v488 = vld [vmem:[%s1 + $0x680] sm:$0xf]
    %v489 = vld [vmem:[%s1 + $0x684] sm:$0xf]
    %v490 = vld [vmem:[%s1 + $0x688] sm:$0xf]
    %v491 = vld [vmem:[%s1 + $0x68c] sm:$0xf]
    %v492 = vld [vmem:[%s1 + $0x690] sm:$0xf]
    %v493 = vld [vmem:[%s1 + $0x694] sm:$0xf]
    %v494 = vld [vmem:[%s1 + $0x698] sm:$0xf]
    %v495 = vld [vmem:[%s1 + $0x69c] sm:$0xf]
    %v496 = vld [vmem:[%s1 + $0x6a0] sm:$0xf]
    %v497 = vld [vmem:[%s1 + $0x6a4] sm:$0xf]
    %v498 = vld [vmem:[%s1 + $0x6a8] sm:$0xf]
    %v499 = vld [vmem:[%s1 + $0x6ac] sm:$0xf]
    %v500 = vld [vmem:[%s1 + $0x6b0] sm:$0xf]
    %v501 = vld [vmem:[%s1 + $0x6b4] sm:$0xf]
    %v502 = vld [vmem:[%s1 + $0x6b8] sm:$0xf]
    %v503 = vld [vmem:[%s1 + $0x6bc] sm:$0xf]
    %v504 = vld [vmem:[%s1 + $0x6c0] sm:$0xf]
    %v505 = vld [vmem:[%s1 + $0x6c4] sm:$0xf]
    %v506 = vld [vmem:[%s1 + $0x6c8] sm:$0xf]
    %v507 = vld [vmem:[%s1 + $0x6cc] sm:$0xf]
    %v508 = vld [vmem:[%s1 + $0x6d0] sm:$0xf]
    %v509 = vld [vmem:[%s1 + $0x6d4] sm:$0xf]
    %v510 = vld [vmem:[%s1 + $0x6d8] sm:$0xf]
    %v511 = vld [vmem:[%s1 + $0x6dc] sm:$0xf]
    %v512 = vld [vmem:[%s1 + $0x6e0] sm:$0xf]
    %v513 = vld [vmem:[%s1 + $0x6e4] sm:$0xf]
    %v514 = vld [vmem:[%s1 + $0x6e8] sm:$0xf]
    %v515 = vld [vmem:[%s1 + $0x6ec] sm:$0xf]
    %v516 = vld [vmem:[%s1 + $0x6f0] sm:$0xf]
    %v517 = vld [vmem:[%s1 + $0x6f4] sm:$0xf]
    %v518 = vld [vmem:[%s1 + $0x6f8] sm:$0xf]
    %v519 = vld [vmem:[%s1 + $0x6fc] sm:$0xf]
    %v520 = vld [vmem:[%s1 + $0x700] sm:$0xf]
    %v521 = vld [vmem:[%s1 + $0x704] sm:$0xf]
    %v522 = vld [vmem:[%s1 + $0x708] sm:$0xf]
    %v523 = vld [vmem:[%s1 + $0x70c] sm:$0xf]
    %v524 = vld [vmem:[%s1 + $0x710] sm:$0xf]
    %v525 = vld [vmem:[%s1 + $0x714] sm:$0xf]
    %v526 = vld [vmem:[%s1 + $0x718] sm:$0xf]
    %v527 = vld [vmem:[%s1 + $0x71c] sm:$0xf]
    %v528 = vld [vmem:[%s1 + $0x720] sm:$0xf]
    %v529 = vld [vmem:[%s1 + $0x724] sm:$0xf]
    %v530 = vld [vmem:[%s1 + $0x728] sm:$0xf]
    %v531 = vld [vmem:[%s1 + $0x72c] sm:$0xf]
    %v532 = vld [vmem:[%s1 + $0x730] sm:$0xf]
    %v533 = vld [vmem:[%s1 + $0x734] sm:$0xf]
    %v534 = vld [vmem:[%s1 + $0x738] sm:$0xf]
    %v535 = vld [vmem:[%s1 + $0x73c] sm:$0xf]
    %v536 = vld [vmem:[%s1 + $0x740] sm:$0xf]
    %v537 = vld [vmem:[%s1 + $0x744] sm:$0xf]
    %v538 = vld [vmem:[%s1 + $0x748] sm:$0xf]
    %v539 = vld [vmem:[%s1 + $0x74c] sm:$0xf]
    %v540 = vld [vmem:[%s1 + $0x750] sm:$0xf]
    %v541 = vld [vmem:[%s1 + $0x754] sm:$0xf]
    %v542 = vld [vmem:[%s1 + $0x758] sm:$0xf]
    %v543 = vld [vmem:[%s1 + $0x75c] sm:$0xf]
    %v544 = vld [vmem:[%s1 + $0x760] sm:$0xf]
    %v545 = vld [vmem:[%s1 + $0x764] sm:$0xf]
    %v546 = vld [vmem:[%s1 + $0x768] sm:$0xf]
    %v547 = vld [vmem:[%s1 + $0x76c] sm:$0xf]
    %v548 = vld [vmem:[%s1 + $0x770] sm:$0xf]
    %v549 = vld [vmem:[%s1 + $0x774] sm:$0xf]
    %v550 = vld [vmem:[%s1 + $0x778] sm:$0xf]
    %v551 = vld [vmem:[%s1 + $0x77c] sm:$0xf]
    %v552 = vld [vmem:[%s1 + $0x780] sm:$0xf]
    %v553 = vld [vmem:[%s1 + $0x784] sm:$0xf]
    %v554 = vld [vmem:[%s1 + $0x788] sm:$0xf]
    %v555 = vld [vmem:[%s1 + $0x78c] sm:$0xf]
    %v556 = vld [vmem:[%s1 + $0x790] sm:$0xf]
    %v557 = vld [vmem:[%s1 + $0x794] sm:$0xf]
    %v558 = vld [vmem:[%s1 + $0x798] sm:$0xf]
    %v559 = vld [vmem:[%s1 + $0x79c] sm:$0xf]
    %v560 = vld [vmem:[%s1 + $0x7a0] sm:$0xf]
    %v561 = vld [vmem:[%s1 + $0x7a4] sm:$0xf]
    %v562 = vld [vmem:[%s1 + $0x7a8] sm:$0xf]
    %v563 = vld [vmem:[%s1 + $0x7ac] sm:$0xf]
    %v564 = vld [vmem:[%s1 + $0x7b0] sm:$0xf]
    %v565 = vld [vmem:[%s1 + $0x7b4] sm:$0xf]
    %v566 = vld [vmem:[%s1 + $0x7b8] sm:$0xf]
    %v567 = vld [vmem:[%s1 + $0x7bc] sm:$0xf]
    %v568 = vld [vmem:[%s1 + $0x7c0] sm:$0xf]
    %v569 = vld [vmem:[%s1 + $0x7c4] sm:$0xf]
    %v570 = vld [vmem:[%s1 + $0x7c8] sm:$0xf]
    %v571 = vld [vmem:[%s1 + $0x7cc] sm:$0xf]
    %v572 = vld [vmem:[%s1 + $0x7d0] sm:$0xf]
    %v573 = vld [vmem:[%s1 + $0x7d4] sm:$0xf]
    %v574 = vld [vmem:[%s1 + $0x7d8] sm:$0xf]
    %v575 = vld [vmem:[%s1 + $0x7dc] sm:$0xf]
    %v576 = vld [vmem:[%s1 + $0x7e0] sm:$0xf]
    %v577 = vld [vmem:[%s1 + $0x7e4] sm:$0xf]
    %v578 = vld [vmem:[%s1 + $0x7e8] sm:$0xf]
    %v579 = vld [vmem:[%s1 + $0x7ec] sm:$0xf]
    %v580 = vld [vmem:[%s1 + $0x7f0] sm:$0xf]
    %v581 = vld [vmem:[%s1 + $0x7f4] sm:$0xf]
    %v582 = vld [vmem:[%s1 + $0x7f8] sm:$0xf]
    %v583 = vld [vmem:[%s1 + $0x7fc] sm:$0xf]
    %v584 = vld [vmem:[%s1 + $0x800] sm:$0xf]
    %v585 = vld [vmem:[%s1 + $0x804] sm:$0xf]
    %v586 = vld [vmem:[%s1 + $0x808] sm:$0xf]
    %v587 = vld [vmem:[%s1 + $0x80c] sm:$0xf]
    %v588 = vld [vmem:[%s1 + $0x810] sm:$0xf]
    %v589 = vld [vmem:[%s1 + $0x814] sm:$0xf]
    %v590 = vld [vmem:[%s1 + $0x818] sm:$0xf]
    %v591 = vld [vmem:[%s1 + $0x81c] sm:$0xf]
    %v592 = vld [vmem:[%s1 + $0x820] sm:$0xf]
    %v593 = vld [vmem:[%s1 + $0x824] sm:$0xf]
    %v594 = vld [vmem:[%s1 + $0x828] sm:$0xf]
    %v595 = vld [vmem:[%s1 + $0x82c] sm:$0xf]
    %v596 = vld [vmem:[%s1 + $0x830] sm:$0xf]
    %v597 = vld [vmem:[%s1 + $0x834] sm:$0xf]
    %v598 = vld [vmem:[%s1 + $0x838] sm:$0xf]
    %v599 = vld [vmem:[%s1 + $0x83c] sm:$0xf]
    %v600 = vld [vmem:[%s1 + $0x840] sm:$0xf]
    %v601 = vld [vmem:[%s1 + $0x844] sm:$0xf]
    %v602 = vld [vmem:[%s1 + $0x848] sm:$0xf]
    %v603 = vld [vmem:[%s1 + $0x84c] sm:$0xf]
    %v604 = vld [vmem:[%s1 + $0x850] sm:$0xf]
    %v605 = vld [vmem:[%s1 + $0x854] sm:$0xf]
    %v606 = vld [vmem:[%s1 + $0x858] sm:$0xf]
    %v607 = vld [vmem:[%s1 + $0x85c] sm:$0xf]
    %v608 = vld [vmem:[%s1 + $0x860] sm:$0xf]
    %v609 = vld [vmem:[%s1 + $0x864] sm:$0xf]
    %v610 = vld [vmem:[%s1 + $0x868] sm:$0xf]
    %v611 = vld [vmem:[%s1 + $0x86c] sm:$0xf]
    %v612 = vld [vmem:[%s1 + $0x870] sm:$0xf]
    %v613 = vld [vmem:[%s1 + $0x874] sm:$0xf]
    %v614 = vld [vmem:[%s1 + $0x878] sm:$0xf]
    %v615 = vld [vmem:[%s1 + $0x87c] sm:$0xf]
    %v616 = vld [vmem:[%s1 + $0x880] sm:$0xf]
    %v617 = vld [vmem:[%s1 + $0x884] sm:$0xf]
    %v618 = vld [vmem:[%s1 + $0x888] sm:$0xf]
    %v619 = vld [vmem:[%s1 + $0x88c] sm:$0xf]
    %v620 = vld [vmem:[%s1 + $0x890] sm:$0xf]
    %v621 = vld [vmem:[%s1 + $0x894] sm:$0xf]
    %v622 = vld [vmem:[%s1 + $0x898] sm:$0xf]
    %v623 = vld [vmem:[%s1 + $0x89c] sm:$0xf]
    %v624 = vld [vmem:[%s1 + $0x8a0] sm:$0xf]
    %v625 = vld [vmem:[%s1 + $0x8a4] sm:$0xf]
    %v626 = vld [vmem:[%s1 + $0x8a8] sm:$0xf]
    %v627 = vld [vmem:[%s1 + $0x8ac] sm:$0xf]
    %v628 = vld [vmem:[%s1 + $0x8b0] sm:$0xf]
    %v629 = vld [vmem:[%s1 + $0x8b4] sm:$0xf]
    %v630 = vld [vmem:[%s1 + $0x8b8] sm:$0xf]
    %v631 = vld [vmem:[%s1 + $0x8bc] sm:$0xf]
    %v632 = vld [vmem:[%s1 + $0x8c0] sm:$0xf]
    %v633 = vld [vmem:[%s1 + $0x8c4] sm:$0xf]
    %v634 = vld [vmem:[%s1 + $0x8c8] sm:$0xf]
    %v635 = vld [vmem:[%s1 + $0x8cc] sm:$0xf]
    %v636 = vld [vmem:[%s1 + $0x8d0] sm:$0xf]
    %v637 = vld [vmem:[%s1 + $0x8d4] sm:$0xf]
    %v638 = vld [vmem:[%s1 + $0x8d8] sm:$0xf]
    %v639 = vld [vmem:[%s1 + $0x8dc] sm:$0xf]
    %v640 = vld [vmem:[%s1 + $0x8e0] sm:$0xf]
    %v641 = vld [vmem:[%s1 + $0x8e4] sm:$0xf]
    %v642 = vld [vmem:[%s1 + $0x8e8] sm:$0xf]
    %v643 = vld [vmem:[%s1 + $0x8ec] sm:$0xf]
    %v644 = vld [vmem:[%s1 + $0x8f0] sm:$0xf]
    %v645 = vld [vmem:[%s1 + $0x8f4] sm:$0xf]
    %v646 = vld [vmem:[%s1 + $0x8f8] sm:$0xf]
    %v647 = vld [vmem:[%s1 + $0x8fc] sm:$0xf]
    %v648 = vld [vmem:[%s1 + $0x900] sm:$0xf]
    %v649 = vld [vmem:[%s1 + $0x904] sm:$0xf]
    %v650 = vld [vmem:[%s1 + $0x908] sm:$0xf]
    %v651 = vld [vmem:[%s1 + $0x90c] sm:$0xf]
    %v652 = vld [vmem:[%s1 + $0x910] sm:$0xf]
    %v653 = vld [vmem:[%s1 + $0x914] sm:$0xf]
    %v654 = vld [vmem:[%s1 + $0x918] sm:$0xf]
    %v655 = vld [vmem:[%s1 + $0x91c] sm:$0xf]
    %v656 = vld [vmem:[%s1 + $0x920] sm:$0xf]
    %v657 = vld [vmem:[%s1 + $0x924] sm:$0xf]
    %v658 = vld [vmem:[%s1 + $0x928] sm:$0xf]
    %v659 = vld [vmem:[%s1 + $0x92c] sm:$0xf]
    %v660 = vld [vmem:[%s1 + $0x930] sm:$0xf]
    %v661 = vld [vmem:[%s1 + $0x934] sm:$0xf]
    %v662 = vld [vmem:[%s1 + $0x938] sm:$0xf]
    %v663 = vld [vmem:[%s1 + $0x93c] sm:$0xf]
    %v664 = vld [vmem:[%s1 + $0x940] sm:$0xf]
    %v665 = vld [vmem:[%s1 + $0x944] sm:$0xf]
    %v666 = vld [vmem:[%s1 + $0x948] sm:$0xf]
    %v667 = vld [vmem:[%s1 + $0x94c] sm:$0xf]
    %v668 = vld [vmem:[%s1 + $0x950] sm:$0xf]
    %v669 = vld [vmem:[%s1 + $0x954] sm:$0xf]
    %v670 = vld [vmem:[%s1 + $0x958] sm:$0xf]
    %v671 = vld [vmem:[%s1 + $0x95c] sm:$0xf]
    %v672 = vld [vmem:[%s1 + $0x960] sm:$0xf]
    %v673 = vld [vmem:[%s1 + $0x964] sm:$0xf]
    %v674 = vld [vmem:[%s1 + $0x968] sm:$0xf]
    %v675 = vld [vmem:[%s1 + $0x96c] sm:$0xf]
    %v676 = vld [vmem:[%s1 + $0x970] sm:$0xf]
    %v677 = vld [vmem:[%s1 + $0x974] sm:$0xf]
    %v678 = vld [vmem:[%s1 + $0x978] sm:$0xf]
    %v679 = vld [vmem:[%s1 + $0x97c] sm:$0xf]
    %v680 = vld [vmem:[%s1 + $0x980] sm:$0xf]
    %v681 = vld [vmem:[%s1 + $0x984] sm:$0xf]
    %v682 = vld [vmem:[%s1 + $0x988] sm:$0xf]
    %v683 = vld [vmem:[%s1 + $0x98c] sm:$0xf]
    %v684 = vld [vmem:[%s1 + $0x990] sm:$0xf]
    %v685 = vld [vmem:[%s1 + $0x994] sm:$0xf]
    %v686 = vld [vmem:[%s1 + $0x998] sm:$0xf]
    %v687 = vld [vmem:[%s1 + $0x99c] sm:$0xf]
    %v688 = vld [vmem:[%s1 + $0x9a0] sm:$0xf]
    %v689 = vld [vmem:[%s1 + $0x9a4] sm:$0xf]
    %v690 = vld [vmem:[%s1 + $0x9a8] sm:$0xf]
    %v691 = vld [vmem:[%s1 + $0x9ac] sm:$0xf]
    %v692 = vld [vmem:[%s1 + $0x9b0] sm:$0xf]
    %v693 = vld [vmem:[%s1 + $0x9b4] sm:$0xf]
    %v694 = vld [vmem:[%s1 + $0x9b8] sm:$0xf]
    %v695 = vld [vmem:[%s1 + $0x9bc] sm:$0xf]
    %v696 = vld [vmem:[%s1 + $0x9c0] sm:$0xf]
    %v697 = vld [vmem:[%s1 + $0x9c4] sm:$0xf]
    %v698 = vld [vmem:[%s1 + $0x9c8] sm:$0xf]
    %v699 = vld [vmem:[%s1 + $0x9cc] sm:$0xf]
    %v700 = vld [vmem:[%s1 + $0x9d0] sm:$0xf]
    %v701 = vld [vmem:[%s1 + $0x9d4] sm:$0xf]
    %v702 = vld [vmem:[%s1 + $0x9d8] sm:$0xf]
    %v703 = vld [vmem:[%s1 + $0x9dc] sm:$0xf]
    %v704 = vld [vmem:[%s1 + $0x9e0] sm:$0xf]
    %v705 = vld [vmem:[%s1 + $0x9e4] sm:$0xf]
    %v706 = vld [vmem:[%s1 + $0x9e8] sm:$0xf]
    %v707 = vld [vmem:[%s1 + $0x9ec] sm:$0xf]
    %v708 = vld [vmem:[%s1 + $0x9f0] sm:$0xf]
    %v709 = vld [vmem:[%s1 + $0x9f4] sm:$0xf]
    %v710 = vld [vmem:[%s1 + $0x9f8] sm:$0xf]
    %v711 = vld [vmem:[%s1 + $0x9fc] sm:$0xf]
    %v712 = vld [vmem:[%s1 + $0xa00] sm:$0xf]
    %v713 = vld [vmem:[%s1 + $0xa04] sm:$0xf]
    %v714 = vld [vmem:[%s1 + $0xa08] sm:$0xf]
    %v715 = vld [vmem:[%s1 + $0xa0c] sm:$0xf]
    %v716 = vld [vmem:[%s1 + $0xa10] sm:$0xf]
    %v717 = vld [vmem:[%s1 + $0xa14] sm:$0xf]
    %v718 = vld [vmem:[%s1 + $0xa18] sm:$0xf]
    %v719 = vld [vmem:[%s1 + $0xa1c] sm:$0xf]
    %v720 = vld [vmem:[%s1 + $0xa20] sm:$0xf]
    %v721 = vld [vmem:[%s1 + $0xa24] sm:$0xf]
    %v722 = vld [vmem:[%s1 + $0xa28] sm:$0xf]
    %v723 = vld [vmem:[%s1 + $0xa2c] sm:$0xf]
    %v724 = vld [vmem:[%s1 + $0xa30] sm:$0xf]
    %v725 = vld [vmem:[%s1 + $0xa34] sm:$0xf]
    %v726 = vld [vmem:[%s1 + $0xa38] sm:$0xf]
    %v727 = vld [vmem:[%s1 + $0xa3c] sm:$0xf]
    %v728 = vld [vmem:[%s1 + $0xa40] sm:$0xf]
    %v729 = vld [vmem:[%s1 + $0xa44] sm:$0xf]
    %v730 = vld [vmem:[%s1 + $0xa48] sm:$0xf]
    %v731 = vld [vmem:[%s1 + $0xa4c] sm:$0xf]
    %v732 = vld [vmem:[%s1 + $0xa50] sm:$0xf]
    %v733 = vld [vmem:[%s1 + $0xa54] sm:$0xf]
    %v734 = vld [vmem:[%s1 + $0xa58] sm:$0xf]
    %v735 = vld [vmem:[%s1 + $0xa5c] sm:$0xf]
    %v736 = vld [vmem:[%s1 + $0xa60] sm:$0xf]
    %v737 = vld [vmem:[%s1 + $0xa64] sm:$0xf]
    %v738 = vld [vmem:[%s1 + $0xa68] sm:$0xf]
    %v739 = vld [vmem:[%s1 + $0xa6c] sm:$0xf]
    %v740 = vld [vmem:[%s1 + $0xa70] sm:$0xf]
    %v741 = vld [vmem:[%s1 + $0xa74] sm:$0xf]
    %v742 = vld [vmem:[%s1 + $0xa78] sm:$0xf]
    %v743 = vld [vmem:[%s1 + $0xa7c] sm:$0xf]
    %v744 = vld [vmem:[%s1 + $0xa80] sm:$0xf]
    %v745 = vld [vmem:[%s1 + $0xa84] sm:$0xf]
    %v746 = vld [vmem:[%s1 + $0xa88] sm:$0xf]
    %v747 = vld [vmem:[%s1 + $0xa8c] sm:$0xf]
    %v748 = vld [vmem:[%s1 + $0xa90] sm:$0xf]
    %v749 = vld [vmem:[%s1 + $0xa94] sm:$0xf]
    %v750 = vld [vmem:[%s1 + $0xa98] sm:$0xf]
    %v751 = vld [vmem:[%s1 + $0xa9c] sm:$0xf]
    %v752 = vld [vmem:[%s1 + $0xaa0] sm:$0xf]
    %v753 = vld [vmem:[%s1 + $0xaa4] sm:$0xf]
    %v754 = vld [vmem:[%s1 + $0xaa8] sm:$0xf]
    %v755 = vld [vmem:[%s1 + $0xaac] sm:$0xf]
    %v756 = vld [vmem:[%s1 + $0xab0] sm:$0xf]
    %v757 = vld [vmem:[%s1 + $0xab4] sm:$0xf]
    %v758 = vld [vmem:[%s1 + $0xab8] sm:$0xf]
    %v759 = vld [vmem:[%s1 + $0xabc] sm:$0xf]
    %v760 = vld [vmem:[%s1 + $0xac0] sm:$0xf]
    %v761 = vld [vmem:[%s1 + $0xac4] sm:$0xf]
    %v762 = vld [vmem:[%s1 + $0xac8] sm:$0xf]
    %v763 = vld [vmem:[%s1 + $0xacc] sm:$0xf]
    %v764 = vld [vmem:[%s1 + $0xad0] sm:$0xf]
    %v765 = vld [vmem:[%s1 + $0xad4] sm:$0xf]
    %v766 = vld [vmem:[%s1 + $0xad8] sm:$0xf]
    %v767 = vld [vmem:[%s1 + $0xadc] sm:$0xf]
    %v768 = vld [vmem:[%s1 + $0xae0] sm:$0xf]
    %v769 = vld [vmem:[%s1 + $0xae4] sm:$0xf]
    %v770 = vld [vmem:[%s1 + $0xae8] sm:$0xf]
    %v771 = vld [vmem:[%s1 + $0xaec] sm:$0xf]
    %v772 = vld [vmem:[%s1 + $0xaf0] sm:$0xf]
    %v773 = vld [vmem:[%s1 + $0xaf4] sm:$0xf]
    %v774 = vld [vmem:[%s1 + $0xaf8] sm:$0xf]
    %v775 = vld [vmem:[%s1 + $0xafc] sm:$0xf]
    %v776 = vld [vmem:[%s1 + $0xb00] sm:$0xf]
    %v777 = vld [vmem:[%s1 + $0xb04] sm:$0xf]
    %v778 = vld [vmem:[%s1 + $0xb08] sm:$0xf]
    %v779 = vld [vmem:[%s1 + $0xb0c] sm:$0xf]
    %v780 = vld [vmem:[%s1 + $0xb10] sm:$0xf]
    %v781 = vld [vmem:[%s1 + $0xb14] sm:$0xf]
    %v782 = vld [vmem:[%s1 + $0xb18] sm:$0xf]
    %v783 = vld [vmem:[%s1 + $0xb1c] sm:$0xf]
    %v784 = vld [vmem:[%s1 + $0xb20] sm:$0xf]
    %v785 = vld [vmem:[%s1 + $0xb24] sm:$0xf]
    %v786 = vld [vmem:[%s1 + $0xb28] sm:$0xf]
    %v787 = vld [vmem:[%s1 + $0xb2c] sm:$0xf]
    %v788 = vld [vmem:[%s1 + $0xb30] sm:$0xf]
    %v789 = vld [vmem:[%s1 + $0xb34] sm:$0xf]
    %v790 = vld [vmem:[%s1 + $0xb38] sm:$0xf]
    %v791 = vld [vmem:[%s1 + $0xb3c] sm:$0xf]
    %v792 = vld [vmem:[%s1 + $0xb40] sm:$0xf]
    %v793 = vld [vmem:[%s1 + $0xb44] sm:$0xf]
    %v794 = vld [vmem:[%s1 + $0xb48] sm:$0xf]
    %v795 = vld [vmem:[%s1 + $0xb4c] sm:$0xf]
    %v796 = vld [vmem:[%s1 + $0xb50] sm:$0xf]
    %v797 = vld [vmem:[%s1 + $0xb54] sm:$0xf]
    %v798 = vld [vmem:[%s1 + $0xb58] sm:$0xf]
    %v799 = vld [vmem:[%s1 + $0xb5c] sm:$0xf]
    %v800 = vld [vmem:[%s1 + $0xb60] sm:$0xf]
    %v801 = vld [vmem:[%s1 + $0xb64] sm:$0xf]
    %v802 = vld [vmem:[%s1 + $0xb68] sm:$0xf]
    %v803 = vld [vmem:[%s1 + $0xb6c] sm:$0xf]
    %v804 = vld [vmem:[%s1 + $0xb70] sm:$0xf]
    %v805 = vld [vmem:[%s1 + $0xb74] sm:$0xf]
    %v806 = vld [vmem:[%s1 + $0xb78] sm:$0xf]
    %v807 = vld [vmem:[%s1 + $0xb7c] sm:$0xf]
    %v808 = vld [vmem:[%s1 + $0xb80] sm:$0xf]
    %v809 = vld [vmem:[%s1 + $0xb84] sm:$0xf]
    %v810 = vld [vmem:[%s1 + $0xb88] sm:$0xf]
    %v811 = vld [vmem:[%s1 + $0xb8c] sm:$0xf]
    %v812 = vld [vmem:[%s1 + $0xb90] sm:$0xf]
    %v813 = vld [vmem:[%s1 + $0xb94] sm:$0xf]
    %v814 = vld [vmem:[%s1 + $0xb98] sm:$0xf]
    %v815 = vld [vmem:[%s1 + $0xb9c] sm:$0xf]
    %v816 = vld [vmem:[%s1 + $0xba0] sm:$0xf]
    %v817 = vld [vmem:[%s1 + $0xba4] sm:$0xf]
    %v818 = vld [vmem:[%s1 + $0xba8] sm:$0xf]
    %v819 = vld [vmem:[%s1 + $0xbac] sm:$0xf]
    %v820 = vld [vmem:[%s1 + $0xbb0] sm:$0xf]
    %v821 = vld [vmem:[%s1 + $0xbb4] sm:$0xf]
    %v822 = vld [vmem:[%s1 + $0xbb8] sm:$0xf]
    %v823 = vld [vmem:[%s1 + $0xbbc] sm:$0xf]
    %v824 = vld [vmem:[%s1 + $0xbc0] sm:$0xf]
    %v825 = vld [vmem:[%s1 + $0xbc4] sm:$0xf]
    %v826 = vld [vmem:[%s1 + $0xbc8] sm:$0xf]
    %v827 = vld [vmem:[%s1 + $0xbcc] sm:$0xf]
    %v828 = vld [vmem:[%s1 + $0xbd0] sm:$0xf]
    %v829 = vld [vmem:[%s1 + $0xbd4] sm:$0xf]
    %v830 = vld [vmem:[%s1 + $0xbd8] sm:$0xf]
    %v831 = vld [vmem:[%s1 + $0xbdc] sm:$0xf]
    %v832 = vld [vmem:[%s1 + $0xbe0] sm:$0xf]
    %v833 = vld [vmem:[%s1 + $0xbe4] sm:$0xf]
    %v834 = vld [vmem:[%s1 + $0xbe8] sm:$0xf]
    %v835 = vld [vmem:[%s1 + $0xbec] sm:$0xf]
    %v836 = vld [vmem:[%s1 + $0xbf0] sm:$0xf]
    %v837 = vld [vmem:[%s1 + $0xbf4] sm:$0xf]
    %v838 = vld [vmem:[%s1 + $0xbf8] sm:$0xf]
    %v839 = vld [vmem:[%s1 + $0xbfc] sm:$0xf]
    %v840 = vld [vmem:[%s1 + $0xc00] sm:$0xf]
    %v841 = vld [vmem:[%s1 + $0xc04] sm:$0xf]
    %v842 = vld [vmem:[%s1 + $0xc08] sm:$0xf]
    %v843 = vld [vmem:[%s1 + $0xc0c] sm:$0xf]
    %v844 = vld [vmem:[%s1 + $0xc10] sm:$0xf]
    %v845 = vld [vmem:[%s1 + $0xc14] sm:$0xf]
    %v846 = vld [vmem:[%s1 + $0xc18] sm:$0xf]
    %v847 = vld [vmem:[%s1 + $0xc1c] sm:$0xf]
    %v848 = vld [vmem:[%s1 + $0xc20] sm:$0xf]
    %v849 = vld [vmem:[%s1 + $0xc24] sm:$0xf]
    %v850 = vld [vmem:[%s1 + $0xc28] sm:$0xf]
    %v851 = vld [vmem:[%s1 + $0xc2c] sm:$0xf]
    %v852 = vld [vmem:[%s1 + $0xc30] sm:$0xf]
    %v853 = vld [vmem:[%s1 + $0xc34] sm:$0xf]
    %v854 = vld [vmem:[%s1 + $0xc38] sm:$0xf]
    %v855 = vld [vmem:[%s1 + $0xc3c] sm:$0xf]
    %v856 = vld [vmem:[%s1 + $0xc40] sm:$0xf]
    %v857 = vld [vmem:[%s1 + $0xc44] sm:$0xf]
    %v858 = vld [vmem:[%s1 + $0xc48] sm:$0xf]
    %v859 = vld [vmem:[%s1 + $0xc4c] sm:$0xf]
    %v860 = vld [vmem:[%s1 + $0xc50] sm:$0xf]
    %v861 = vld [vmem:[%s1 + $0xc54] sm:$0xf]
    %v862 = vld [vmem:[%s1 + $0xc58] sm:$0xf]
    %v863 = vld [vmem:[%s1 + $0xc5c] sm:$0xf]
    %v864 = vld [vmem:[%s1 + $0xc60] sm:$0xf]
    %v865 = vld [vmem:[%s1 + $0xc64] sm:$0xf]
    %v866 = vld [vmem:[%s1 + $0xc68] sm:$0xf]
    %v867 = vld [vmem:[%s1 + $0xc6c] sm:$0xf]
    %v868 = vld [vmem:[%s1 + $0xc70] sm:$0xf]
    %v869 = vld [vmem:[%s1 + $0xc74] sm:$0xf]
    %v870 = vld [vmem:[%s1 + $0xc78] sm:$0xf]
    %v871 = vld [vmem:[%s1 + $0xc7c] sm:$0xf]
    %v872 = vld [vmem:[%s2] sm:$0x1]
    %v874 = vlaneseq
    %v875 = vshrl.u32 %v874, 7
    %v876 = vsub.s32 0, %v875
    %v877 = vrot.slane %v872, %v876
    %v935 = vcombine.low %v16, %v23
    %v936 = vcombine.high %v16, %v23
    %v937 = vcombine.low %v30, %v37
    %v938 = vcombine.high %v30, %v37
    %v939 = vcombine.low %v44, %v51
    %v940 = vcombine.high %v44, %v51
    %v941 = vcombine.low %v58, %v65
    %v942 = vcombine.high %v58, %v65
    %v944 = vunpack.c.l.s4 1966171168
    %v945 = vunpack.c.0.s8 %v944
    %v946 = vlaneseq
    %v947 = vshrl.u32 %v946, 7
    %v948 = vsub.s32 %v945, %v947
    %v949 = vrot.slane %v935, %v948
    %v951 = vunpack.c.l.s4 1966171168
    %v952 = vunpack.c.0.s8 %v951
    %v953 = vlaneseq
    %v954 = vshrl.u32 %v953, 7
    %v955 = vsub.s32 %v952, %v954
    %v956 = vrot.slane %v936, %v955
    %v958 = vunpack.c.l.s4 1966171168
    %v959 = vunpack.c.0.s8 %v958
    %v960 = vlaneseq
    %v961 = vshrl.u32 %v960, 7
    %v962 = vsub.s32 %v959, %v961
    %v963 = vrot.slane %v937, %v962
    %v965 = vunpack.c.l.s4 1966171168
    %v966 = vunpack.c.0.s8 %v965
    %v967 = vlaneseq
    %v968 = vshrl.u32 %v967, 7
    %v969 = vsub.s32 %v966, %v968
    %v970 = vrot.slane %v938, %v969
    %v972 = vunpack.c.l.s4 1966171168
    %v973 = vunpack.c.0.s8 %v972
    %v974 = vlaneseq
    %v975 = vshrl.u32 %v974, 7
    %v976 = vsub.s32 %v973, %v975
    %v977 = vrot.slane %v939, %v976
    %v979 = vunpack.c.l.s4 1966171168
    %v980 = vunpack.c.0.s8 %v979
    %v981 = vlaneseq
    %v982 = vshrl.u32 %v981, 7
    %v983 = vsub.s32 %v980, %v982
    %v984 = vrot.slane %v940, %v983
    %v986 = vunpack.c.l.s4 1966171168
    %v987 = vunpack.c.0.s8 %v986
    %v988 = vlaneseq
    %v989 = vshrl.u32 %v988, 7
    %v990 = vsub.s32 %v987, %v989
    %v991 = vrot.slane %v941, %v990
    %v993 = vunpack.c.l.s4 1966171168
    %v994 = vunpack.c.0.s8 %v993
    %v995 = vlaneseq
    %v996 = vshrl.u32 %v995, 7
    %v997 = vsub.s32 %v994, %v996
    %v998 = vrot.slane %v942, %v997
    %v999 = vcombine.low %v949, %v963
    %v1000 = vcombine.high %v949, %v963
    %v1001 = vcombine.low %v956, %v970
    %v1002 = vcombine.high %v956, %v970
    %v1003 = vcombine.low %v977, %v991
    %v1004 = vcombine.high %v977, %v991
    %v1005 = vcombine.low %v984, %v998
    %v1006 = vcombine.high %v984, %v998
    %v1008 = vunpack.c.l.s4 1966171168
    %v1009 = vunpack.c.0.s8 %v1008
    %v1010 = vlaneseq
    %v1011 = vshrl.u32 %v1010, 7
    %v1012 = vsub.s32 %v1009, %v1011
    %v1013 = vrot.slane %v999, %v1012
    %v1015 = vunpack.c.l.s4 1966171168
    %v1016 = vunpack.c.0.s8 %v1015
    %v1017 = vlaneseq
    %v1018 = vshrl.u32 %v1017, 7
    %v1019 = vsub.s32 %v1016, %v1018
    %v1020 = vrot.slane %v1001, %v1019
    %v1022 = vunpack.c.l.s4 1966171168
    %v1023 = vunpack.c.0.s8 %v1022
    %v1024 = vlaneseq
    %v1025 = vshrl.u32 %v1024, 7
    %v1026 = vsub.s32 %v1023, %v1025
    %v1027 = vrot.slane %v1000, %v1026
    %v1029 = vunpack.c.l.s4 1966171168
    %v1030 = vunpack.c.0.s8 %v1029
    %v1031 = vlaneseq
    %v1032 = vshrl.u32 %v1031, 7
    %v1033 = vsub.s32 %v1030, %v1032
    %v1034 = vrot.slane %v1002, %v1033
    %v1036 = vunpack.c.l.s4 1966171168
    %v1037 = vunpack.c.0.s8 %v1036
    %v1038 = vlaneseq
    %v1039 = vshrl.u32 %v1038, 7
    %v1040 = vsub.s32 %v1037, %v1039
    %v1041 = vrot.slane %v1003, %v1040
    %v1043 = vunpack.c.l.s4 1966171168
    %v1044 = vunpack.c.0.s8 %v1043
    %v1045 = vlaneseq
    %v1046 = vshrl.u32 %v1045, 7
    %v1047 = vsub.s32 %v1044, %v1046
    %v1048 = vrot.slane %v1005, %v1047
    %v1050 = vunpack.c.l.s4 1966171168
    %v1051 = vunpack.c.0.s8 %v1050
    %v1052 = vlaneseq
    %v1053 = vshrl.u32 %v1052, 7
    %v1054 = vsub.s32 %v1051, %v1053
    %v1055 = vrot.slane %v1004, %v1054
    %v1057 = vunpack.c.l.s4 1966171168
    %v1058 = vunpack.c.0.s8 %v1057
    %v1059 = vlaneseq
    %v1060 = vshrl.u32 %v1059, 7
    %v1061 = vsub.s32 %v1058, %v1060
    %v1062 = vrot.slane %v1006, %v1061
    %v1063 = vcombine.low %v1013, %v1041
    %v1064 = vcombine.high %v1013, %v1041
    %v1065 = vcombine.low %v1020, %v1048
    %v1066 = vcombine.high %v1020, %v1048
    %v1067 = vcombine.low %v1027, %v1055
    %v1068 = vcombine.high %v1027, %v1055
    %v1069 = vcombine.low %v1034, %v1062
    %v1070 = vcombine.high %v1034, %v1062
    %v1071 = vcombine.low %v17, %v24
    %v1072 = vcombine.high %v17, %v24
    %v1073 = vcombine.low %v31, %v38
    %v1074 = vcombine.high %v31, %v38
    %v1075 = vcombine.low %v45, %v52
    %v1076 = vcombine.high %v45, %v52
    %v1077 = vcombine.low %v59, %v66
    %v1078 = vcombine.high %v59, %v66
    %v1080 = vunpack.c.l.s4 1966171168
    %v1081 = vunpack.c.0.s8 %v1080
    %v1082 = vlaneseq
    %v1083 = vshrl.u32 %v1082, 7
    %v1084 = vsub.s32 %v1081, %v1083
    %v1085 = vrot.slane %v1071, %v1084
    %v1087 = vunpack.c.l.s4 1966171168
    %v1088 = vunpack.c.0.s8 %v1087
    %v1089 = vlaneseq
    %v1090 = vshrl.u32 %v1089, 7
    %v1091 = vsub.s32 %v1088, %v1090
    %v1092 = vrot.slane %v1072, %v1091
    %v1094 = vunpack.c.l.s4 1966171168
    %v1095 = vunpack.c.0.s8 %v1094
    %v1096 = vlaneseq
    %v1097 = vshrl.u32 %v1096, 7
    %v1098 = vsub.s32 %v1095, %v1097
    %v1099 = vrot.slane %v1073, %v1098
    %v1101 = vunpack.c.l.s4 1966171168
    %v1102 = vunpack.c.0.s8 %v1101
    %v1103 = vlaneseq
    %v1104 = vshrl.u32 %v1103, 7
    %v1105 = vsub.s32 %v1102, %v1104
    %v1106 = vrot.slane %v1074, %v1105
    %v1108 = vunpack.c.l.s4 1966171168
    %v1109 = vunpack.c.0.s8 %v1108
    %v1110 = vlaneseq
    %v1111 = vshrl.u32 %v1110, 7
    %v1112 = vsub.s32 %v1109, %v1111
    %v1113 = vrot.slane %v1075, %v1112
    %v1115 = vunpack.c.l.s4 1966171168
    %v1116 = vunpack.c.0.s8 %v1115
    %v1117 = vlaneseq
    %v1118 = vshrl.u32 %v1117, 7
    %v1119 = vsub.s32 %v1116, %v1118
    %v1120 = vrot.slane %v1076, %v1119
    %v1122 = vunpack.c.l.s4 1966171168
    %v1123 = vunpack.c.0.s8 %v1122
    %v1124 = vlaneseq
    %v1125 = vshrl.u32 %v1124, 7
    %v1126 = vsub.s32 %v1123, %v1125
    %v1127 = vrot.slane %v1077, %v1126
    %v1129 = vunpack.c.l.s4 1966171168
    %v1130 = vunpack.c.0.s8 %v1129
    %v1131 = vlaneseq
    %v1132 = vshrl.u32 %v1131, 7
    %v1133 = vsub.s32 %v1130, %v1132
    %v1134 = vrot.slane %v1078, %v1133
    %v1135 = vcombine.low %v1085, %v1099
    %v1136 = vcombine.high %v1085, %v1099
    %v1137 = vcombine.low %v1092, %v1106
    %v1138 = vcombine.high %v1092, %v1106
    %v1139 = vcombine.low %v1113, %v1127
    %v1140 = vcombine.high %v1113, %v1127
    %v1141 = vcombine.low %v1120, %v1134
    %v1142 = vcombine.high %v1120, %v1134
    %v1144 = vunpack.c.l.s4 1966171168
    %v1145 = vunpack.c.0.s8 %v1144
    %v1146 = vlaneseq
    %v1147 = vshrl.u32 %v1146, 7
    %v1148 = vsub.s32 %v1145, %v1147
    %v1149 = vrot.slane %v1135, %v1148
    %v1151 = vunpack.c.l.s4 1966171168
    %v1152 = vunpack.c.0.s8 %v1151
    %v1153 = vlaneseq
    %v1154 = vshrl.u32 %v1153, 7
    %v1155 = vsub.s32 %v1152, %v1154
    %v1156 = vrot.slane %v1137, %v1155
    %v1158 = vunpack.c.l.s4 1966171168
    %v1159 = vunpack.c.0.s8 %v1158
    %v1160 = vlaneseq
    %v1161 = vshrl.u32 %v1160, 7
    %v1162 = vsub.s32 %v1159, %v1161
    %v1163 = vrot.slane %v1136, %v1162
    %v1165 = vunpack.c.l.s4 1966171168
    %v1166 = vunpack.c.0.s8 %v1165
    %v1167 = vlaneseq
    %v1168 = vshrl.u32 %v1167, 7
    %v1169 = vsub.s32 %v1166, %v1168
    %v1170 = vrot.slane %v1138, %v1169
    %v1172 = vunpack.c.l.s4 1966171168
    %v1173 = vunpack.c.0.s8 %v1172
    %v1174 = vlaneseq
    %v1175 = vshrl.u32 %v1174, 7
    %v1176 = vsub.s32 %v1173, %v1175
    %v1177 = vrot.slane %v1139, %v1176
    %v1179 = vunpack.c.l.s4 1966171168
    %v1180 = vunpack.c.0.s8 %v1179
    %v1181 = vlaneseq
    %v1182 = vshrl.u32 %v1181, 7
    %v1183 = vsub.s32 %v1180, %v1182
    %v1184 = vrot.slane %v1141, %v1183
    %v1186 = vunpack.c.l.s4 1966171168
    %v1187 = vunpack.c.0.s8 %v1186
    %v1188 = vlaneseq
    %v1189 = vshrl.u32 %v1188, 7
    %v1190 = vsub.s32 %v1187, %v1189
    %v1191 = vrot.slane %v1140, %v1190
    %v1193 = vunpack.c.l.s4 1966171168
    %v1194 = vunpack.c.0.s8 %v1193
    %v1195 = vlaneseq
    %v1196 = vshrl.u32 %v1195, 7
    %v1197 = vsub.s32 %v1194, %v1196
    %v1198 = vrot.slane %v1142, %v1197
    %v1199 = vcombine.low %v1149, %v1177
    %v1200 = vcombine.high %v1149, %v1177
    %v1201 = vcombine.low %v1156, %v1184
    %v1202 = vcombine.high %v1156, %v1184
    %v1203 = vcombine.low %v1163, %v1191
    %v1204 = vcombine.high %v1163, %v1191
    %v1205 = vcombine.low %v1170, %v1198
    %v1206 = vcombine.high %v1170, %v1198
    %v1207 = vcombine.low %v18, %v25
    %v1208 = vcombine.high %v18, %v25
    %v1209 = vcombine.low %v32, %v39
    %v1210 = vcombine.high %v32, %v39
    %v1211 = vcombine.low %v46, %v53
    %v1212 = vcombine.high %v46, %v53
    %v1213 = vcombine.low %v60, %v67
    %v1214 = vcombine.high %v60, %v67
    %v1216 = vunpack.c.l.s4 1966171168
    %v1217 = vunpack.c.0.s8 %v1216
    %v1218 = vlaneseq
    %v1219 = vshrl.u32 %v1218, 7
    %v1220 = vsub.s32 %v1217, %v1219
    %v1221 = vrot.slane %v1207, %v1220
    %v1223 = vunpack.c.l.s4 1966171168
    %v1224 = vunpack.c.0.s8 %v1223
    %v1225 = vlaneseq
    %v1226 = vshrl.u32 %v1225, 7
    %v1227 = vsub.s32 %v1224, %v1226
    %v1228 = vrot.slane %v1208, %v1227
    %v1230 = vunpack.c.l.s4 1966171168
    %v1231 = vunpack.c.0.s8 %v1230
    %v1232 = vlaneseq
    %v1233 = vshrl.u32 %v1232, 7
    %v1234 = vsub.s32 %v1231, %v1233
    %v1235 = vrot.slane %v1209, %v1234
    %v1237 = vunpack.c.l.s4 1966171168
    %v1238 = vunpack.c.0.s8 %v1237
    %v1239 = vlaneseq
    %v1240 = vshrl.u32 %v1239, 7
    %v1241 = vsub.s32 %v1238, %v1240
    %v1242 = vrot.slane %v1210, %v1241
    %v1244 = vunpack.c.l.s4 1966171168
    %v1245 = vunpack.c.0.s8 %v1244
    %v1246 = vlaneseq
    %v1247 = vshrl.u32 %v1246, 7
    %v1248 = vsub.s32 %v1245, %v1247
    %v1249 = vrot.slane %v1211, %v1248
    %v1251 = vunpack.c.l.s4 1966171168
    %v1252 = vunpack.c.0.s8 %v1251
    %v1253 = vlaneseq
    %v1254 = vshrl.u32 %v1253, 7
    %v1255 = vsub.s32 %v1252, %v1254
    %v1256 = vrot.slane %v1212, %v1255
    %v1258 = vunpack.c.l.s4 1966171168
    %v1259 = vunpack.c.0.s8 %v1258
    %v1260 = vlaneseq
    %v1261 = vshrl.u32 %v1260, 7
    %v1262 = vsub.s32 %v1259, %v1261
    %v1263 = vrot.slane %v1213, %v1262
    %v1265 = vunpack.c.l.s4 1966171168
    %v1266 = vunpack.c.0.s8 %v1265
    %v1267 = vlaneseq
    %v1268 = vshrl.u32 %v1267, 7
    %v1269 = vsub.s32 %v1266, %v1268
    %v1270 = vrot.slane %v1214, %v1269
    %v1271 = vcombine.low %v1221, %v1235
    %v1272 = vcombine.high %v1221, %v1235
    %v1273 = vcombine.low %v1228, %v1242
    %v1274 = vcombine.high %v1228, %v1242
    %v1275 = vcombine.low %v1249, %v1263
    %v1276 = vcombine.high %v1249, %v1263
    %v1277 = vcombine.low %v1256, %v1270
    %v1278 = vcombine.high %v1256, %v1270
    %v1280 = vunpack.c.l.s4 1966171168
    %v1281 = vunpack.c.0.s8 %v1280
    %v1282 = vlaneseq
    %v1283 = vshrl.u32 %v1282, 7
    %v1284 = vsub.s32 %v1281, %v1283
    %v1285 = vrot.slane %v1271, %v1284
    %v1287 = vunpack.c.l.s4 1966171168
    %v1288 = vunpack.c.0.s8 %v1287
    %v1289 = vlaneseq
    %v1290 = vshrl.u32 %v1289, 7
    %v1291 = vsub.s32 %v1288, %v1290
    %v1292 = vrot.slane %v1273, %v1291
    %v1294 = vunpack.c.l.s4 1966171168
    %v1295 = vunpack.c.0.s8 %v1294
    %v1296 = vlaneseq
    %v1297 = vshrl.u32 %v1296, 7
    %v1298 = vsub.s32 %v1295, %v1297
    %v1299 = vrot.slane %v1272, %v1298
    %v1301 = vunpack.c.l.s4 1966171168
    %v1302 = vunpack.c.0.s8 %v1301
    %v1303 = vlaneseq
    %v1304 = vshrl.u32 %v1303, 7
    %v1305 = vsub.s32 %v1302, %v1304
    %v1306 = vrot.slane %v1274, %v1305
    %v1308 = vunpack.c.l.s4 1966171168
    %v1309 = vunpack.c.0.s8 %v1308
    %v1310 = vlaneseq
    %v1311 = vshrl.u32 %v1310, 7
    %v1312 = vsub.s32 %v1309, %v1311
    %v1313 = vrot.slane %v1275, %v1312
    %v1315 = vunpack.c.l.s4 1966171168
    %v1316 = vunpack.c.0.s8 %v1315
    %v1317 = vlaneseq
    %v1318 = vshrl.u32 %v1317, 7
    %v1319 = vsub.s32 %v1316, %v1318
    %v1320 = vrot.slane %v1277, %v1319
    %v1322 = vunpack.c.l.s4 1966171168
    %v1323 = vunpack.c.0.s8 %v1322
    %v1324 = vlaneseq
    %v1325 = vshrl.u32 %v1324, 7
    %v1326 = vsub.s32 %v1323, %v1325
    %v1327 = vrot.slane %v1276, %v1326
    %v1329 = vunpack.c.l.s4 1966171168
    %v1330 = vunpack.c.0.s8 %v1329
    %v1331 = vlaneseq
    %v1332 = vshrl.u32 %v1331, 7
    %v1333 = vsub.s32 %v1330, %v1332
    %v1334 = vrot.slane %v1278, %v1333
    %v1335 = vcombine.low %v1285, %v1313
    %v1336 = vcombine.high %v1285, %v1313
    %v1337 = vcombine.low %v1292, %v1320
    %v1338 = vcombine.high %v1292, %v1320
    %v1339 = vcombine.low %v1299, %v1327
    %v1340 = vcombine.high %v1299, %v1327
    %v1341 = vcombine.low %v1306, %v1334
    %v1342 = vcombine.high %v1306, %v1334
    %v1343 = vcombine.low %v19, %v26
    %v1344 = vcombine.high %v19, %v26
    %v1345 = vcombine.low %v33, %v40
    %v1346 = vcombine.high %v33, %v40
    %v1347 = vcombine.low %v47, %v54
    %v1348 = vcombine.high %v47, %v54
    %v1349 = vcombine.low %v61, %v68
    %v1350 = vcombine.high %v61, %v68
    %v1352 = vunpack.c.l.s4 1966171168
    %v1353 = vunpack.c.0.s8 %v1352
    %v1354 = vlaneseq
    %v1355 = vshrl.u32 %v1354, 7
    %v1356 = vsub.s32 %v1353, %v1355
    %v1357 = vrot.slane %v1343, %v1356
    %v1359 = vunpack.c.l.s4 1966171168
    %v1360 = vunpack.c.0.s8 %v1359
    %v1361 = vlaneseq
    %v1362 = vshrl.u32 %v1361, 7
    %v1363 = vsub.s32 %v1360, %v1362
    %v1364 = vrot.slane %v1344, %v1363
    %v1366 = vunpack.c.l.s4 1966171168
    %v1367 = vunpack.c.0.s8 %v1366
    %v1368 = vlaneseq
    %v1369 = vshrl.u32 %v1368, 7
    %v1370 = vsub.s32 %v1367, %v1369
    %v1371 = vrot.slane %v1345, %v1370
    %v1373 = vunpack.c.l.s4 1966171168
    %v1374 = vunpack.c.0.s8 %v1373
    %v1375 = vlaneseq
    %v1376 = vshrl.u32 %v1375, 7
    %v1377 = vsub.s32 %v1374, %v1376
    %v1378 = vrot.slane %v1346, %v1377
    %v1380 = vunpack.c.l.s4 1966171168
    %v1381 = vunpack.c.0.s8 %v1380
    %v1382 = vlaneseq
    %v1383 = vshrl.u32 %v1382, 7
    %v1384 = vsub.s32 %v1381, %v1383
    %v1385 = vrot.slane %v1347, %v1384
    %v1387 = vunpack.c.l.s4 1966171168
    %v1388 = vunpack.c.0.s8 %v1387
    %v1389 = vlaneseq
    %v1390 = vshrl.u32 %v1389, 7
    %v1391 = vsub.s32 %v1388, %v1390
    %v1392 = vrot.slane %v1348, %v1391
    %v1394 = vunpack.c.l.s4 1966171168
    %v1395 = vunpack.c.0.s8 %v1394
    %v1396 = vlaneseq
    %v1397 = vshrl.u32 %v1396, 7
    %v1398 = vsub.s32 %v1395, %v1397
    %v1399 = vrot.slane %v1349, %v1398
    %v1401 = vunpack.c.l.s4 1966171168
    %v1402 = vunpack.c.0.s8 %v1401
    %v1403 = vlaneseq
    %v1404 = vshrl.u32 %v1403, 7
    %v1405 = vsub.s32 %v1402, %v1404
    %v1406 = vrot.slane %v1350, %v1405
    %v1407 = vcombine.low %v1357, %v1371
    %v1408 = vcombine.high %v1357, %v1371
    %v1409 = vcombine.low %v1364, %v1378
    %v1410 = vcombine.high %v1364, %v1378
    %v1411 = vcombine.low %v1385, %v1399
    %v1412 = vcombine.high %v1385, %v1399
    %v1413 = vcombine.low %v1392, %v1406
    %v1414 = vcombine.high %v1392, %v1406
    %v1416 = vunpack.c.l.s4 1966171168
    %v1417 = vunpack.c.0.s8 %v1416
    %v1418 = vlaneseq
    %v1419 = vshrl.u32 %v1418, 7
    %v1420 = vsub.s32 %v1417, %v1419
    %v1421 = vrot.slane %v1407, %v1420
    %v1423 = vunpack.c.l.s4 1966171168
    %v1424 = vunpack.c.0.s8 %v1423
    %v1425 = vlaneseq
    %v1426 = vshrl.u32 %v1425, 7
    %v1427 = vsub.s32 %v1424, %v1426
    %v1428 = vrot.slane %v1409, %v1427
    %v1430 = vunpack.c.l.s4 1966171168
    %v1431 = vunpack.c.0.s8 %v1430
    %v1432 = vlaneseq
    %v1433 = vshrl.u32 %v1432, 7
    %v1434 = vsub.s32 %v1431, %v1433
    %v1435 = vrot.slane %v1408, %v1434
    %v1437 = vunpack.c.l.s4 1966171168
    %v1438 = vunpack.c.0.s8 %v1437
    %v1439 = vlaneseq
    %v1440 = vshrl.u32 %v1439, 7
    %v1441 = vsub.s32 %v1438, %v1440
    %v1442 = vrot.slane %v1410, %v1441
    %v1444 = vunpack.c.l.s4 1966171168
    %v1445 = vunpack.c.0.s8 %v1444
    %v1446 = vlaneseq
    %v1447 = vshrl.u32 %v1446, 7
    %v1448 = vsub.s32 %v1445, %v1447
    %v1449 = vrot.slane %v1411, %v1448
    %v1451 = vunpack.c.l.s4 1966171168
    %v1452 = vunpack.c.0.s8 %v1451
    %v1453 = vlaneseq
    %v1454 = vshrl.u32 %v1453, 7
    %v1455 = vsub.s32 %v1452, %v1454
    %v1456 = vrot.slane %v1413, %v1455
    %v1458 = vunpack.c.l.s4 1966171168
    %v1459 = vunpack.c.0.s8 %v1458
    %v1460 = vlaneseq
    %v1461 = vshrl.u32 %v1460, 7
    %v1462 = vsub.s32 %v1459, %v1461
    %v1463 = vrot.slane %v1412, %v1462
    %v1465 = vunpack.c.l.s4 1966171168
    %v1466 = vunpack.c.0.s8 %v1465
    %v1467 = vlaneseq
    %v1468 = vshrl.u32 %v1467, 7
    %v1469 = vsub.s32 %v1466, %v1468
    %v1470 = vrot.slane %v1414, %v1469
    %v1471 = vcombine.low %v1421, %v1449
    %v1472 = vcombine.high %v1421, %v1449
    %v1473 = vcombine.low %v1428, %v1456
    %v1474 = vcombine.high %v1428, %v1456
    %v1475 = vcombine.low %v1435, %v1463
    %v1476 = vcombine.high %v1435, %v1463
    %v1477 = vcombine.low %v1442, %v1470
    %v1478 = vcombine.high %v1442, %v1470
    %v1479 = vcombine.low %v20, %v27
    %v1480 = vcombine.high %v20, %v27
    %v1481 = vcombine.low %v34, %v41
    %v1482 = vcombine.high %v34, %v41
    %v1483 = vcombine.low %v48, %v55
    %v1484 = vcombine.high %v48, %v55
    %v1485 = vcombine.low %v62, %v69
    %v1486 = vcombine.high %v62, %v69
    %v1488 = vunpack.c.l.s4 1966171168
    %v1489 = vunpack.c.0.s8 %v1488
    %v1490 = vlaneseq
    %v1491 = vshrl.u32 %v1490, 7
    %v1492 = vsub.s32 %v1489, %v1491
    %v1493 = vrot.slane %v1479, %v1492
    %v1495 = vunpack.c.l.s4 1966171168
    %v1496 = vunpack.c.0.s8 %v1495
    %v1497 = vlaneseq
    %v1498 = vshrl.u32 %v1497, 7
    %v1499 = vsub.s32 %v1496, %v1498
    %v1500 = vrot.slane %v1480, %v1499
    %v1502 = vunpack.c.l.s4 1966171168
    %v1503 = vunpack.c.0.s8 %v1502
    %v1504 = vlaneseq
    %v1505 = vshrl.u32 %v1504, 7
    %v1506 = vsub.s32 %v1503, %v1505
    %v1507 = vrot.slane %v1481, %v1506
    %v1509 = vunpack.c.l.s4 1966171168
    %v1510 = vunpack.c.0.s8 %v1509
    %v1511 = vlaneseq
    %v1512 = vshrl.u32 %v1511, 7
    %v1513 = vsub.s32 %v1510, %v1512
    %v1514 = vrot.slane %v1482, %v1513
    %v1516 = vunpack.c.l.s4 1966171168
    %v1517 = vunpack.c.0.s8 %v1516
    %v1518 = vlaneseq
    %v1519 = vshrl.u32 %v1518, 7
    %v1520 = vsub.s32 %v1517, %v1519
    %v1521 = vrot.slane %v1483, %v1520
    %v1523 = vunpack.c.l.s4 1966171168
    %v1524 = vunpack.c.0.s8 %v1523
    %v1525 = vlaneseq
    %v1526 = vshrl.u32 %v1525, 7
    %v1527 = vsub.s32 %v1524, %v1526
    %v1528 = vrot.slane %v1484, %v1527
    %v1530 = vunpack.c.l.s4 1966171168
    %v1531 = vunpack.c.0.s8 %v1530
    %v1532 = vlaneseq
    %v1533 = vshrl.u32 %v1532, 7
    %v1534 = vsub.s32 %v1531, %v1533
    %v1535 = vrot.slane %v1485, %v1534
    %v1537 = vunpack.c.l.s4 1966171168
    %v1538 = vunpack.c.0.s8 %v1537
    %v1539 = vlaneseq
    %v1540 = vshrl.u32 %v1539, 7
    %v1541 = vsub.s32 %v1538, %v1540
    %v1542 = vrot.slane %v1486, %v1541
    %v1543 = vcombine.low %v1493, %v1507
    %v1544 = vcombine.high %v1493, %v1507
    %v1545 = vcombine.low %v1500, %v1514
    %v1546 = vcombine.high %v1500, %v1514
    %v1547 = vcombine.low %v1521, %v1535
    %v1548 = vcombine.high %v1521, %v1535
    %v1549 = vcombine.low %v1528, %v1542
    %v1550 = vcombine.high %v1528, %v1542
    %v1552 = vunpack.c.l.s4 1966171168
    %v1553 = vunpack.c.0.s8 %v1552
    %v1554 = vlaneseq
    %v1555 = vshrl.u32 %v1554, 7
    %v1556 = vsub.s32 %v1553, %v1555
    %v1557 = vrot.slane %v1543, %v1556
    %v1559 = vunpack.c.l.s4 1966171168
    %v1560 = vunpack.c.0.s8 %v1559
    %v1561 = vlaneseq
    %v1562 = vshrl.u32 %v1561, 7
    %v1563 = vsub.s32 %v1560, %v1562
    %v1564 = vrot.slane %v1545, %v1563
    %v1566 = vunpack.c.l.s4 1966171168
    %v1567 = vunpack.c.0.s8 %v1566
    %v1568 = vlaneseq
    %v1569 = vshrl.u32 %v1568, 7
    %v1570 = vsub.s32 %v1567, %v1569
    %v1571 = vrot.slane %v1544, %v1570
    %v1573 = vunpack.c.l.s4 1966171168
    %v1574 = vunpack.c.0.s8 %v1573
    %v1575 = vlaneseq
    %v1576 = vshrl.u32 %v1575, 7
    %v1577 = vsub.s32 %v1574, %v1576
    %v1578 = vrot.slane %v1546, %v1577
    %v1580 = vunpack.c.l.s4 1966171168
    %v1581 = vunpack.c.0.s8 %v1580
    %v1582 = vlaneseq
    %v1583 = vshrl.u32 %v1582, 7
    %v1584 = vsub.s32 %v1581, %v1583
    %v1585 = vrot.slane %v1547, %v1584
    %v1587 = vunpack.c.l.s4 1966171168
    %v1588 = vunpack.c.0.s8 %v1587
    %v1589 = vlaneseq
    %v1590 = vshrl.u32 %v1589, 7
    %v1591 = vsub.s32 %v1588, %v1590
    %v1592 = vrot.slane %v1549, %v1591
    %v1594 = vunpack.c.l.s4 1966171168
    %v1595 = vunpack.c.0.s8 %v1594
    %v1596 = vlaneseq
    %v1597 = vshrl.u32 %v1596, 7
    %v1598 = vsub.s32 %v1595, %v1597
    %v1599 = vrot.slane %v1548, %v1598
    %v1601 = vunpack.c.l.s4 1966171168
    %v1602 = vunpack.c.0.s8 %v1601
    %v1603 = vlaneseq
    %v1604 = vshrl.u32 %v1603, 7
    %v1605 = vsub.s32 %v1602, %v1604
    %v1606 = vrot.slane %v1550, %v1605
    %v1607 = vcombine.low %v1557, %v1585
    %v1608 = vcombine.high %v1557, %v1585
    %v1609 = vcombine.low %v1564, %v1592
    %v1610 = vcombine.high %v1564, %v1592
    %v1611 = vcombine.low %v1571, %v1599
    %v1612 = vcombine.high %v1571, %v1599
    %v1613 = vcombine.low %v1578, %v1606
    %v1614 = vcombine.high %v1578, %v1606
    %v1615 = vcombine.low %v21, %v28
    %v1616 = vcombine.high %v21, %v28
    %v1617 = vcombine.low %v35, %v42
    %v1618 = vcombine.high %v35, %v42
    %v1619 = vcombine.low %v49, %v56
    %v1620 = vcombine.high %v49, %v56
    %v1621 = vcombine.low %v63, %v70
    %v1622 = vcombine.high %v63, %v70
    %v1624 = vunpack.c.l.s4 1966171168
    %v1625 = vunpack.c.0.s8 %v1624
    %v1626 = vlaneseq
    %v1627 = vshrl.u32 %v1626, 7
    %v1628 = vsub.s32 %v1625, %v1627
    %v1629 = vrot.slane %v1615, %v1628
    %v1631 = vunpack.c.l.s4 1966171168
    %v1632 = vunpack.c.0.s8 %v1631
    %v1633 = vlaneseq
    %v1634 = vshrl.u32 %v1633, 7
    %v1635 = vsub.s32 %v1632, %v1634
    %v1636 = vrot.slane %v1616, %v1635
    %v1638 = vunpack.c.l.s4 1966171168
    %v1639 = vunpack.c.0.s8 %v1638
    %v1640 = vlaneseq
    %v1641 = vshrl.u32 %v1640, 7
    %v1642 = vsub.s32 %v1639, %v1641
    %v1643 = vrot.slane %v1617, %v1642
    %v1645 = vunpack.c.l.s4 1966171168
    %v1646 = vunpack.c.0.s8 %v1645
    %v1647 = vlaneseq
    %v1648 = vshrl.u32 %v1647, 7
    %v1649 = vsub.s32 %v1646, %v1648
    %v1650 = vrot.slane %v1618, %v1649
    %v1652 = vunpack.c.l.s4 1966171168
    %v1653 = vunpack.c.0.s8 %v1652
    %v1654 = vlaneseq
    %v1655 = vshrl.u32 %v1654, 7
    %v1656 = vsub.s32 %v1653, %v1655
    %v1657 = vrot.slane %v1619, %v1656
    %v1659 = vunpack.c.l.s4 1966171168
    %v1660 = vunpack.c.0.s8 %v1659
    %v1661 = vlaneseq
    %v1662 = vshrl.u32 %v1661, 7
    %v1663 = vsub.s32 %v1660, %v1662
    %v1664 = vrot.slane %v1620, %v1663
    %v1666 = vunpack.c.l.s4 1966171168
    %v1667 = vunpack.c.0.s8 %v1666
    %v1668 = vlaneseq
    %v1669 = vshrl.u32 %v1668, 7
    %v1670 = vsub.s32 %v1667, %v1669
    %v1671 = vrot.slane %v1621, %v1670
    %v1673 = vunpack.c.l.s4 1966171168
    %v1674 = vunpack.c.0.s8 %v1673
    %v1675 = vlaneseq
    %v1676 = vshrl.u32 %v1675, 7
    %v1677 = vsub.s32 %v1674, %v1676
    %v1678 = vrot.slane %v1622, %v1677
    %v1679 = vcombine.low %v1629, %v1643
    %v1680 = vcombine.high %v1629, %v1643
    %v1681 = vcombine.low %v1636, %v1650
    %v1682 = vcombine.high %v1636, %v1650
    %v1683 = vcombine.low %v1657, %v1671
    %v1684 = vcombine.high %v1657, %v1671
    %v1685 = vcombine.low %v1664, %v1678
    %v1686 = vcombine.high %v1664, %v1678
    %v1688 = vunpack.c.l.s4 1966171168
    %v1689 = vunpack.c.0.s8 %v1688
    %v1690 = vlaneseq
    %v1691 = vshrl.u32 %v1690, 7
    %v1692 = vsub.s32 %v1689, %v1691
    %v1693 = vrot.slane %v1679, %v1692
    %v1695 = vunpack.c.l.s4 1966171168
    %v1696 = vunpack.c.0.s8 %v1695
    %v1697 = vlaneseq
    %v1698 = vshrl.u32 %v1697, 7
    %v1699 = vsub.s32 %v1696, %v1698
    %v1700 = vrot.slane %v1681, %v1699
    %v1702 = vunpack.c.l.s4 1966171168
    %v1703 = vunpack.c.0.s8 %v1702
    %v1704 = vlaneseq
    %v1705 = vshrl.u32 %v1704, 7
    %v1706 = vsub.s32 %v1703, %v1705
    %v1707 = vrot.slane %v1680, %v1706
    %v1709 = vunpack.c.l.s4 1966171168
    %v1710 = vunpack.c.0.s8 %v1709
    %v1711 = vlaneseq
    %v1712 = vshrl.u32 %v1711, 7
    %v1713 = vsub.s32 %v1710, %v1712
    %v1714 = vrot.slane %v1682, %v1713
    %v1716 = vunpack.c.l.s4 1966171168
    %v1717 = vunpack.c.0.s8 %v1716
    %v1718 = vlaneseq
    %v1719 = vshrl.u32 %v1718, 7
    %v1720 = vsub.s32 %v1717, %v1719
    %v1721 = vrot.slane %v1683, %v1720
    %v1723 = vunpack.c.l.s4 1966171168
    %v1724 = vunpack.c.0.s8 %v1723
    %v1725 = vlaneseq
    %v1726 = vshrl.u32 %v1725, 7
    %v1727 = vsub.s32 %v1724, %v1726
    %v1728 = vrot.slane %v1685, %v1727
    %v1730 = vunpack.c.l.s4 1966171168
    %v1731 = vunpack.c.0.s8 %v1730
    %v1732 = vlaneseq
    %v1733 = vshrl.u32 %v1732, 7
    %v1734 = vsub.s32 %v1731, %v1733
    %v1735 = vrot.slane %v1684, %v1734
    %v1737 = vunpack.c.l.s4 1966171168
    %v1738 = vunpack.c.0.s8 %v1737
    %v1739 = vlaneseq
    %v1740 = vshrl.u32 %v1739, 7
    %v1741 = vsub.s32 %v1738, %v1740
    %v1742 = vrot.slane %v1686, %v1741
    %v1743 = vcombine.low %v1693, %v1721
    %v1744 = vcombine.high %v1693, %v1721
    %v1745 = vcombine.low %v1700, %v1728
    %v1746 = vcombine.high %v1700, %v1728
    %v1747 = vcombine.low %v1707, %v1735
    %v1748 = vcombine.high %v1707, %v1735
    %v1749 = vcombine.low %v1714, %v1742
    %v1750 = vcombine.high %v1714, %v1742
    %v1751 = vcombine.low %v22, %v29
    %v1752 = vcombine.low %v36, %v43
    %v1753 = vcombine.low %v50, %v57
    %v1754 = vcombine.low %v64, %v71
    %v1756 = vunpack.c.l.s4 1966171168
    %v1757 = vunpack.c.0.s8 %v1756
    %v1758 = vlaneseq
    %v1759 = vshrl.u32 %v1758, 7
    %v1760 = vsub.s32 %v1757, %v1759
    %v1761 = vrot.slane %v1751, %v1760
    %v1763 = vunpack.c.l.s4 1966171168
    %v1764 = vunpack.c.0.s8 %v1763
    %v1765 = vlaneseq
    %v1766 = vshrl.u32 %v1765, 7
    %v1767 = vsub.s32 %v1764, %v1766
    %v1768 = vrot.slane %v1752, %v1767
    %v1770 = vunpack.c.l.s4 1966171168
    %v1771 = vunpack.c.0.s8 %v1770
    %v1772 = vlaneseq
    %v1773 = vshrl.u32 %v1772, 7
    %v1774 = vsub.s32 %v1771, %v1773
    %v1775 = vrot.slane %v1753, %v1774
    %v1777 = vunpack.c.l.s4 1966171168
    %v1778 = vunpack.c.0.s8 %v1777
    %v1779 = vlaneseq
    %v1780 = vshrl.u32 %v1779, 7
    %v1781 = vsub.s32 %v1778, %v1780
    %v1782 = vrot.slane %v1754, %v1781
    %v1783 = vcombine.low %v1761, %v1768
    %v1784 = vcombine.high %v1761, %v1768
    %v1785 = vcombine.low %v1775, %v1782
    %v1786 = vcombine.high %v1775, %v1782
    %v1788 = vunpack.c.l.s4 1966171168
    %v1789 = vunpack.c.0.s8 %v1788
    %v1790 = vlaneseq
    %v1791 = vshrl.u32 %v1790, 7
    %v1792 = vsub.s32 %v1789, %v1791
    %v1793 = vrot.slane %v1783, %v1792
    %v1795 = vunpack.c.l.s4 1966171168
    %v1796 = vunpack.c.0.s8 %v1795
    %v1797 = vlaneseq
    %v1798 = vshrl.u32 %v1797, 7
    %v1799 = vsub.s32 %v1796, %v1798
    %v1800 = vrot.slane %v1784, %v1799
    %v1802 = vunpack.c.l.s4 1966171168
    %v1803 = vunpack.c.0.s8 %v1802
    %v1804 = vlaneseq
    %v1805 = vshrl.u32 %v1804, 7
    %v1806 = vsub.s32 %v1803, %v1805
    %v1807 = vrot.slane %v1785, %v1806
    %v1809 = vunpack.c.l.s4 1966171168
    %v1810 = vunpack.c.0.s8 %v1809
    %v1811 = vlaneseq
    %v1812 = vshrl.u32 %v1811, 7
    %v1813 = vsub.s32 %v1810, %v1812
    %v1814 = vrot.slane %v1786, %v1813
    %v1815 = vcombine.low %v1793, %v1807
    %v1816 = vcombine.low %v1800, %v1814
    %v2667 = vunpack.c.l.b16 %v72
    %v2668 = vunpack.c.l.b16 %v73
    %v2669 = vunpack.c.l.b16 %v74
    %v2670 = vunpack.c.l.b16 %v75
    %v2671 = vunpack.c.l.b16 %v76
    %v2672 = vunpack.c.l.b16 %v77
    %v2673 = vunpack.c.l.b16 %v78
    %v2674 = vunpack.c.l.b16 %v79
    %v2675 = vunpack.c.l.b16 %v80
    %v2676 = vunpack.c.l.b16 %v81
    %v2677 = vunpack.c.l.b16 %v82
    %v2678 = vunpack.c.l.b16 %v83
    %v2679 = vunpack.c.l.b16 %v84
    %v2680 = vunpack.c.l.b16 %v85
    %v2681 = vunpack.c.l.b16 %v86
    %v2682 = vunpack.c.l.b16 %v87
    %v2683 = vunpack.c.l.b16 %v88
    %v2684 = vunpack.c.l.b16 %v89
    %v2685 = vunpack.c.l.b16 %v90
    %v2686 = vunpack.c.l.b16 %v91
    %v2687 = vunpack.c.l.b16 %v92
    %v2688 = vunpack.c.l.b16 %v93
    %v2689 = vunpack.c.l.b16 %v94
    %v2690 = vunpack.c.l.b16 %v95
    %v2691 = vunpack.c.l.b16 %v96
    %v2692 = vunpack.c.l.b16 %v97
    %v2693 = vunpack.c.l.b16 %v98
    %v2694 = vunpack.c.l.b16 %v99
    %v2695 = vunpack.c.l.b16 %v100
    %v2696 = vunpack.c.l.b16 %v101
    %v2697 = vunpack.c.l.b16 %v102
    %v2698 = vunpack.c.l.b16 %v103
    %v2699 = vunpack.c.l.b16 %v104
    %v2700 = vunpack.c.l.b16 %v105
    %v2701 = vunpack.c.l.b16 %v106
    %v2702 = vunpack.c.l.b16 %v107
    %v2703 = vunpack.c.l.b16 %v108
    %v2704 = vunpack.c.l.b16 %v109
    %v2705 = vunpack.c.l.b16 %v110
    %v2706 = vunpack.c.l.b16 %v111
    %v2707 = vunpack.c.l.b16 %v112
    %v2708 = vunpack.c.l.b16 %v113
    %v2709 = vunpack.c.l.b16 %v114
    %v2710 = vunpack.c.l.b16 %v115
    %v2711 = vunpack.c.l.b16 %v116
    %v2712 = vunpack.c.l.b16 %v117
    %v2713 = vunpack.c.l.b16 %v118
    %v2714 = vunpack.c.l.b16 %v119
    %v2715 = vunpack.c.l.b16 %v120
    %v2716 = vunpack.c.l.b16 %v121
    %v2717 = vunpack.c.l.b16 %v122
    %v2718 = vunpack.c.l.b16 %v123
    %v2719 = vunpack.c.l.b16 %v124
    %v2720 = vunpack.c.l.b16 %v125
    %v2721 = vunpack.c.l.b16 %v126
    %v2722 = vunpack.c.l.b16 %v127
    %v2723 = vunpack.c.l.b16 %v128
    %v2724 = vunpack.c.l.b16 %v129
    %v2725 = vunpack.c.l.b16 %v130
    %v2726 = vunpack.c.l.b16 %v131
    %v2727 = vunpack.c.l.b16 %v132
    %v2728 = vunpack.c.l.b16 %v133
    %v2729 = vunpack.c.l.b16 %v134
    %v2730 = vunpack.c.l.b16 %v135
    %v2731 = vunpack.c.l.b16 %v136
    %v2732 = vunpack.c.l.b16 %v137
    %v2733 = vunpack.c.l.b16 %v138
    %v2734 = vunpack.c.l.b16 %v139
    %v2735 = vunpack.c.l.b16 %v140
    %v2736 = vunpack.c.l.b16 %v141
    %v2737 = vunpack.c.l.b16 %v142
    %v2738 = vunpack.c.l.b16 %v143
    %v2739 = vunpack.c.l.b16 %v144
    %v2740 = vunpack.c.l.b16 %v145
    %v2741 = vunpack.c.l.b16 %v146
    %v2742 = vunpack.c.l.b16 %v147
    %v2743 = vunpack.c.l.b16 %v148
    %v2744 = vunpack.c.l.b16 %v149
    %v2745 = vunpack.c.l.b16 %v150
    %v2746 = vunpack.c.l.b16 %v151
    %v2747 = vunpack.c.l.b16 %v152
    %v2748 = vunpack.c.l.b16 %v153
    %v2749 = vunpack.c.l.b16 %v154
    %v2750 = vunpack.c.l.b16 %v155
    %v2751 = vunpack.c.l.b16 %v156
    %v2752 = vunpack.c.l.b16 %v157
    %v2753 = vunpack.c.l.b16 %v158
    %v2754 = vunpack.c.l.b16 %v159
    %v2755 = vunpack.c.l.b16 %v160
    %v2756 = vunpack.c.l.b16 %v161
    %v2757 = vunpack.c.l.b16 %v162
    %v2758 = vunpack.c.l.b16 %v163
    %v2759 = vunpack.c.l.b16 %v164
    %v2760 = vunpack.c.l.b16 %v165
    %v2761 = vunpack.c.l.b16 %v166
    %v2762 = vunpack.c.l.b16 %v167
    %v2763 = vunpack.c.l.b16 %v168
    %v2764 = vunpack.c.l.b16 %v169
    %v2765 = vunpack.c.l.b16 %v170
    %v2766 = vunpack.c.l.b16 %v171
    %v2767 = vunpack.c.l.b16 %v172
    %v2768 = vunpack.c.l.b16 %v173
    %v2769 = vunpack.c.l.b16 %v174
    %v2770 = vunpack.c.l.b16 %v175
    %v2771 = vunpack.c.l.b16 %v176
    %v2772 = vunpack.c.l.b16 %v177
    %v2773 = vunpack.c.l.b16 %v178
    %v2774 = vunpack.c.l.b16 %v179
    %v2775 = vunpack.c.l.b16 %v180
    %v2776 = vunpack.c.l.b16 %v181
    %v2777 = vunpack.c.l.b16 %v182
    %v2778 = vunpack.c.l.b16 %v183
    %v2779 = vunpack.c.l.b16 %v184
    %v2780 = vunpack.c.l.b16 %v185
    %v2781 = vunpack.c.l.b16 %v186
    %v2782 = vunpack.c.l.b16 %v187
    %v2783 = vunpack.c.l.b16 %v188
    %v2784 = vunpack.c.l.b16 %v189
    %v2785 = vunpack.c.l.b16 %v190
    %v2786 = vunpack.c.l.b16 %v191
    %v2787 = vunpack.c.l.b16 %v192
    %v2788 = vunpack.c.l.b16 %v193
    %v2789 = vunpack.c.l.b16 %v194
    %v2790 = vunpack.c.l.b16 %v195
    %v2791 = vunpack.c.l.b16 %v196
    %v2792 = vunpack.c.l.b16 %v197
    %v2793 = vunpack.c.l.b16 %v198
    %v2794 = vunpack.c.l.b16 %v199
    %v2795 = vunpack.c.l.b16 %v200
    %v2796 = vunpack.c.l.b16 %v201
    %v2797 = vunpack.c.l.b16 %v202
    %v2798 = vunpack.c.l.b16 %v203
    %v2799 = vunpack.c.l.b16 %v204
    %v2800 = vunpack.c.l.b16 %v205
    %v2801 = vunpack.c.l.b16 %v206
    %v2802 = vunpack.c.l.b16 %v207
    %v2803 = vunpack.c.l.b16 %v208
    %v2804 = vunpack.c.l.b16 %v209
    %v2805 = vunpack.c.l.b16 %v210
    %v2806 = vunpack.c.l.b16 %v211
    %v2807 = vunpack.c.l.b16 %v212
    %v2808 = vunpack.c.l.b16 %v213
    %v2809 = vunpack.c.l.b16 %v214
    %v2810 = vunpack.c.l.b16 %v215
    %v2811 = vunpack.c.l.b16 %v216
    %v2812 = vunpack.c.l.b16 %v217
    %v2813 = vunpack.c.l.b16 %v218
    %v2814 = vunpack.c.l.b16 %v219
    %v2815 = vunpack.c.l.b16 %v220
    %v2816 = vunpack.c.l.b16 %v221
    %v2817 = vunpack.c.l.b16 %v222
    %v2818 = vunpack.c.l.b16 %v223
    %v2819 = vunpack.c.l.b16 %v224
    %v2820 = vunpack.c.l.b16 %v225
    %v2821 = vunpack.c.l.b16 %v226
    %v2822 = vunpack.c.l.b16 %v227
    %v2823 = vunpack.c.l.b16 %v228
    %v2824 = vunpack.c.l.b16 %v229
    %v2825 = vunpack.c.l.b16 %v230
    %v2826 = vunpack.c.l.b16 %v231
    %v2827 = vunpack.c.l.b16 %v232
    %v2828 = vunpack.c.l.b16 %v233
    %v2829 = vunpack.c.l.b16 %v234
    %v2830 = vunpack.c.l.b16 %v235
    %v2831 = vunpack.c.l.b16 %v236
    %v2832 = vunpack.c.l.b16 %v237
    %v2833 = vunpack.c.l.b16 %v238
    %v2834 = vunpack.c.l.b16 %v239
    %v2835 = vunpack.c.l.b16 %v240
    %v2836 = vunpack.c.l.b16 %v241
    %v2837 = vunpack.c.l.b16 %v242
    %v2838 = vunpack.c.l.b16 %v243
    %v2839 = vunpack.c.l.b16 %v244
    %v2840 = vunpack.c.l.b16 %v245
    %v2841 = vunpack.c.l.b16 %v246
    %v2842 = vunpack.c.l.b16 %v247
    %v2843 = vunpack.c.l.b16 %v248
    %v2844 = vunpack.c.l.b16 %v249
    %v2845 = vunpack.c.l.b16 %v250
    %v2846 = vunpack.c.l.b16 %v251
    %v2847 = vunpack.c.l.b16 %v252
    %v2848 = vunpack.c.l.b16 %v253
    %v2849 = vunpack.c.l.b16 %v254
    %v2850 = vunpack.c.l.b16 %v255
    %v2851 = vunpack.c.l.b16 %v256
    %v2852 = vunpack.c.l.b16 %v257
    %v2853 = vunpack.c.l.b16 %v258
    %v2854 = vunpack.c.l.b16 %v259
    %v2855 = vunpack.c.l.b16 %v260
    %v2856 = vunpack.c.l.b16 %v261
    %v2857 = vunpack.c.l.b16 %v262
    %v2858 = vunpack.c.l.b16 %v263
    %v2859 = vunpack.c.l.b16 %v264
    %v2860 = vunpack.c.l.b16 %v265
    %v2861 = vunpack.c.l.b16 %v266
    %v2862 = vunpack.c.l.b16 %v267
    %v2863 = vunpack.c.l.b16 %v268
    %v2864 = vunpack.c.l.b16 %v269
    %v2865 = vunpack.c.l.b16 %v270
    %v2866 = vunpack.c.l.b16 %v271
    %v2867 = vunpack.c.l.b16 %v272
    %v2868 = vunpack.c.l.b16 %v273
    %v2869 = vunpack.c.l.b16 %v274
    %v2870 = vunpack.c.l.b16 %v275
    %v2871 = vunpack.c.l.b16 %v276
    %v2872 = vunpack.c.l.b16 %v277
    %v2873 = vunpack.c.l.b16 %v278
    %v2874 = vunpack.c.l.b16 %v279
    %v2875 = vunpack.c.l.b16 %v280
    %v2876 = vunpack.c.l.b16 %v281
    %v2877 = vunpack.c.l.b16 %v282
    %v2878 = vunpack.c.l.b16 %v283
    %v2879 = vunpack.c.l.b16 %v284
    %v2880 = vunpack.c.l.b16 %v285
    %v2881 = vunpack.c.l.b16 %v286
    %v2882 = vunpack.c.l.b16 %v287
    %v2883 = vunpack.c.l.b16 %v288
    %v2884 = vunpack.c.l.b16 %v289
    %v2885 = vunpack.c.l.b16 %v290
    %v2886 = vunpack.c.l.b16 %v291
    %v2887 = vunpack.c.l.b16 %v292
    %v2888 = vunpack.c.l.b16 %v293
    %v2889 = vunpack.c.l.b16 %v294
    %v2890 = vunpack.c.l.b16 %v295
    %v2891 = vunpack.c.l.b16 %v296
    %v2892 = vunpack.c.l.b16 %v297
    %v2893 = vunpack.c.l.b16 %v298
    %v2894 = vunpack.c.l.b16 %v299
    %v2895 = vunpack.c.l.b16 %v300
    %v2896 = vunpack.c.l.b16 %v301
    %v2897 = vunpack.c.l.b16 %v302
    %v2898 = vunpack.c.l.b16 %v303
    %v2899 = vunpack.c.l.b16 %v304
    %v2900 = vunpack.c.l.b16 %v305
    %v2901 = vunpack.c.l.b16 %v306
    %v2902 = vunpack.c.l.b16 %v307
    %v2903 = vunpack.c.l.b16 %v308
    %v2904 = vunpack.c.l.b16 %v309
    %v2905 = vunpack.c.l.b16 %v310
    %v2906 = vunpack.c.l.b16 %v311
    %v2907 = vunpack.c.l.b16 %v312
    %v2908 = vunpack.c.l.b16 %v313
    %v2909 = vunpack.c.l.b16 %v314
    %v2910 = vunpack.c.l.b16 %v315
    %v2911 = vunpack.c.l.b16 %v316
    %v2912 = vunpack.c.l.b16 %v317
    %v2913 = vunpack.c.l.b16 %v318
    %v2914 = vunpack.c.l.b16 %v319
    %v2915 = vunpack.c.l.b16 %v320
    %v2916 = vunpack.c.l.b16 %v321
    %v2917 = vunpack.c.l.b16 %v322
    %v2918 = vunpack.c.l.b16 %v323
    %v2919 = vunpack.c.l.b16 %v324
    %v2920 = vunpack.c.l.b16 %v325
    %v2921 = vunpack.c.l.b16 %v326
    %v2922 = vunpack.c.l.b16 %v327
    %v2923 = vunpack.c.l.b16 %v328
    %v2924 = vunpack.c.l.b16 %v329
    %v2925 = vunpack.c.l.b16 %v330
    %v2926 = vunpack.c.l.b16 %v331
    %v2927 = vunpack.c.l.b16 %v332
    %v2928 = vunpack.c.l.b16 %v333
    %v2929 = vunpack.c.l.b16 %v334
    %v2930 = vunpack.c.l.b16 %v335
    %v2931 = vunpack.c.l.b16 %v336
    %v2932 = vunpack.c.l.b16 %v337
    %v2933 = vunpack.c.l.b16 %v338
    %v2934 = vunpack.c.l.b16 %v339
    %v2935 = vunpack.c.l.b16 %v340
    %v2936 = vunpack.c.l.b16 %v341
    %v2937 = vunpack.c.l.b16 %v342
    %v2938 = vunpack.c.l.b16 %v343
    %v2939 = vunpack.c.l.b16 %v344
    %v2940 = vunpack.c.l.b16 %v345
    %v2941 = vunpack.c.l.b16 %v346
    %v2942 = vunpack.c.l.b16 %v347
    %v2943 = vunpack.c.l.b16 %v348
    %v2944 = vunpack.c.l.b16 %v349
    %v2945 = vunpack.c.l.b16 %v350
    %v2946 = vunpack.c.l.b16 %v351
    %v2947 = vunpack.c.l.b16 %v352
    %v2948 = vunpack.c.l.b16 %v353
    %v2949 = vunpack.c.l.b16 %v354
    %v2950 = vunpack.c.l.b16 %v355
    %v2951 = vunpack.c.l.b16 %v356
    %v2952 = vunpack.c.l.b16 %v357
    %v2953 = vunpack.c.l.b16 %v358
    %v2954 = vunpack.c.l.b16 %v359
    %v2955 = vunpack.c.l.b16 %v360
    %v2956 = vunpack.c.l.b16 %v361
    %v2957 = vunpack.c.l.b16 %v362
    %v2958 = vunpack.c.l.b16 %v363
    %v2959 = vunpack.c.l.b16 %v364
    %v2960 = vunpack.c.l.b16 %v365
    %v2961 = vunpack.c.l.b16 %v366
    %v2962 = vunpack.c.l.b16 %v367
    %v2963 = vunpack.c.l.b16 %v368
    %v2964 = vunpack.c.l.b16 %v369
    %v2965 = vunpack.c.l.b16 %v370
    %v2966 = vunpack.c.l.b16 %v371
    %v2967 = vunpack.c.l.b16 %v372
    %v2968 = vunpack.c.l.b16 %v373
    %v2969 = vunpack.c.l.b16 %v374
    %v2970 = vunpack.c.l.b16 %v375
    %v2971 = vunpack.c.l.b16 %v376
    %v2972 = vunpack.c.l.b16 %v377
    %v2973 = vunpack.c.l.b16 %v378
    %v2974 = vunpack.c.l.b16 %v379
    %v2975 = vunpack.c.l.b16 %v380
    %v2976 = vunpack.c.l.b16 %v381
    %v2977 = vunpack.c.l.b16 %v382
    %v2978 = vunpack.c.l.b16 %v383
    %v2979 = vunpack.c.l.b16 %v384
    %v2980 = vunpack.c.l.b16 %v385
    %v2981 = vunpack.c.l.b16 %v386
    %v2982 = vunpack.c.l.b16 %v387
    %v2983 = vunpack.c.l.b16 %v388
    %v2984 = vunpack.c.l.b16 %v389
    %v2985 = vunpack.c.l.b16 %v390
    %v2986 = vunpack.c.l.b16 %v391
    %v2987 = vunpack.c.l.b16 %v392
    %v2988 = vunpack.c.l.b16 %v393
    %v2989 = vunpack.c.l.b16 %v394
    %v2990 = vunpack.c.l.b16 %v395
    %v2991 = vunpack.c.l.b16 %v396
    %v2992 = vunpack.c.l.b16 %v397
    %v2993 = vunpack.c.l.b16 %v398
    %v2994 = vunpack.c.l.b16 %v399
    %v2995 = vunpack.c.l.b16 %v400
    %v2996 = vunpack.c.l.b16 %v401
    %v2997 = vunpack.c.l.b16 %v402
    %v2998 = vunpack.c.l.b16 %v403
    %v2999 = vunpack.c.l.b16 %v404
    %v3000 = vunpack.c.l.b16 %v405
    %v3001 = vunpack.c.l.b16 %v406
    %v3002 = vunpack.c.l.b16 %v407
    %v3003 = vunpack.c.l.b16 %v408
    %v3004 = vunpack.c.l.b16 %v409
    %v3005 = vunpack.c.l.b16 %v410
    %v3006 = vunpack.c.l.b16 %v411
    %v3007 = vunpack.c.l.b16 %v412
    %v3008 = vunpack.c.l.b16 %v413
    %v3009 = vunpack.c.l.b16 %v414
    %v3010 = vunpack.c.l.b16 %v415
    %v3011 = vunpack.c.l.b16 %v416
    %v3012 = vunpack.c.l.b16 %v417
    %v3013 = vunpack.c.l.b16 %v418
    %v3014 = vunpack.c.l.b16 %v419
    %v3015 = vunpack.c.l.b16 %v420
    %v3016 = vunpack.c.l.b16 %v421
    %v3017 = vunpack.c.l.b16 %v422
    %v3018 = vunpack.c.l.b16 %v423
    %v3019 = vunpack.c.l.b16 %v424
    %v3020 = vunpack.c.l.b16 %v425
    %v3021 = vunpack.c.l.b16 %v426
    %v3022 = vunpack.c.l.b16 %v427
    %v3023 = vunpack.c.l.b16 %v428
    %v3024 = vunpack.c.l.b16 %v429
    %v3025 = vunpack.c.l.b16 %v430
    %v3026 = vunpack.c.l.b16 %v431
    %v3027 = vunpack.c.l.b16 %v432
    %v3028 = vunpack.c.l.b16 %v433
    %v3029 = vunpack.c.l.b16 %v434
    %v3030 = vunpack.c.l.b16 %v435
    %v3031 = vunpack.c.l.b16 %v436
    %v3032 = vunpack.c.l.b16 %v437
    %v3033 = vunpack.c.l.b16 %v438
    %v3034 = vunpack.c.l.b16 %v439
    %v3035 = vunpack.c.l.b16 %v440
    %v3036 = vunpack.c.l.b16 %v441
    %v3037 = vunpack.c.l.b16 %v442
    %v3038 = vunpack.c.l.b16 %v443
    %v3039 = vunpack.c.l.b16 %v444
    %v3040 = vunpack.c.l.b16 %v445
    %v3041 = vunpack.c.l.b16 %v446
    %v3042 = vunpack.c.l.b16 %v447
    %v3043 = vunpack.c.l.b16 %v448
    %v3044 = vunpack.c.l.b16 %v449
    %v3045 = vunpack.c.l.b16 %v450
    %v3046 = vunpack.c.l.b16 %v451
    %v3047 = vunpack.c.l.b16 %v452
    %v3048 = vunpack.c.l.b16 %v453
    %v3049 = vunpack.c.l.b16 %v454
    %v3050 = vunpack.c.l.b16 %v455
    %v3051 = vunpack.c.l.b16 %v456
    %v3052 = vunpack.c.l.b16 %v457
    %v3053 = vunpack.c.l.b16 %v458
    %v3054 = vunpack.c.l.b16 %v459
    %v3055 = vunpack.c.l.b16 %v460
    %v3056 = vunpack.c.l.b16 %v461
    %v3057 = vunpack.c.l.b16 %v462
    %v3058 = vunpack.c.l.b16 %v463
    %v3059 = vunpack.c.l.b16 %v464
    %v3060 = vunpack.c.l.b16 %v465
    %v3061 = vunpack.c.l.b16 %v466
    %v3062 = vunpack.c.l.b16 %v467
    %v3063 = vunpack.c.l.b16 %v468
    %v3064 = vunpack.c.l.b16 %v469
    %v3065 = vunpack.c.l.b16 %v470
    %v3066 = vunpack.c.l.b16 %v471
    %v3067 = vunpack.c.l.b16 %v472
    %v3068 = vunpack.c.l.b16 %v473
    %v3069 = vunpack.c.l.b16 %v474
    %v3070 = vunpack.c.l.b16 %v475
    %v3071 = vunpack.c.l.b16 %v476
    %v3072 = vunpack.c.l.b16 %v477
    %v3073 = vunpack.c.l.b16 %v478
    %v3074 = vunpack.c.l.b16 %v479
    %v3075 = vunpack.c.l.b16 %v480
    %v3076 = vunpack.c.l.b16 %v481
    %v3077 = vunpack.c.l.b16 %v482
    %v3078 = vunpack.c.l.b16 %v483
    %v3079 = vunpack.c.l.b16 %v484
    %v3080 = vunpack.c.l.b16 %v485
    %v3081 = vunpack.c.l.b16 %v486
    %v3082 = vunpack.c.l.b16 %v487
    %v3083 = vunpack.c.l.b16 %v488
    %v3084 = vunpack.c.l.b16 %v489
    %v3085 = vunpack.c.l.b16 %v490
    %v3086 = vunpack.c.l.b16 %v491
    %v3087 = vunpack.c.l.b16 %v492
    %v3088 = vunpack.c.l.b16 %v493
    %v3089 = vunpack.c.l.b16 %v494
    %v3090 = vunpack.c.l.b16 %v495
    %v3091 = vunpack.c.l.b16 %v496
    %v3092 = vunpack.c.l.b16 %v497
    %v3093 = vunpack.c.l.b16 %v498
    %v3094 = vunpack.c.l.b16 %v499
    %v3095 = vunpack.c.l.b16 %v500
    %v3096 = vunpack.c.l.b16 %v501
    %v3097 = vunpack.c.l.b16 %v502
    %v3098 = vunpack.c.l.b16 %v503
    %v3099 = vunpack.c.l.b16 %v504
    %v3100 = vunpack.c.l.b16 %v505
    %v3101 = vunpack.c.l.b16 %v506
    %v3102 = vunpack.c.l.b16 %v507
    %v3103 = vunpack.c.l.b16 %v508
    %v3104 = vunpack.c.l.b16 %v509
    %v3105 = vunpack.c.l.b16 %v510
    %v3106 = vunpack.c.l.b16 %v511
    %v3107 = vunpack.c.l.b16 %v512
    %v3108 = vunpack.c.l.b16 %v513
    %v3109 = vunpack.c.l.b16 %v514
    %v3110 = vunpack.c.l.b16 %v515
    %v3111 = vunpack.c.l.b16 %v516
    %v3112 = vunpack.c.l.b16 %v517
    %v3113 = vunpack.c.l.b16 %v518
    %v3114 = vunpack.c.l.b16 %v519
    %v3115 = vunpack.c.l.b16 %v520
    %v3116 = vunpack.c.l.b16 %v521
    %v3117 = vunpack.c.l.b16 %v522
    %v3118 = vunpack.c.l.b16 %v523
    %v3119 = vunpack.c.l.b16 %v524
    %v3120 = vunpack.c.l.b16 %v525
    %v3121 = vunpack.c.l.b16 %v526
    %v3122 = vunpack.c.l.b16 %v527
    %v3123 = vunpack.c.l.b16 %v528
    %v3124 = vunpack.c.l.b16 %v529
    %v3125 = vunpack.c.l.b16 %v530
    %v3126 = vunpack.c.l.b16 %v531
    %v3127 = vunpack.c.l.b16 %v532
    %v3128 = vunpack.c.l.b16 %v533
    %v3129 = vunpack.c.l.b16 %v534
    %v3130 = vunpack.c.l.b16 %v535
    %v3131 = vunpack.c.l.b16 %v536
    %v3132 = vunpack.c.l.b16 %v537
    %v3133 = vunpack.c.l.b16 %v538
    %v3134 = vunpack.c.l.b16 %v539
    %v3135 = vunpack.c.l.b16 %v540
    %v3136 = vunpack.c.l.b16 %v541
    %v3137 = vunpack.c.l.b16 %v542
    %v3138 = vunpack.c.l.b16 %v543
    %v3139 = vunpack.c.l.b16 %v544
    %v3140 = vunpack.c.l.b16 %v545
    %v3141 = vunpack.c.l.b16 %v546
    %v3142 = vunpack.c.l.b16 %v547
    %v3143 = vunpack.c.l.b16 %v548
    %v3144 = vunpack.c.l.b16 %v549
    %v3145 = vunpack.c.l.b16 %v550
    %v3146 = vunpack.c.l.b16 %v551
    %v3147 = vunpack.c.l.b16 %v552
    %v3148 = vunpack.c.l.b16 %v553
    %v3149 = vunpack.c.l.b16 %v554
    %v3150 = vunpack.c.l.b16 %v555
    %v3151 = vunpack.c.l.b16 %v556
    %v3152 = vunpack.c.l.b16 %v557
    %v3153 = vunpack.c.l.b16 %v558
    %v3154 = vunpack.c.l.b16 %v559
    %v3155 = vunpack.c.l.b16 %v560
    %v3156 = vunpack.c.l.b16 %v561
    %v3157 = vunpack.c.l.b16 %v562
    %v3158 = vunpack.c.l.b16 %v563
    %v3159 = vunpack.c.l.b16 %v564
    %v3160 = vunpack.c.l.b16 %v565
    %v3161 = vunpack.c.l.b16 %v566
    %v3162 = vunpack.c.l.b16 %v567
    %v3163 = vunpack.c.l.b16 %v568
    %v3164 = vunpack.c.l.b16 %v569
    %v3165 = vunpack.c.l.b16 %v570
    %v3166 = vunpack.c.l.b16 %v571
    %v3167 = vunpack.c.l.b16 %v572
    %v3168 = vunpack.c.l.b16 %v573
    %v3169 = vunpack.c.l.b16 %v574
    %v3170 = vunpack.c.l.b16 %v575
    %v3171 = vunpack.c.l.b16 %v576
    %v3172 = vunpack.c.l.b16 %v577
    %v3173 = vunpack.c.l.b16 %v578
    %v3174 = vunpack.c.l.b16 %v579
    %v3175 = vunpack.c.l.b16 %v580
    %v3176 = vunpack.c.l.b16 %v581
    %v3177 = vunpack.c.l.b16 %v582
    %v3178 = vunpack.c.l.b16 %v583
    %v3179 = vunpack.c.l.b16 %v584
    %v3180 = vunpack.c.l.b16 %v585
    %v3181 = vunpack.c.l.b16 %v586
    %v3182 = vunpack.c.l.b16 %v587
    %v3183 = vunpack.c.l.b16 %v588
    %v3184 = vunpack.c.l.b16 %v589
    %v3185 = vunpack.c.l.b16 %v590
    %v3186 = vunpack.c.l.b16 %v591
    %v3187 = vunpack.c.l.b16 %v592
    %v3188 = vunpack.c.l.b16 %v593
    %v3189 = vunpack.c.l.b16 %v594
    %v3190 = vunpack.c.l.b16 %v595
    %v3191 = vunpack.c.l.b16 %v596
    %v3192 = vunpack.c.l.b16 %v597
    %v3193 = vunpack.c.l.b16 %v598
    %v3194 = vunpack.c.l.b16 %v599
    %v3195 = vunpack.c.l.b16 %v600
    %v3196 = vunpack.c.l.b16 %v601
    %v3197 = vunpack.c.l.b16 %v602
    %v3198 = vunpack.c.l.b16 %v603
    %v3199 = vunpack.c.l.b16 %v604
    %v3200 = vunpack.c.l.b16 %v605
    %v3201 = vunpack.c.l.b16 %v606
    %v3202 = vunpack.c.l.b16 %v607
    %v3203 = vunpack.c.l.b16 %v608
    %v3204 = vunpack.c.l.b16 %v609
    %v3205 = vunpack.c.l.b16 %v610
    %v3206 = vunpack.c.l.b16 %v611
    %v3207 = vunpack.c.l.b16 %v612
    %v3208 = vunpack.c.l.b16 %v613
    %v3209 = vunpack.c.l.b16 %v614
    %v3210 = vunpack.c.l.b16 %v615
    %v3211 = vunpack.c.l.b16 %v616
    %v3212 = vunpack.c.l.b16 %v617
    %v3213 = vunpack.c.l.b16 %v618
    %v3214 = vunpack.c.l.b16 %v619
    %v3215 = vunpack.c.l.b16 %v620
    %v3216 = vunpack.c.l.b16 %v621
    %v3217 = vunpack.c.l.b16 %v622
    %v3218 = vunpack.c.l.b16 %v623
    %v3219 = vunpack.c.l.b16 %v624
    %v3220 = vunpack.c.l.b16 %v625
    %v3221 = vunpack.c.l.b16 %v626
    %v3222 = vunpack.c.l.b16 %v627
    %v3223 = vunpack.c.l.b16 %v628
    %v3224 = vunpack.c.l.b16 %v629
    %v3225 = vunpack.c.l.b16 %v630
    %v3226 = vunpack.c.l.b16 %v631
    %v3227 = vunpack.c.l.b16 %v632
    %v3228 = vunpack.c.l.b16 %v633
    %v3229 = vunpack.c.l.b16 %v634
    %v3230 = vunpack.c.l.b16 %v635
    %v3231 = vunpack.c.l.b16 %v636
    %v3232 = vunpack.c.l.b16 %v637
    %v3233 = vunpack.c.l.b16 %v638
    %v3234 = vunpack.c.l.b16 %v639
    %v3235 = vunpack.c.l.b16 %v640
    %v3236 = vunpack.c.l.b16 %v641
    %v3237 = vunpack.c.l.b16 %v642
    %v3238 = vunpack.c.l.b16 %v643
    %v3239 = vunpack.c.l.b16 %v644
    %v3240 = vunpack.c.l.b16 %v645
    %v3241 = vunpack.c.l.b16 %v646
    %v3242 = vunpack.c.l.b16 %v647
    %v3243 = vunpack.c.l.b16 %v648
    %v3244 = vunpack.c.l.b16 %v649
    %v3245 = vunpack.c.l.b16 %v650
    %v3246 = vunpack.c.l.b16 %v651
    %v3247 = vunpack.c.l.b16 %v652
    %v3248 = vunpack.c.l.b16 %v653
    %v3249 = vunpack.c.l.b16 %v654
    %v3250 = vunpack.c.l.b16 %v655
    %v3251 = vunpack.c.l.b16 %v656
    %v3252 = vunpack.c.l.b16 %v657
    %v3253 = vunpack.c.l.b16 %v658
    %v3254 = vunpack.c.l.b16 %v659
    %v3255 = vunpack.c.l.b16 %v660
    %v3256 = vunpack.c.l.b16 %v661
    %v3257 = vunpack.c.l.b16 %v662
    %v3258 = vunpack.c.l.b16 %v663
    %v3259 = vunpack.c.l.b16 %v664
    %v3260 = vunpack.c.l.b16 %v665
    %v3261 = vunpack.c.l.b16 %v666
    %v3262 = vunpack.c.l.b16 %v667
    %v3263 = vunpack.c.l.b16 %v668
    %v3264 = vunpack.c.l.b16 %v669
    %v3265 = vunpack.c.l.b16 %v670
    %v3266 = vunpack.c.l.b16 %v671
    %v3267 = vunpack.c.l.b16 %v672
    %v3268 = vunpack.c.l.b16 %v673
    %v3269 = vunpack.c.l.b16 %v674
    %v3270 = vunpack.c.l.b16 %v675
    %v3271 = vunpack.c.l.b16 %v676
    %v3272 = vunpack.c.l.b16 %v677
    %v3273 = vunpack.c.l.b16 %v678
    %v3274 = vunpack.c.l.b16 %v679
    %v3275 = vunpack.c.l.b16 %v680
    %v3276 = vunpack.c.l.b16 %v681
    %v3277 = vunpack.c.l.b16 %v682
    %v3278 = vunpack.c.l.b16 %v683
    %v3279 = vunpack.c.l.b16 %v684
    %v3280 = vunpack.c.l.b16 %v685
    %v3281 = vunpack.c.l.b16 %v686
    %v3282 = vunpack.c.l.b16 %v687
    %v3283 = vunpack.c.l.b16 %v688
    %v3284 = vunpack.c.l.b16 %v689
    %v3285 = vunpack.c.l.b16 %v690
    %v3286 = vunpack.c.l.b16 %v691
    %v3287 = vunpack.c.l.b16 %v692
    %v3288 = vunpack.c.l.b16 %v693
    %v3289 = vunpack.c.l.b16 %v694
    %v3290 = vunpack.c.l.b16 %v695
    %v3291 = vunpack.c.l.b16 %v696
    %v3292 = vunpack.c.l.b16 %v697
    %v3293 = vunpack.c.l.b16 %v698
    %v3294 = vunpack.c.l.b16 %v699
    %v3295 = vunpack.c.l.b16 %v700
    %v3296 = vunpack.c.l.b16 %v701
    %v3297 = vunpack.c.l.b16 %v702
    %v3298 = vunpack.c.l.b16 %v703
    %v3299 = vunpack.c.l.b16 %v704
    %v3300 = vunpack.c.l.b16 %v705
    %v3301 = vunpack.c.l.b16 %v706
    %v3302 = vunpack.c.l.b16 %v707
    %v3303 = vunpack.c.l.b16 %v708
    %v3304 = vunpack.c.l.b16 %v709
    %v3305 = vunpack.c.l.b16 %v710
    %v3306 = vunpack.c.l.b16 %v711
    %v3307 = vunpack.c.l.b16 %v712
    %v3308 = vunpack.c.l.b16 %v713
    %v3309 = vunpack.c.l.b16 %v714
    %v3310 = vunpack.c.l.b16 %v715
    %v3311 = vunpack.c.l.b16 %v716
    %v3312 = vunpack.c.l.b16 %v717
    %v3313 = vunpack.c.l.b16 %v718
    %v3314 = vunpack.c.l.b16 %v719
    %v3315 = vunpack.c.l.b16 %v720
    %v3316 = vunpack.c.l.b16 %v721
    %v3317 = vunpack.c.l.b16 %v722
    %v3318 = vunpack.c.l.b16 %v723
    %v3319 = vunpack.c.l.b16 %v724
    %v3320 = vunpack.c.l.b16 %v725
    %v3321 = vunpack.c.l.b16 %v726
    %v3322 = vunpack.c.l.b16 %v727
    %v3323 = vunpack.c.l.b16 %v728
    %v3324 = vunpack.c.l.b16 %v729
    %v3325 = vunpack.c.l.b16 %v730
    %v3326 = vunpack.c.l.b16 %v731
    %v3327 = vunpack.c.l.b16 %v732
    %v3328 = vunpack.c.l.b16 %v733
    %v3329 = vunpack.c.l.b16 %v734
    %v3330 = vunpack.c.l.b16 %v735
    %v3331 = vunpack.c.l.b16 %v736
    %v3332 = vunpack.c.l.b16 %v737
    %v3333 = vunpack.c.l.b16 %v738
    %v3334 = vunpack.c.l.b16 %v739
    %v3335 = vunpack.c.l.b16 %v740
    %v3336 = vunpack.c.l.b16 %v741
    %v3337 = vunpack.c.l.b16 %v742
    %v3338 = vunpack.c.l.b16 %v743
    %v3339 = vunpack.c.l.b16 %v744
    %v3340 = vunpack.c.l.b16 %v745
    %v3341 = vunpack.c.l.b16 %v746
    %v3342 = vunpack.c.l.b16 %v747
    %v3343 = vunpack.c.l.b16 %v748
    %v3344 = vunpack.c.l.b16 %v749
    %v3345 = vunpack.c.l.b16 %v750
    %v3346 = vunpack.c.l.b16 %v751
    %v3347 = vunpack.c.l.b16 %v752
    %v3348 = vunpack.c.l.b16 %v753
    %v3349 = vunpack.c.l.b16 %v754
    %v3350 = vunpack.c.l.b16 %v755
    %v3351 = vunpack.c.l.b16 %v756
    %v3352 = vunpack.c.l.b16 %v757
    %v3353 = vunpack.c.l.b16 %v758
    %v3354 = vunpack.c.l.b16 %v759
    %v3355 = vunpack.c.l.b16 %v760
    %v3356 = vunpack.c.l.b16 %v761
    %v3357 = vunpack.c.l.b16 %v762
    %v3358 = vunpack.c.l.b16 %v763
    %v3359 = vunpack.c.l.b16 %v764
    %v3360 = vunpack.c.l.b16 %v765
    %v3361 = vunpack.c.l.b16 %v766
    %v3362 = vunpack.c.l.b16 %v767
    %v3363 = vunpack.c.l.b16 %v768
    %v3364 = vunpack.c.l.b16 %v769
    %v3365 = vunpack.c.l.b16 %v770
    %v3366 = vunpack.c.l.b16 %v771
    %v3367 = vunpack.c.l.b16 %v772
    %v3368 = vunpack.c.l.b16 %v773
    %v3369 = vunpack.c.l.b16 %v774
    %v3370 = vunpack.c.l.b16 %v775
    %v3371 = vunpack.c.l.b16 %v776
    %v3372 = vunpack.c.l.b16 %v777
    %v3373 = vunpack.c.l.b16 %v778
    %v3374 = vunpack.c.l.b16 %v779
    %v3375 = vunpack.c.l.b16 %v780
    %v3376 = vunpack.c.l.b16 %v781
    %v3377 = vunpack.c.l.b16 %v782
    %v3378 = vunpack.c.l.b16 %v783
    %v3379 = vunpack.c.l.b16 %v784
    %v3380 = vunpack.c.l.b16 %v785
    %v3381 = vunpack.c.l.b16 %v786
    %v3382 = vunpack.c.l.b16 %v787
    %v3383 = vunpack.c.l.b16 %v788
    %v3384 = vunpack.c.l.b16 %v789
    %v3385 = vunpack.c.l.b16 %v790
    %v3386 = vunpack.c.l.b16 %v791
    %v3387 = vunpack.c.l.b16 %v792
    %v3388 = vunpack.c.l.b16 %v793
    %v3389 = vunpack.c.l.b16 %v794
    %v3390 = vunpack.c.l.b16 %v795
    %v3391 = vunpack.c.l.b16 %v796
    %v3392 = vunpack.c.l.b16 %v797
    %v3393 = vunpack.c.l.b16 %v798
    %v3394 = vunpack.c.l.b16 %v799
    %v3395 = vunpack.c.l.b16 %v800
    %v3396 = vunpack.c.l.b16 %v801
    %v3397 = vunpack.c.l.b16 %v802
    %v3398 = vunpack.c.l.b16 %v803
    %v3399 = vunpack.c.l.b16 %v804
    %v3400 = vunpack.c.l.b16 %v805
    %v3401 = vunpack.c.l.b16 %v806
    %v3402 = vunpack.c.l.b16 %v807
    %v3403 = vunpack.c.l.b16 %v808
    %v3404 = vunpack.c.l.b16 %v809
    %v3405 = vunpack.c.l.b16 %v810
    %v3406 = vunpack.c.l.b16 %v811
    %v3407 = vunpack.c.l.b16 %v812
    %v3408 = vunpack.c.l.b16 %v813
    %v3409 = vunpack.c.l.b16 %v814
    %v3410 = vunpack.c.l.b16 %v815
    %v3411 = vunpack.c.l.b16 %v816
    %v3412 = vunpack.c.l.b16 %v817
    %v3413 = vunpack.c.l.b16 %v818
    %v3414 = vunpack.c.l.b16 %v819
    %v3415 = vunpack.c.l.b16 %v820
    %v3416 = vunpack.c.l.b16 %v821
    %v3417 = vunpack.c.l.b16 %v822
    %v3418 = vunpack.c.l.b16 %v823
    %v3419 = vunpack.c.l.b16 %v824
    %v3420 = vunpack.c.l.b16 %v825
    %v3421 = vunpack.c.l.b16 %v826
    %v3422 = vunpack.c.l.b16 %v827
    %v3423 = vunpack.c.l.b16 %v828
    %v3424 = vunpack.c.l.b16 %v829
    %v3425 = vunpack.c.l.b16 %v830
    %v3426 = vunpack.c.l.b16 %v831
    %v3427 = vunpack.c.l.b16 %v832
    %v3428 = vunpack.c.l.b16 %v833
    %v3429 = vunpack.c.l.b16 %v834
    %v3430 = vunpack.c.l.b16 %v835
    %v3431 = vunpack.c.l.b16 %v836
    %v3432 = vunpack.c.l.b16 %v837
    %v3433 = vunpack.c.l.b16 %v838
    %v3434 = vunpack.c.l.b16 %v839
    %v3435 = vunpack.c.l.b16 %v840
    %v3436 = vunpack.c.l.b16 %v841
    %v3437 = vunpack.c.l.b16 %v842
    %v3438 = vunpack.c.l.b16 %v843
    %v3439 = vunpack.c.l.b16 %v844
    %v3440 = vunpack.c.l.b16 %v845
    %v3441 = vunpack.c.l.b16 %v846
    %v3442 = vunpack.c.l.b16 %v847
    %v3443 = vunpack.c.l.b16 %v848
    %v3444 = vunpack.c.l.b16 %v849
    %v3445 = vunpack.c.l.b16 %v850
    %v3446 = vunpack.c.l.b16 %v851
    %v3447 = vunpack.c.l.b16 %v852
    %v3448 = vunpack.c.l.b16 %v853
    %v3449 = vunpack.c.l.b16 %v854
    %v3450 = vunpack.c.l.b16 %v855
    %v3451 = vunpack.c.l.b16 %v856
    %v3452 = vunpack.c.l.b16 %v857
    %v3453 = vunpack.c.l.b16 %v858
    %v3454 = vunpack.c.l.b16 %v859
    %v3455 = vunpack.c.l.b16 %v860
    %v3456 = vunpack.c.l.b16 %v861
    %v3457 = vunpack.c.l.b16 %v862
    %v3458 = vunpack.c.l.b16 %v863
    %v3459 = vunpack.c.l.b16 %v864
    %v3460 = vunpack.c.l.b16 %v865
    %v3461 = vunpack.c.l.b16 %v866
    %v3462 = vunpack.c.l.b16 %v867
    %v3463 = vunpack.c.l.b16 %v868
    %v3464 = vunpack.c.l.b16 %v869
    %v3465 = vunpack.c.l.b16 %v870
    %v3466 = vunpack.c.l.b16 %v871
    %v3467 = vpack.c.b16 %v2668, %v2667
    %v3468 = vpack.c.b16 %v2670, %v2669
    %v3469 = vpack.c.b16 %v2672, %v2671
    %v3470 = vpack.c.b16 %v2674, %v2673
    %v3471 = vpack.c.b16 %v2676, %v2675
    %v3472 = vpack.c.b16 %v2678, %v2677
    %v3473 = vpack.c.b16 %v2680, %v2679
    %v3474 = vpack.c.b16 %v2682, %v2681
    %v3475 = vpack.c.b16 %v2684, %v2683
    %v3476 = vpack.c.b16 %v2686, %v2685
    %v3477 = vpack.c.b16 %v2688, %v2687
    %v3478 = vpack.c.b16 %v2690, %v2689
    %v3479 = vpack.c.b16 %v2692, %v2691
    %v3480 = vpack.c.b16 %v2694, %v2693
    %v3481 = vpack.c.b16 %v2696, %v2695
    %v3482 = vpack.c.b16 %v2698, %v2697
    %v3483 = vpack.c.b16 %v2700, %v2699
    %v3484 = vpack.c.b16 %v2702, %v2701
    %v3485 = vpack.c.b16 %v2704, %v2703
    %v3486 = vpack.c.b16 %v2706, %v2705
    %v3487 = vpack.c.b16 %v2708, %v2707
    %v3488 = vpack.c.b16 %v2710, %v2709
    %v3489 = vpack.c.b16 %v2712, %v2711
    %v3490 = vpack.c.b16 %v2714, %v2713
    %v3491 = vpack.c.b16 %v2716, %v2715
    %v3492 = vpack.c.b16 %v2718, %v2717
    %v3493 = vpack.c.b16 %v2720, %v2719
    %v3494 = vpack.c.b16 %v2722, %v2721
    %v3495 = vpack.c.b16 %v2724, %v2723
    %v3496 = vpack.c.b16 %v2726, %v2725
    %v3497 = vpack.c.b16 %v2728, %v2727
    %v3498 = vpack.c.b16 %v2730, %v2729
    %v3499 = vpack.c.b16 %v2732, %v2731
    %v3500 = vpack.c.b16 %v2734, %v2733
    %v3501 = vpack.c.b16 %v2736, %v2735
    %v3502 = vpack.c.b16 %v2738, %v2737
    %v3503 = vpack.c.b16 %v2740, %v2739
    %v3504 = vpack.c.b16 %v2742, %v2741
    %v3505 = vpack.c.b16 %v2744, %v2743
    %v3506 = vpack.c.b16 %v2746, %v2745
    %v3507 = vpack.c.b16 %v2748, %v2747
    %v3508 = vpack.c.b16 %v2750, %v2749
    %v3509 = vpack.c.b16 %v2752, %v2751
    %v3510 = vpack.c.b16 %v2754, %v2753
    %v3511 = vpack.c.b16 %v2756, %v2755
    %v3512 = vpack.c.b16 %v2758, %v2757
    %v3513 = vpack.c.b16 %v2760, %v2759
    %v3514 = vpack.c.b16 %v2762, %v2761
    %v3515 = vpack.c.b16 %v2764, %v2763
    %v3516 = vpack.c.b16 %v2766, %v2765
    %v3517 = vpack.c.b16 %v2768, %v2767
    %v3518 = vpack.c.b16 %v2770, %v2769
    %v3519 = vpack.c.b16 %v2772, %v2771
    %v3520 = vpack.c.b16 %v2774, %v2773
    %v3521 = vpack.c.b16 %v2776, %v2775
    %v3522 = vpack.c.b16 %v2778, %v2777
    %v3523 = vpack.c.b16 %v2780, %v2779
    %v3524 = vpack.c.b16 %v2782, %v2781
    %v3525 = vpack.c.b16 %v2784, %v2783
    %v3526 = vpack.c.b16 %v2786, %v2785
    %v3527 = vpack.c.b16 %v2788, %v2787
    %v3528 = vpack.c.b16 %v2790, %v2789
    %v3529 = vpack.c.b16 %v2792, %v2791
    %v3530 = vpack.c.b16 %v2794, %v2793
    %v3531 = vpack.c.b16 %v2796, %v2795
    %v3532 = vpack.c.b16 %v2798, %v2797
    %v3533 = vpack.c.b16 %v2800, %v2799
    %v3534 = vpack.c.b16 %v2802, %v2801
    %v3535 = vpack.c.b16 %v2804, %v2803
    %v3536 = vpack.c.b16 %v2806, %v2805
    %v3537 = vpack.c.b16 %v2808, %v2807
    %v3538 = vpack.c.b16 %v2810, %v2809
    %v3539 = vpack.c.b16 %v2812, %v2811
    %v3540 = vpack.c.b16 %v2814, %v2813
    %v3541 = vpack.c.b16 %v2816, %v2815
    %v3542 = vpack.c.b16 %v2818, %v2817
    %v3543 = vpack.c.b16 %v2820, %v2819
    %v3544 = vpack.c.b16 %v2822, %v2821
    %v3545 = vpack.c.b16 %v2824, %v2823
    %v3546 = vpack.c.b16 %v2826, %v2825
    %v3547 = vpack.c.b16 %v2828, %v2827
    %v3548 = vpack.c.b16 %v2830, %v2829
    %v3549 = vpack.c.b16 %v2832, %v2831
    %v3550 = vpack.c.b16 %v2834, %v2833
    %v3551 = vpack.c.b16 %v2836, %v2835
    %v3552 = vpack.c.b16 %v2838, %v2837
    %v3553 = vpack.c.b16 %v2840, %v2839
    %v3554 = vpack.c.b16 %v2842, %v2841
    %v3555 = vpack.c.b16 %v2844, %v2843
    %v3556 = vpack.c.b16 %v2846, %v2845
    %v3557 = vpack.c.b16 %v2848, %v2847
    %v3558 = vpack.c.b16 %v2850, %v2849
    %v3559 = vpack.c.b16 %v2852, %v2851
    %v3560 = vpack.c.b16 %v2854, %v2853
    %v3561 = vpack.c.b16 %v2856, %v2855
    %v3562 = vpack.c.b16 %v2858, %v2857
    %v3563 = vpack.c.b16 %v2860, %v2859
    %v3564 = vpack.c.b16 %v2862, %v2861
    %v3565 = vpack.c.b16 %v2864, %v2863
    %v3566 = vpack.c.b16 %v2866, %v2865
    %v3567 = vpack.c.b16 %v2868, %v2867
    %v3568 = vpack.c.b16 %v2870, %v2869
    %v3569 = vpack.c.b16 %v2872, %v2871
    %v3570 = vpack.c.b16 %v2874, %v2873
    %v3571 = vpack.c.b16 %v2876, %v2875
    %v3572 = vpack.c.b16 %v2878, %v2877
    %v3573 = vpack.c.b16 %v2880, %v2879
    %v3574 = vpack.c.b16 %v2882, %v2881
    %v3575 = vpack.c.b16 %v2884, %v2883
    %v3576 = vpack.c.b16 %v2886, %v2885
    %v3577 = vpack.c.b16 %v2888, %v2887
    %v3578 = vpack.c.b16 %v2890, %v2889
    %v3579 = vpack.c.b16 %v2892, %v2891
    %v3580 = vpack.c.b16 %v2894, %v2893
    %v3581 = vpack.c.b16 %v2896, %v2895
    %v3582 = vpack.c.b16 %v2898, %v2897
    %v3583 = vpack.c.b16 %v2900, %v2899
    %v3584 = vpack.c.b16 %v2902, %v2901
    %v3585 = vpack.c.b16 %v2904, %v2903
    %v3586 = vpack.c.b16 %v2906, %v2905
    %v3587 = vpack.c.b16 %v2908, %v2907
    %v3588 = vpack.c.b16 %v2910, %v2909
    %v3589 = vpack.c.b16 %v2912, %v2911
    %v3590 = vpack.c.b16 %v2914, %v2913
    %v3591 = vpack.c.b16 %v2916, %v2915
    %v3592 = vpack.c.b16 %v2918, %v2917
    %v3593 = vpack.c.b16 %v2920, %v2919
    %v3594 = vpack.c.b16 %v2922, %v2921
    %v3595 = vpack.c.b16 %v2924, %v2923
    %v3596 = vpack.c.b16 %v2926, %v2925
    %v3597 = vpack.c.b16 %v2928, %v2927
    %v3598 = vpack.c.b16 %v2930, %v2929
    %v3599 = vpack.c.b16 %v2932, %v2931
    %v3600 = vpack.c.b16 %v2934, %v2933
    %v3601 = vpack.c.b16 %v2936, %v2935
    %v3602 = vpack.c.b16 %v2938, %v2937
    %v3603 = vpack.c.b16 %v2940, %v2939
    %v3604 = vpack.c.b16 %v2942, %v2941
    %v3605 = vpack.c.b16 %v2944, %v2943
    %v3606 = vpack.c.b16 %v2946, %v2945
    %v3607 = vpack.c.b16 %v2948, %v2947
    %v3608 = vpack.c.b16 %v2950, %v2949
    %v3609 = vpack.c.b16 %v2952, %v2951
    %v3610 = vpack.c.b16 %v2954, %v2953
    %v3611 = vpack.c.b16 %v2956, %v2955
    %v3612 = vpack.c.b16 %v2958, %v2957
    %v3613 = vpack.c.b16 %v2960, %v2959
    %v3614 = vpack.c.b16 %v2962, %v2961
    %v3615 = vpack.c.b16 %v2964, %v2963
    %v3616 = vpack.c.b16 %v2966, %v2965
    %v3617 = vpack.c.b16 %v2968, %v2967
    %v3618 = vpack.c.b16 %v2970, %v2969
    %v3619 = vpack.c.b16 %v2972, %v2971
    %v3620 = vpack.c.b16 %v2974, %v2973
    %v3621 = vpack.c.b16 %v2976, %v2975
    %v3622 = vpack.c.b16 %v2978, %v2977
    %v3623 = vpack.c.b16 %v2980, %v2979
    %v3624 = vpack.c.b16 %v2982, %v2981
    %v3625 = vpack.c.b16 %v2984, %v2983
    %v3626 = vpack.c.b16 %v2986, %v2985
    %v3627 = vpack.c.b16 %v2988, %v2987
    %v3628 = vpack.c.b16 %v2990, %v2989
    %v3629 = vpack.c.b16 %v2992, %v2991
    %v3630 = vpack.c.b16 %v2994, %v2993
    %v3631 = vpack.c.b16 %v2996, %v2995
    %v3632 = vpack.c.b16 %v2998, %v2997
    %v3633 = vpack.c.b16 %v3000, %v2999
    %v3634 = vpack.c.b16 %v3002, %v3001
    %v3635 = vpack.c.b16 %v3004, %v3003
    %v3636 = vpack.c.b16 %v3006, %v3005
    %v3637 = vpack.c.b16 %v3008, %v3007
    %v3638 = vpack.c.b16 %v3010, %v3009
    %v3639 = vpack.c.b16 %v3012, %v3011
    %v3640 = vpack.c.b16 %v3014, %v3013
    %v3641 = vpack.c.b16 %v3016, %v3015
    %v3642 = vpack.c.b16 %v3018, %v3017
    %v3643 = vpack.c.b16 %v3020, %v3019
    %v3644 = vpack.c.b16 %v3022, %v3021
    %v3645 = vpack.c.b16 %v3024, %v3023
    %v3646 = vpack.c.b16 %v3026, %v3025
    %v3647 = vpack.c.b16 %v3028, %v3027
    %v3648 = vpack.c.b16 %v3030, %v3029
    %v3649 = vpack.c.b16 %v3032, %v3031
    %v3650 = vpack.c.b16 %v3034, %v3033
    %v3651 = vpack.c.b16 %v3036, %v3035
    %v3652 = vpack.c.b16 %v3038, %v3037
    %v3653 = vpack.c.b16 %v3040, %v3039
    %v3654 = vpack.c.b16 %v3042, %v3041
    %v3655 = vpack.c.b16 %v3044, %v3043
    %v3656 = vpack.c.b16 %v3046, %v3045
    %v3657 = vpack.c.b16 %v3048, %v3047
    %v3658 = vpack.c.b16 %v3050, %v3049
    %v3659 = vpack.c.b16 %v3052, %v3051
    %v3660 = vpack.c.b16 %v3054, %v3053
    %v3661 = vpack.c.b16 %v3056, %v3055
    %v3662 = vpack.c.b16 %v3058, %v3057
    %v3663 = vpack.c.b16 %v3060, %v3059
    %v3664 = vpack.c.b16 %v3062, %v3061
    %v3665 = vpack.c.b16 %v3064, %v3063
    %v3666 = vpack.c.b16 %v3066, %v3065
    %v3667 = vpack.c.b16 %v3068, %v3067
    %v3668 = vpack.c.b16 %v3070, %v3069
    %v3669 = vpack.c.b16 %v3072, %v3071
    %v3670 = vpack.c.b16 %v3074, %v3073
    %v3671 = vpack.c.b16 %v3076, %v3075
    %v3672 = vpack.c.b16 %v3078, %v3077
    %v3673 = vpack.c.b16 %v3080, %v3079
    %v3674 = vpack.c.b16 %v3082, %v3081
    %v3675 = vpack.c.b16 %v3084, %v3083
    %v3676 = vpack.c.b16 %v3086, %v3085
    %v3677 = vpack.c.b16 %v3088, %v3087
    %v3678 = vpack.c.b16 %v3090, %v3089
    %v3679 = vpack.c.b16 %v3092, %v3091
    %v3680 = vpack.c.b16 %v3094, %v3093
    %v3681 = vpack.c.b16 %v3096, %v3095
    %v3682 = vpack.c.b16 %v3098, %v3097
    %v3683 = vpack.c.b16 %v3100, %v3099
    %v3684 = vpack.c.b16 %v3102, %v3101
    %v3685 = vpack.c.b16 %v3104, %v3103
    %v3686 = vpack.c.b16 %v3106, %v3105
    %v3687 = vpack.c.b16 %v3108, %v3107
    %v3688 = vpack.c.b16 %v3110, %v3109
    %v3689 = vpack.c.b16 %v3112, %v3111
    %v3690 = vpack.c.b16 %v3114, %v3113
    %v3691 = vpack.c.b16 %v3116, %v3115
    %v3692 = vpack.c.b16 %v3118, %v3117
    %v3693 = vpack.c.b16 %v3120, %v3119
    %v3694 = vpack.c.b16 %v3122, %v3121
    %v3695 = vpack.c.b16 %v3124, %v3123
    %v3696 = vpack.c.b16 %v3126, %v3125
    %v3697 = vpack.c.b16 %v3128, %v3127
    %v3698 = vpack.c.b16 %v3130, %v3129
    %v3699 = vpack.c.b16 %v3132, %v3131
    %v3700 = vpack.c.b16 %v3134, %v3133
    %v3701 = vpack.c.b16 %v3136, %v3135
    %v3702 = vpack.c.b16 %v3138, %v3137
    %v3703 = vpack.c.b16 %v3140, %v3139
    %v3704 = vpack.c.b16 %v3142, %v3141
    %v3705 = vpack.c.b16 %v3144, %v3143
    %v3706 = vpack.c.b16 %v3146, %v3145
    %v3707 = vpack.c.b16 %v3148, %v3147
    %v3708 = vpack.c.b16 %v3150, %v3149
    %v3709 = vpack.c.b16 %v3152, %v3151
    %v3710 = vpack.c.b16 %v3154, %v3153
    %v3711 = vpack.c.b16 %v3156, %v3155
    %v3712 = vpack.c.b16 %v3158, %v3157
    %v3713 = vpack.c.b16 %v3160, %v3159
    %v3714 = vpack.c.b16 %v3162, %v3161
    %v3715 = vpack.c.b16 %v3164, %v3163
    %v3716 = vpack.c.b16 %v3166, %v3165
    %v3717 = vpack.c.b16 %v3168, %v3167
    %v3718 = vpack.c.b16 %v3170, %v3169
    %v3719 = vpack.c.b16 %v3172, %v3171
    %v3720 = vpack.c.b16 %v3174, %v3173
    %v3721 = vpack.c.b16 %v3176, %v3175
    %v3722 = vpack.c.b16 %v3178, %v3177
    %v3723 = vpack.c.b16 %v3180, %v3179
    %v3724 = vpack.c.b16 %v3182, %v3181
    %v3725 = vpack.c.b16 %v3184, %v3183
    %v3726 = vpack.c.b16 %v3186, %v3185
    %v3727 = vpack.c.b16 %v3188, %v3187
    %v3728 = vpack.c.b16 %v3190, %v3189
    %v3729 = vpack.c.b16 %v3192, %v3191
    %v3730 = vpack.c.b16 %v3194, %v3193
    %v3731 = vpack.c.b16 %v3196, %v3195
    %v3732 = vpack.c.b16 %v3198, %v3197
    %v3733 = vpack.c.b16 %v3200, %v3199
    %v3734 = vpack.c.b16 %v3202, %v3201
    %v3735 = vpack.c.b16 %v3204, %v3203
    %v3736 = vpack.c.b16 %v3206, %v3205
    %v3737 = vpack.c.b16 %v3208, %v3207
    %v3738 = vpack.c.b16 %v3210, %v3209
    %v3739 = vpack.c.b16 %v3212, %v3211
    %v3740 = vpack.c.b16 %v3214, %v3213
    %v3741 = vpack.c.b16 %v3216, %v3215
    %v3742 = vpack.c.b16 %v3218, %v3217
    %v3743 = vpack.c.b16 %v3220, %v3219
    %v3744 = vpack.c.b16 %v3222, %v3221
    %v3745 = vpack.c.b16 %v3224, %v3223
    %v3746 = vpack.c.b16 %v3226, %v3225
    %v3747 = vpack.c.b16 %v3228, %v3227
    %v3748 = vpack.c.b16 %v3230, %v3229
    %v3749 = vpack.c.b16 %v3232, %v3231
    %v3750 = vpack.c.b16 %v3234, %v3233
    %v3751 = vpack.c.b16 %v3236, %v3235
    %v3752 = vpack.c.b16 %v3238, %v3237
    %v3753 = vpack.c.b16 %v3240, %v3239
    %v3754 = vpack.c.b16 %v3242, %v3241
    %v3755 = vpack.c.b16 %v3244, %v3243
    %v3756 = vpack.c.b16 %v3246, %v3245
    %v3757 = vpack.c.b16 %v3248, %v3247
    %v3758 = vpack.c.b16 %v3250, %v3249
    %v3759 = vpack.c.b16 %v3252, %v3251
    %v3760 = vpack.c.b16 %v3254, %v3253
    %v3761 = vpack.c.b16 %v3256, %v3255
    %v3762 = vpack.c.b16 %v3258, %v3257
    %v3763 = vpack.c.b16 %v3260, %v3259
    %v3764 = vpack.c.b16 %v3262, %v3261
    %v3765 = vpack.c.b16 %v3264, %v3263
    %v3766 = vpack.c.b16 %v3266, %v3265
    %v3767 = vpack.c.b16 %v3268, %v3267
    %v3768 = vpack.c.b16 %v3270, %v3269
    %v3769 = vpack.c.b16 %v3272, %v3271
    %v3770 = vpack.c.b16 %v3274, %v3273
    %v3771 = vpack.c.b16 %v3276, %v3275
    %v3772 = vpack.c.b16 %v3278, %v3277
    %v3773 = vpack.c.b16 %v3280, %v3279
    %v3774 = vpack.c.b16 %v3282, %v3281
    %v3775 = vpack.c.b16 %v3284, %v3283
    %v3776 = vpack.c.b16 %v3286, %v3285
    %v3777 = vpack.c.b16 %v3288, %v3287
    %v3778 = vpack.c.b16 %v3290, %v3289
    %v3779 = vpack.c.b16 %v3292, %v3291
    %v3780 = vpack.c.b16 %v3294, %v3293
    %v3781 = vpack.c.b16 %v3296, %v3295
    %v3782 = vpack.c.b16 %v3298, %v3297
    %v3783 = vpack.c.b16 %v3300, %v3299
    %v3784 = vpack.c.b16 %v3302, %v3301
    %v3785 = vpack.c.b16 %v3304, %v3303
    %v3786 = vpack.c.b16 %v3306, %v3305
    %v3787 = vpack.c.b16 %v3308, %v3307
    %v3788 = vpack.c.b16 %v3310, %v3309
    %v3789 = vpack.c.b16 %v3312, %v3311
    %v3790 = vpack.c.b16 %v3314, %v3313
    %v3791 = vpack.c.b16 %v3316, %v3315
    %v3792 = vpack.c.b16 %v3318, %v3317
    %v3793 = vpack.c.b16 %v3320, %v3319
    %v3794 = vpack.c.b16 %v3322, %v3321
    %v3795 = vpack.c.b16 %v3324, %v3323
    %v3796 = vpack.c.b16 %v3326, %v3325
    %v3797 = vpack.c.b16 %v3328, %v3327
    %v3798 = vpack.c.b16 %v3330, %v3329
    %v3799 = vpack.c.b16 %v3332, %v3331
    %v3800 = vpack.c.b16 %v3334, %v3333
    %v3801 = vpack.c.b16 %v3336, %v3335
    %v3802 = vpack.c.b16 %v3338, %v3337
    %v3803 = vpack.c.b16 %v3340, %v3339
    %v3804 = vpack.c.b16 %v3342, %v3341
    %v3805 = vpack.c.b16 %v3344, %v3343
    %v3806 = vpack.c.b16 %v3346, %v3345
    %v3807 = vpack.c.b16 %v3348, %v3347
    %v3808 = vpack.c.b16 %v3350, %v3349
    %v3809 = vpack.c.b16 %v3352, %v3351
    %v3810 = vpack.c.b16 %v3354, %v3353
    %v3811 = vpack.c.b16 %v3356, %v3355
    %v3812 = vpack.c.b16 %v3358, %v3357
    %v3813 = vpack.c.b16 %v3360, %v3359
    %v3814 = vpack.c.b16 %v3362, %v3361
    %v3815 = vpack.c.b16 %v3364, %v3363
    %v3816 = vpack.c.b16 %v3366, %v3365
    %v3817 = vpack.c.b16 %v3368, %v3367
    %v3818 = vpack.c.b16 %v3370, %v3369
    %v3819 = vpack.c.b16 %v3372, %v3371
    %v3820 = vpack.c.b16 %v3374, %v3373
    %v3821 = vpack.c.b16 %v3376, %v3375
    %v3822 = vpack.c.b16 %v3378, %v3377
    %v3823 = vpack.c.b16 %v3380, %v3379
    %v3824 = vpack.c.b16 %v3382, %v3381
    %v3825 = vpack.c.b16 %v3384, %v3383
    %v3826 = vpack.c.b16 %v3386, %v3385
    %v3827 = vpack.c.b16 %v3388, %v3387
    %v3828 = vpack.c.b16 %v3390, %v3389
    %v3829 = vpack.c.b16 %v3392, %v3391
    %v3830 = vpack.c.b16 %v3394, %v3393
    %v3831 = vpack.c.b16 %v3396, %v3395
    %v3832 = vpack.c.b16 %v3398, %v3397
    %v3833 = vpack.c.b16 %v3400, %v3399
    %v3834 = vpack.c.b16 %v3402, %v3401
    %v3835 = vpack.c.b16 %v3404, %v3403
    %v3836 = vpack.c.b16 %v3406, %v3405
    %v3837 = vpack.c.b16 %v3408, %v3407
    %v3838 = vpack.c.b16 %v3410, %v3409
    %v3839 = vpack.c.b16 %v3412, %v3411
    %v3840 = vpack.c.b16 %v3414, %v3413
    %v3841 = vpack.c.b16 %v3416, %v3415
    %v3842 = vpack.c.b16 %v3418, %v3417
    %v3843 = vpack.c.b16 %v3420, %v3419
    %v3844 = vpack.c.b16 %v3422, %v3421
    %v3845 = vpack.c.b16 %v3424, %v3423
    %v3846 = vpack.c.b16 %v3426, %v3425
    %v3847 = vpack.c.b16 %v3428, %v3427
    %v3848 = vpack.c.b16 %v3430, %v3429
    %v3849 = vpack.c.b16 %v3432, %v3431
    %v3850 = vpack.c.b16 %v3434, %v3433
    %v3851 = vpack.c.b16 %v3436, %v3435
    %v3852 = vpack.c.b16 %v3438, %v3437
    %v3853 = vpack.c.b16 %v3440, %v3439
    %v3854 = vpack.c.b16 %v3442, %v3441
    %v3855 = vpack.c.b16 %v3444, %v3443
    %v3856 = vpack.c.b16 %v3446, %v3445
    %v3857 = vpack.c.b16 %v3448, %v3447
    %v3858 = vpack.c.b16 %v3450, %v3449
    %v3859 = vpack.c.b16 %v3452, %v3451
    %v3860 = vpack.c.b16 %v3454, %v3453
    %v3861 = vpack.c.b16 %v3456, %v3455
    %v3862 = vpack.c.b16 %v3458, %v3457
    %v3863 = vpack.c.b16 %v3460, %v3459
    %v3864 = vpack.c.b16 %v3462, %v3461
    %v3865 = vpack.c.b16 %v3464, %v3463
    %v3866 = vpack.c.b16 %v3466, %v3465
    %4267 = vmatprep.subr.bf16.mxu0 0
    %4268 = vmatpush1.bf16.msra.mxu0 %v3467
    %4269 = vmatprep.subr.bf16.mxu0 0
    %4270 = vmatpush1.bf16.msra.mxu0 %v3468
    %4271 = vmatprep.subr.bf16.mxu0 0
    %4272 = vmatpush1.bf16.msra.mxu0 %v3469
    %4273 = vmatprep.subr.bf16.mxu0 0
    %4274 = vmatpush1.bf16.msra.mxu0 %v3470
    %4275 = vmatprep.subr.bf16.mxu0 0
    %4276 = vmatpush1.bf16.msra.mxu0 %v3471
    %4277 = vmatprep.subr.bf16.mxu0 0
    %4278 = vmatpush1.bf16.msra.mxu0 %v3472
    %4279 = vmatprep.subr.bf16.mxu0 0
    %4280 = vmatpush1.bf16.msra.mxu0 %v3473
    %4281 = vmatprep.subr.bf16.mxu0 0
    %4282 = vmatpush1.bf16.msra.mxu0 %v3474
    %4283 = vmatprep.subr.bf16.mxu0 0
    %4284 = vmatpush1.bf16.msra.mxu0 %v3475
    %4285 = vmatprep.subr.bf16.mxu0 0
    %4286 = vmatpush1.bf16.msra.mxu0 %v3476
    %4287 = vmatprep.subr.bf16.mxu0 0
    %4288 = vmatpush1.bf16.msra.mxu0 %v3477
    %4289 = vmatprep.subr.bf16.mxu0 0
    %4290 = vmatpush1.bf16.msra.mxu0 %v3478
    %4291 = vmatprep.subr.bf16.mxu0 0
    %4292 = vmatpush1.bf16.msra.mxu0 %v3479
    %4293 = vmatprep.subr.bf16.mxu0 0
    %4294 = vmatpush1.bf16.msra.mxu0 %v3480
    %4295 = vmatprep.subr.bf16.mxu0 0
    %4296 = vmatpush1.bf16.msra.mxu0 %v3481
    %4297 = vmatprep.subr.bf16.mxu0 0
    %4298 = vmatpush1.bf16.msra.mxu0 %v3482
    %4299 = vmatprep.mubr.bf16.mxu0 %v1067
    %4300 = vmatmul.mubr.bf16.gmra.mrb[0].mxu0 %v1063
    %v4301 = vpop.f32.mrb[0].mxu0
    %v4302 = vadd.f32 %v877, %v4301
    %v4303 = vpop.f32.mrb[0].mxu0
    %v4304 = vpop.f32.mrb[0].mxu0
    %v4305 = vadd.f32 %v877, %v4304
    %v4306 = vpop.f32.mrb[0].mxu0
    %4307 = vdwg.mxu0
    %4308 = vmatprep.subr.bf16.mxu0 0
    %4309 = vmatpush1.bf16.msra.mxu0 %v3483
    %4310 = vmatprep.subr.bf16.mxu0 0
    %4311 = vmatpush1.bf16.msra.mxu0 %v3484
    %4312 = vmatprep.subr.bf16.mxu0 0
    %4313 = vmatpush1.bf16.msra.mxu0 %v3485
    %4314 = vmatprep.subr.bf16.mxu0 0
    %4315 = vmatpush1.bf16.msra.mxu0 %v3486
    %4316 = vmatprep.subr.bf16.mxu0 0
    %4317 = vmatpush1.bf16.msra.mxu0 %v3487
    %4318 = vmatprep.subr.bf16.mxu0 0
    %4319 = vmatpush1.bf16.msra.mxu0 %v3488
    %4320 = vmatprep.subr.bf16.mxu0 0
    %4321 = vmatpush1.bf16.msra.mxu0 %v3489
    %4322 = vmatprep.subr.bf16.mxu0 0
    %4323 = vmatpush1.bf16.msra.mxu0 %v3490
    %4324 = vmatprep.subr.bf16.mxu0 0
    %4325 = vmatpush1.bf16.msra.mxu0 %v3491
    %4326 = vmatprep.subr.bf16.mxu0 0
    %4327 = vmatpush1.bf16.msra.mxu0 %v3492
    %4328 = vmatprep.subr.bf16.mxu0 0
    %4329 = vmatpush1.bf16.msra.mxu0 %v3493
    %4330 = vmatprep.subr.bf16.mxu0 0
    %4331 = vmatpush1.bf16.msra.mxu0 %v3494
    %4332 = vmatprep.subr.bf16.mxu0 0
    %4333 = vmatpush1.bf16.msra.mxu0 %v3495
    %4334 = vmatprep.subr.bf16.mxu0 0
    %4335 = vmatpush1.bf16.msra.mxu0 %v3496
    %4336 = vmatprep.subr.bf16.mxu0 0
    %4337 = vmatpush1.bf16.msra.mxu0 %v3497
    %4338 = vmatprep.subr.bf16.mxu0 0
    %4339 = vmatpush1.bf16.msra.mxu0 %v3498
    %4340 = vmatprep.mubr.bf16.mxu0 %v1068
    %4341 = vmatmul.mubr.bf16.gmra.mrb[0].mxu0 %v1064
    %v4342 = vpop.f32.mrb[0].mxu0
    %v4343 = vadd.f32 %v4302, %v4342
    %v4344 = vpop.f32.mrb[0].mxu0
    %v4345 = vpop.f32.mrb[0].mxu0
    %v4346 = vadd.f32 %v4305, %v4345
    %v4347 = vpop.f32.mrb[0].mxu0
    %4348 = vdwg.mxu0
    %4349 = vmatprep.subr.bf16.mxu0 0
    %4350 = vmatpush1.bf16.msra.mxu0 %v3499
    %4351 = vmatprep.subr.bf16.mxu0 0
    %4352 = vmatpush1.bf16.msra.mxu0 %v3500
    %4353 = vmatprep.subr.bf16.mxu0 0
    %4354 = vmatpush1.bf16.msra.mxu0 %v3501
    %4355 = vmatprep.subr.bf16.mxu0 0
    %4356 = vmatpush1.bf16.msra.mxu0 %v3502
    %4357 = vmatprep.subr.bf16.mxu0 0
    %4358 = vmatpush1.bf16.msra.mxu0 %v3503
    %4359 = vmatprep.subr.bf16.mxu0 0
    %4360 = vmatpush1.bf16.msra.mxu0 %v3504
    %4361 = vmatprep.subr.bf16.mxu0 0
    %4362 = vmatpush1.bf16.msra.mxu0 %v3505
    %4363 = vmatprep.subr.bf16.mxu0 0
    %4364 = vmatpush1.bf16.msra.mxu0 %v3506
    %4365 = vmatprep.subr.bf16.mxu0 0
    %4366 = vmatpush1.bf16.msra.mxu0 %v3507
    %4367 = vmatprep.subr.bf16.mxu0 0
    %4368 = vmatpush1.bf16.msra.mxu0 %v3508
    %4369 = vmatprep.subr.bf16.mxu0 0
    %4370 = vmatpush1.bf16.msra.mxu0 %v3509
    %4371 = vmatprep.subr.bf16.mxu0 0
    %4372 = vmatpush1.bf16.msra.mxu0 %v3510
    %4373 = vmatprep.subr.bf16.mxu0 0
    %4374 = vmatpush1.bf16.msra.mxu0 %v3511
    %4375 = vmatprep.subr.bf16.mxu0 0
    %4376 = vmatpush1.bf16.msra.mxu0 %v3512
    %4377 = vmatprep.subr.bf16.mxu0 0
    %4378 = vmatpush1.bf16.msra.mxu0 %v3513
    %4379 = vmatprep.subr.bf16.mxu0 0
    %4380 = vmatpush1.bf16.msra.mxu0 %v3514
    %4381 = vmatprep.mubr.bf16.mxu0 %v1069
    %4382 = vmatmul.mubr.bf16.gmra.mrb[0].mxu0 %v1065
    %v4383 = vpop.f32.mrb[0].mxu0
    %v4384 = vadd.f32 %v4343, %v4383
    %v4385 = vpop.f32.mrb[0].mxu0
    %v4386 = vpop.f32.mrb[0].mxu0
    %v4387 = vadd.f32 %v4346, %v4386
    %v4388 = vpop.f32.mrb[0].mxu0
    %4389 = vdwg.mxu0
    %4390 = vmatprep.subr.bf16.mxu0 0
    %4391 = vmatpush1.bf16.msra.mxu0 %v3515
    %4392 = vmatprep.subr.bf16.mxu0 0
    %4393 = vmatpush1.bf16.msra.mxu0 %v3516
    %4394 = vmatprep.subr.bf16.mxu0 0
    %4395 = vmatpush1.bf16.msra.mxu0 %v3517
    %4396 = vmatprep.subr.bf16.mxu0 0
    %4397 = vmatpush1.bf16.msra.mxu0 %v3518
    %4398 = vmatprep.subr.bf16.mxu0 0
    %4399 = vmatpush1.bf16.msra.mxu0 %v3519
    %4400 = vmatprep.subr.bf16.mxu0 0
    %4401 = vmatpush1.bf16.msra.mxu0 %v3520
    %4402 = vmatprep.subr.bf16.mxu0 0
    %4403 = vmatpush1.bf16.msra.mxu0 %v3521
    %4404 = vmatprep.subr.bf16.mxu0 0
    %4405 = vmatpush1.bf16.msra.mxu0 %v3522
    %4406 = vmatprep.subr.bf16.mxu0 0
    %4407 = vmatpush1.bf16.msra.mxu0 %v3523
    %4408 = vmatprep.subr.bf16.mxu0 0
    %4409 = vmatpush1.bf16.msra.mxu0 %v3524
    %4410 = vmatprep.subr.bf16.mxu0 0
    %4411 = vmatpush1.bf16.msra.mxu0 %v3525
    %4412 = vmatprep.subr.bf16.mxu0 0
    %4413 = vmatpush1.bf16.msra.mxu0 %v3526
    %4414 = vmatprep.subr.bf16.mxu0 0
    %4415 = vmatpush1.bf16.msra.mxu0 %v3527
    %4416 = vmatprep.subr.bf16.mxu0 0
    %4417 = vmatpush1.bf16.msra.mxu0 %v3528
    %4418 = vmatprep.subr.bf16.mxu0 0
    %4419 = vmatpush1.bf16.msra.mxu0 %v3529
    %4420 = vmatprep.subr.bf16.mxu0 0
    %4421 = vmatpush1.bf16.msra.mxu0 %v3530
    %4422 = vmatprep.mubr.bf16.mxu0 %v1070
    %4423 = vmatmul.mubr.bf16.gmra.mrb[0].mxu0 %v1066
    %v4424 = vpop.f32.mrb[0].mxu0
    %v4425 = vadd.f32 %v4384, %v4424
    %v4426 = vpop.f32.mrb[0].mxu0
    %v4427 = vpop.f32.mrb[0].mxu0
    %v4428 = vadd.f32 %v4387, %v4427
    %v4429 = vpop.f32.mrb[0].mxu0
    %4430 = vdwg.mxu0
    %4431 = vmatprep.subr.bf16.mxu0 0
    %4432 = vmatpush1.bf16.msra.mxu0 %v3531
    %4433 = vmatprep.subr.bf16.mxu0 0
    %4434 = vmatpush1.bf16.msra.mxu0 %v3532
    %4435 = vmatprep.subr.bf16.mxu0 0
    %4436 = vmatpush1.bf16.msra.mxu0 %v3533
    %4437 = vmatprep.subr.bf16.mxu0 0
    %4438 = vmatpush1.bf16.msra.mxu0 %v3534
    %4439 = vmatprep.subr.bf16.mxu0 0
    %4440 = vmatpush1.bf16.msra.mxu0 %v3535
    %4441 = vmatprep.subr.bf16.mxu0 0
    %4442 = vmatpush1.bf16.msra.mxu0 %v3536
    %4443 = vmatprep.subr.bf16.mxu0 0
    %4444 = vmatpush1.bf16.msra.mxu0 %v3537
    %4445 = vmatprep.subr.bf16.mxu0 0
    %4446 = vmatpush1.bf16.msra.mxu0 %v3538
    %4447 = vmatprep.subr.bf16.mxu0 0
    %4448 = vmatpush1.bf16.msra.mxu0 %v3539
    %4449 = vmatprep.subr.bf16.mxu0 0
    %4450 = vmatpush1.bf16.msra.mxu0 %v3540
    %4451 = vmatprep.subr.bf16.mxu0 0
    %4452 = vmatpush1.bf16.msra.mxu0 %v3541
    %4453 = vmatprep.subr.bf16.mxu0 0
    %4454 = vmatpush1.bf16.msra.mxu0 %v3542
    %4455 = vmatprep.subr.bf16.mxu0 0
    %4456 = vmatpush1.bf16.msra.mxu0 %v3543
    %4457 = vmatprep.subr.bf16.mxu0 0
    %4458 = vmatpush1.bf16.msra.mxu0 %v3544
    %4459 = vmatprep.subr.bf16.mxu0 0
    %4460 = vmatpush1.bf16.msra.mxu0 %v3545
    %4461 = vmatprep.subr.bf16.mxu0 0
    %4462 = vmatpush1.bf16.msra.mxu0 %v3546
    %4463 = vmatprep.mubr.bf16.mxu0 %v1203
    %4464 = vmatmul.mubr.bf16.gmra.mrb[0].mxu0 %v1199
    %v4465 = vpop.f32.mrb[0].mxu0
    %v4466 = vadd.f32 %v4425, %v4465
    %v4467 = vpop.f32.mrb[0].mxu0
    %v4468 = vpop.f32.mrb[0].mxu0
    %v4469 = vadd.f32 %v4428, %v4468
    %v4470 = vpop.f32.mrb[0].mxu0
    %4471 = vdwg.mxu0
    %4472 = vmatprep.subr.bf16.mxu0 0
    %4473 = vmatpush1.bf16.msra.mxu0 %v3547
    %4474 = vmatprep.subr.bf16.mxu0 0
    %4475 = vmatpush1.bf16.msra.mxu0 %v3548
    %4476 = vmatprep.subr.bf16.mxu0 0
    %4477 = vmatpush1.bf16.msra.mxu0 %v3549
    %4478 = vmatprep.subr.bf16.mxu0 0
    %4479 = vmatpush1.bf16.msra.mxu0 %v3550
    %4480 = vmatprep.subr.bf16.mxu0 0
    %4481 = vmatpush1.bf16.msra.mxu0 %v3551
    %4482 = vmatprep.subr.bf16.mxu0 0
    %4483 = vmatpush1.bf16.msra.mxu0 %v3552
    %4484 = vmatprep.subr.bf16.mxu0 0
    %4485 = vmatpush1.bf16.msra.mxu0 %v3553
    %4486 = vmatprep.subr.bf16.mxu0 0
    %4487 = vmatpush1.bf16.msra.mxu0 %v3554
    %4488 = vmatprep.subr.bf16.mxu0 0
    %4489 = vmatpush1.bf16.msra.mxu0 %v3555
    %4490 = vmatprep.subr.bf16.mxu0 0
    %4491 = vmatpush1.bf16.msra.mxu0 %v3556
    %4492 = vmatprep.subr.bf16.mxu0 0
    %4493 = vmatpush1.bf16.msra.mxu0 %v3557
    %4494 = vmatprep.subr.bf16.mxu0 0
    %4495 = vmatpush1.bf16.msra.mxu0 %v3558
    %4496 = vmatprep.subr.bf16.mxu0 0
    %4497 = vmatpush1.bf16.msra.mxu0 %v3559
    %4498 = vmatprep.subr.bf16.mxu0 0
    %4499 = vmatpush1.bf16.msra.mxu0 %v3560
    %4500 = vmatprep.subr.bf16.mxu0 0
    %4501 = vmatpush1.bf16.msra.mxu0 %v3561
    %4502 = vmatprep.subr.bf16.mxu0 0
    %4503 = vmatpush1.bf16.msra.mxu0 %v3562
    %4504 = vmatprep.mubr.bf16.mxu0 %v1204
    %4505 = vmatmul.mubr.bf16.gmra.mrb[0].mxu0 %v1200
    %v4506 = vpop.f32.mrb[0].mxu0
    %v4507 = vadd.f32 %v4466, %v4506
    %v4508 = vpop.f32.mrb[0].mxu0
    %v4509 = vpop.f32.mrb[0].mxu0
    %v4510 = vadd.f32 %v4469, %v4509
    %v4511 = vpop.f32.mrb[0].mxu0
    %4512 = vdwg.mxu0
    %4513 = vmatprep.subr.bf16.mxu0 0
    %4514 = vmatpush1.bf16.msra.mxu0 %v3563
    %4515 = vmatprep.subr.bf16.mxu0 0
    %4516 = vmatpush1.bf16.msra.mxu0 %v3564
    %4517 = vmatprep.subr.bf16.mxu0 0
    %4518 = vmatpush1.bf16.msra.mxu0 %v3565
    %4519 = vmatprep.subr.bf16.mxu0 0
    %4520 = vmatpush1.bf16.msra.mxu0 %v3566
    %4521 = vmatprep.subr.bf16.mxu0 0
    %4522 = vmatpush1.bf16.msra.mxu0 %v3567
    %4523 = vmatprep.subr.bf16.mxu0 0
    %4524 = vmatpush1.bf16.msra.mxu0 %v3568
    %4525 = vmatprep.subr.bf16.mxu0 0
    %4526 = vmatpush1.bf16.msra.mxu0 %v3569
    %4527 = vmatprep.subr.bf16.mxu0 0
    %4528 = vmatpush1.bf16.msra.mxu0 %v3570
    %4529 = vmatprep.subr.bf16.mxu0 0
    %4530 = vmatpush1.bf16.msra.mxu0 %v3571
    %4531 = vmatprep.subr.bf16.mxu0 0
    %4532 = vmatpush1.bf16.msra.mxu0 %v3572
    %4533 = vmatprep.subr.bf16.mxu0 0
    %4534 = vmatpush1.bf16.msra.mxu0 %v3573
    %4535 = vmatprep.subr.bf16.mxu0 0
    %4536 = vmatpush1.bf16.msra.mxu0 %v3574
    %4537 = vmatprep.subr.bf16.mxu0 0
    %4538 = vmatpush1.bf16.msra.mxu0 %v3575
    %4539 = vmatprep.subr.bf16.mxu0 0
    %4540 = vmatpush1.bf16.msra.mxu0 %v3576
    %4541 = vmatprep.subr.bf16.mxu0 0
    %4542 = vmatpush1.bf16.msra.mxu0 %v3577
    %4543 = vmatprep.subr.bf16.mxu0 0
    %4544 = vmatpush1.bf16.msra.mxu0 %v3578
    %4545 = vmatprep.mubr.bf16.mxu0 %v1205
    %4546 = vmatmul.mubr.bf16.gmra.mrb[0].mxu0 %v1201
    %v4547 = vpop.f32.mrb[0].mxu0
    %v4548 = vadd.f32 %v4507, %v4547
    %v4549 = vpop.f32.mrb[0].mxu0
    %v4550 = vpop.f32.mrb[0].mxu0
    %v4551 = vadd.f32 %v4510, %v4550
    %v4552 = vpop.f32.mrb[0].mxu0
    %4553 = vdwg.mxu0
    %4554 = vmatprep.subr.bf16.mxu0 0
    %4555 = vmatpush1.bf16.msra.mxu0 %v3579
    %4556 = vmatprep.subr.bf16.mxu0 0
    %4557 = vmatpush1.bf16.msra.mxu0 %v3580
    %4558 = vmatprep.subr.bf16.mxu0 0
    %4559 = vmatpush1.bf16.msra.mxu0 %v3581
    %4560 = vmatprep.subr.bf16.mxu0 0
    %4561 = vmatpush1.bf16.msra.mxu0 %v3582
    %4562 = vmatprep.subr.bf16.mxu0 0
    %4563 = vmatpush1.bf16.msra.mxu0 %v3583
    %4564 = vmatprep.subr.bf16.mxu0 0
    %4565 = vmatpush1.bf16.msra.mxu0 %v3584
    %4566 = vmatprep.subr.bf16.mxu0 0
    %4567 = vmatpush1.bf16.msra.mxu0 %v3585
    %4568 = vmatprep.subr.bf16.mxu0 0
    %4569 = vmatpush1.bf16.msra.mxu0 %v3586
    %4570 = vmatprep.subr.bf16.mxu0 0
    %4571 = vmatpush1.bf16.msra.mxu0 %v3587
    %4572 = vmatprep.subr.bf16.mxu0 0
    %4573 = vmatpush1.bf16.msra.mxu0 %v3588
    %4574 = vmatprep.subr.bf16.mxu0 0
    %4575 = vmatpush1.bf16.msra.mxu0 %v3589
    %4576 = vmatprep.subr.bf16.mxu0 0
    %4577 = vmatpush1.bf16.msra.mxu0 %v3590
    %4578 = vmatprep.subr.bf16.mxu0 0
    %4579 = vmatpush1.bf16.msra.mxu0 %v3591
    %4580 = vmatprep.subr.bf16.mxu0 0
    %4581 = vmatpush1.bf16.msra.mxu0 %v3592
    %4582 = vmatprep.subr.bf16.mxu0 0
    %4583 = vmatpush1.bf16.msra.mxu0 %v3593
    %4584 = vmatprep.subr.bf16.mxu0 0
    %4585 = vmatpush1.bf16.msra.mxu0 %v3594
    %4586 = vmatprep.mubr.bf16.mxu0 %v1206
    %4587 = vmatmul.mubr.bf16.gmra.mrb[0].mxu0 %v1202
    %v4588 = vpop.f32.mrb[0].mxu0
    %v4589 = vadd.f32 %v4548, %v4588
    %v4590 = vpop.f32.mrb[0].mxu0
    %v4591 = vpop.f32.mrb[0].mxu0
    %v4592 = vadd.f32 %v4551, %v4591
    %v4593 = vpop.f32.mrb[0].mxu0
    %4594 = vdwg.mxu0
    %4595 = vmatprep.subr.bf16.mxu0 0
    %4596 = vmatpush1.bf16.msra.mxu0 %v3595
    %4597 = vmatprep.subr.bf16.mxu0 0
    %4598 = vmatpush1.bf16.msra.mxu0 %v3596
    %4599 = vmatprep.subr.bf16.mxu0 0
    %4600 = vmatpush1.bf16.msra.mxu0 %v3597
    %4601 = vmatprep.subr.bf16.mxu0 0
    %4602 = vmatpush1.bf16.msra.mxu0 %v3598
    %4603 = vmatprep.subr.bf16.mxu0 0
    %4604 = vmatpush1.bf16.msra.mxu0 %v3599
    %4605 = vmatprep.subr.bf16.mxu0 0
    %4606 = vmatpush1.bf16.msra.mxu0 %v3600
    %4607 = vmatprep.subr.bf16.mxu0 0
    %4608 = vmatpush1.bf16.msra.mxu0 %v3601
    %4609 = vmatprep.subr.bf16.mxu0 0
    %4610 = vmatpush1.bf16.msra.mxu0 %v3602
    %4611 = vmatprep.subr.bf16.mxu0 0
    %4612 = vmatpush1.bf16.msra.mxu0 %v3603
    %4613 = vmatprep.subr.bf16.mxu0 0
    %4614 = vmatpush1.bf16.msra.mxu0 %v3604
    %4615 = vmatprep.subr.bf16.mxu0 0
    %4616 = vmatpush1.bf16.msra.mxu0 %v3605
    %4617 = vmatprep.subr.bf16.mxu0 0
    %4618 = vmatpush1.bf16.msra.mxu0 %v3606
    %4619 = vmatprep.subr.bf16.mxu0 0
    %4620 = vmatpush1.bf16.msra.mxu0 %v3607
    %4621 = vmatprep.subr.bf16.mxu0 0
    %4622 = vmatpush1.bf16.msra.mxu0 %v3608
    %4623 = vmatprep.subr.bf16.mxu0 0
    %4624 = vmatpush1.bf16.msra.mxu0 %v3609
    %4625 = vmatprep.subr.bf16.mxu0 0
    %4626 = vmatpush1.bf16.msra.mxu0 %v3610
    %4627 = vmatprep.mubr.bf16.mxu0 %v1339
    %4628 = vmatmul.mubr.bf16.gmra.mrb[0].mxu0 %v1335
    %v4629 = vpop.f32.mrb[0].mxu0
    %v4630 = vadd.f32 %v4589, %v4629
    %v4631 = vpop.f32.mrb[0].mxu0
    %v4632 = vpop.f32.mrb[0].mxu0
    %v4633 = vadd.f32 %v4592, %v4632
    %v4634 = vpop.f32.mrb[0].mxu0
    %4635 = vdwg.mxu0
    %4636 = vmatprep.subr.bf16.mxu0 0
    %4637 = vmatpush1.bf16.msra.mxu0 %v3611
    %4638 = vmatprep.subr.bf16.mxu0 0
    %4639 = vmatpush1.bf16.msra.mxu0 %v3612
    %4640 = vmatprep.subr.bf16.mxu0 0
    %4641 = vmatpush1.bf16.msra.mxu0 %v3613
    %4642 = vmatprep.subr.bf16.mxu0 0
    %4643 = vmatpush1.bf16.msra.mxu0 %v3614
    %4644 = vmatprep.subr.bf16.mxu0 0
    %4645 = vmatpush1.bf16.msra.mxu0 %v3615
    %4646 = vmatprep.subr.bf16.mxu0 0
    %4647 = vmatpush1.bf16.msra.mxu0 %v3616
    %4648 = vmatprep.subr.bf16.mxu0 0
    %4649 = vmatpush1.bf16.msra.mxu0 %v3617
    %4650 = vmatprep.subr.bf16.mxu0 0
    %4651 = vmatpush1.bf16.msra.mxu0 %v3618
    %4652 = vmatprep.subr.bf16.mxu0 0
    %4653 = vmatpush1.bf16.msra.mxu0 %v3619
    %4654 = vmatprep.subr.bf16.mxu0 0
    %4655 = vmatpush1.bf16.msra.mxu0 %v3620
    %4656 = vmatprep.subr.bf16.mxu0 0
    %4657 = vmatpush1.bf16.msra.mxu0 %v3621
    %4658 = vmatprep.subr.bf16.mxu0 0
    %4659 = vmatpush1.bf16.msra.mxu0 %v3622
    %4660 = vmatprep.subr.bf16.mxu0 0
    %4661 = vmatpush1.bf16.msra.mxu0 %v3623
    %4662 = vmatprep.subr.bf16.mxu0 0
    %4663 = vmatpush1.bf16.msra.mxu0 %v3624
    %4664 = vmatprep.subr.bf16.mxu0 0
    %4665 = vmatpush1.bf16.msra.mxu0 %v3625
    %4666 = vmatprep.subr.bf16.mxu0 0
    %4667 = vmatpush1.bf16.msra.mxu0 %v3626
    %4668 = vmatprep.mubr.bf16.mxu0 %v1340
    %4669 = vmatmul.mubr.bf16.gmra.mrb[0].mxu0 %v1336
    %v4670 = vpop.f32.mrb[0].mxu0
    %v4671 = vadd.f32 %v4630, %v4670
    %v4672 = vpop.f32.mrb[0].mxu0
    %v4673 = vpop.f32.mrb[0].mxu0
    %v4674 = vadd.f32 %v4633, %v4673
    %v4675 = vpop.f32.mrb[0].mxu0
    %4676 = vdwg.mxu0
    %4677 = vmatprep.subr.bf16.mxu0 0
    %4678 = vmatpush1.bf16.msra.mxu0 %v3627
    %4679 = vmatprep.subr.bf16.mxu0 0
    %4680 = vmatpush1.bf16.msra.mxu0 %v3628
    %4681 = vmatprep.subr.bf16.mxu0 0
    %4682 = vmatpush1.bf16.msra.mxu0 %v3629
    %4683 = vmatprep.subr.bf16.mxu0 0
    %4684 = vmatpush1.bf16.msra.mxu0 %v3630
    %4685 = vmatprep.subr.bf16.mxu0 0
    %4686 = vmatpush1.bf16.msra.mxu0 %v3631
    %4687 = vmatprep.subr.bf16.mxu0 0
    %4688 = vmatpush1.bf16.msra.mxu0 %v3632
    %4689 = vmatprep.subr.bf16.mxu0 0
    %4690 = vmatpush1.bf16.msra.mxu0 %v3633
    %4691 = vmatprep.subr.bf16.mxu0 0
    %4692 = vmatpush1.bf16.msra.mxu0 %v3634
    %4693 = vmatprep.subr.bf16.mxu0 0
    %4694 = vmatpush1.bf16.msra.mxu0 %v3635
    %4695 = vmatprep.subr.bf16.mxu0 0
    %4696 = vmatpush1.bf16.msra.mxu0 %v3636
    %4697 = vmatprep.subr.bf16.mxu0 0
    %4698 = vmatpush1.bf16.msra.mxu0 %v3637
    %4699 = vmatprep.subr.bf16.mxu0 0
    %4700 = vmatpush1.bf16.msra.mxu0 %v3638
    %4701 = vmatprep.subr.bf16.mxu0 0
    %4702 = vmatpush1.bf16.msra.mxu0 %v3639
    %4703 = vmatprep.subr.bf16.mxu0 0
    %4704 = vmatpush1.bf16.msra.mxu0 %v3640
    %4705 = vmatprep.subr.bf16.mxu0 0
    %4706 = vmatpush1.bf16.msra.mxu0 %v3641
    %4707 = vmatprep.subr.bf16.mxu0 0
    %4708 = vmatpush1.bf16.msra.mxu0 %v3642
    %4709 = vmatprep.mubr.bf16.mxu0 %v1341
    %4710 = vmatmul.mubr.bf16.gmra.mrb[0].mxu0 %v1337
    %v4711 = vpop.f32.mrb[0].mxu0
    %v4712 = vadd.f32 %v4671, %v4711
    %v4713 = vpop.f32.mrb[0].mxu0
    %v4714 = vpop.f32.mrb[0].mxu0
    %v4715 = vadd.f32 %v4674, %v4714
    %v4716 = vpop.f32.mrb[0].mxu0
    %4717 = vdwg.mxu0
    %4718 = vmatprep.subr.bf16.mxu0 0
    %4719 = vmatpush1.bf16.msra.mxu0 %v3643
    %4720 = vmatprep.subr.bf16.mxu0 0
    %4721 = vmatpush1.bf16.msra.mxu0 %v3644
    %4722 = vmatprep.subr.bf16.mxu0 0
    %4723 = vmatpush1.bf16.msra.mxu0 %v3645
    %4724 = vmatprep.subr.bf16.mxu0 0
    %4725 = vmatpush1.bf16.msra.mxu0 %v3646
    %4726 = vmatprep.subr.bf16.mxu0 0
    %4727 = vmatpush1.bf16.msra.mxu0 %v3647
    %4728 = vmatprep.subr.bf16.mxu0 0
    %4729 = vmatpush1.bf16.msra.mxu0 %v3648
    %4730 = vmatprep.subr.bf16.mxu0 0
    %4731 = vmatpush1.bf16.msra.mxu0 %v3649
    %4732 = vmatprep.subr.bf16.mxu0 0
    %4733 = vmatpush1.bf16.msra.mxu0 %v3650
    %4734 = vmatprep.subr.bf16.mxu0 0
    %4735 = vmatpush1.bf16.msra.mxu0 %v3651
    %4736 = vmatprep.subr.bf16.mxu0 0
    %4737 = vmatpush1.bf16.msra.mxu0 %v3652
    %4738 = vmatprep.subr.bf16.mxu0 0
    %4739 = vmatpush1.bf16.msra.mxu0 %v3653
    %4740 = vmatprep.subr.bf16.mxu0 0
    %4741 = vmatpush1.bf16.msra.mxu0 %v3654
    %4742 = vmatprep.subr.bf16.mxu0 0
    %4743 = vmatpush1.bf16.msra.mxu0 %v3655
    %4744 = vmatprep.subr.bf16.mxu0 0
    %4745 = vmatpush1.bf16.msra.mxu0 %v3656
    %4746 = vmatprep.subr.bf16.mxu0 0
    %4747 = vmatpush1.bf16.msra.mxu0 %v3657
    %4748 = vmatprep.subr.bf16.mxu0 0
    %4749 = vmatpush1.bf16.msra.mxu0 %v3658
    %4750 = vmatprep.mubr.bf16.mxu0 %v1342
    %4751 = vmatmul.mubr.bf16.gmra.mrb[0].mxu0 %v1338
    %v4752 = vpop.f32.mrb[0].mxu0
    %v4753 = vadd.f32 %v4712, %v4752
    %v4754 = vpop.f32.mrb[0].mxu0
    %v4755 = vpop.f32.mrb[0].mxu0
    %v4756 = vadd.f32 %v4715, %v4755
    %v4757 = vpop.f32.mrb[0].mxu0
    %4758 = vdwg.mxu0
    %4759 = vmatprep.subr.bf16.mxu0 0
    %4760 = vmatpush1.bf16.msra.mxu0 %v3659
    %4761 = vmatprep.subr.bf16.mxu0 0
    %4762 = vmatpush1.bf16.msra.mxu0 %v3660
    %4763 = vmatprep.subr.bf16.mxu0 0
    %4764 = vmatpush1.bf16.msra.mxu0 %v3661
    %4765 = vmatprep.subr.bf16.mxu0 0
    %4766 = vmatpush1.bf16.msra.mxu0 %v3662
    %4767 = vmatprep.subr.bf16.mxu0 0
    %4768 = vmatpush1.bf16.msra.mxu0 %v3663
    %4769 = vmatprep.subr.bf16.mxu0 0
    %4770 = vmatpush1.bf16.msra.mxu0 %v3664
    %4771 = vmatprep.subr.bf16.mxu0 0
    %4772 = vmatpush1.bf16.msra.mxu0 %v3665
    %4773 = vmatprep.subr.bf16.mxu0 0
    %4774 = vmatpush1.bf16.msra.mxu0 %v3666
    %4775 = vmatprep.subr.bf16.mxu0 0
    %4776 = vmatpush1.bf16.msra.mxu0 %v3667
    %4777 = vmatprep.subr.bf16.mxu0 0
    %4778 = vmatpush1.bf16.msra.mxu0 %v3668
    %4779 = vmatprep.subr.bf16.mxu0 0
    %4780 = vmatpush1.bf16.msra.mxu0 %v3669
    %4781 = vmatprep.subr.bf16.mxu0 0
    %4782 = vmatpush1.bf16.msra.mxu0 %v3670
    %4783 = vmatprep.subr.bf16.mxu0 0
    %4784 = vmatpush1.bf16.msra.mxu0 %v3671
    %4785 = vmatprep.subr.bf16.mxu0 0
    %4786 = vmatpush1.bf16.msra.mxu0 %v3672
    %4787 = vmatprep.subr.bf16.mxu0 0
    %4788 = vmatpush1.bf16.msra.mxu0 %v3673
    %4789 = vmatprep.subr.bf16.mxu0 0
    %4790 = vmatpush1.bf16.msra.mxu0 %v3674
    %4791 = vmatprep.mubr.bf16.mxu0 %v1475
    %4792 = vmatmul.mubr.bf16.gmra.mrb[0].mxu0 %v1471
    %v4793 = vpop.f32.mrb[0].mxu0
    %v4794 = vadd.f32 %v4753, %v4793
    %v4795 = vpop.f32.mrb[0].mxu0
    %v4796 = vpop.f32.mrb[0].mxu0
    %v4797 = vadd.f32 %v4756, %v4796
    %v4798 = vpop.f32.mrb[0].mxu0
    %4799 = vdwg.mxu0
    %4800 = vmatprep.subr.bf16.mxu0 0
    %4801 = vmatpush1.bf16.msra.mxu0 %v3675
    %4802 = vmatprep.subr.bf16.mxu0 0
    %4803 = vmatpush1.bf16.msra.mxu0 %v3676
    %4804 = vmatprep.subr.bf16.mxu0 0
    %4805 = vmatpush1.bf16.msra.mxu0 %v3677
    %4806 = vmatprep.subr.bf16.mxu0 0
    %4807 = vmatpush1.bf16.msra.mxu0 %v3678
    %4808 = vmatprep.subr.bf16.mxu0 0
    %4809 = vmatpush1.bf16.msra.mxu0 %v3679
    %4810 = vmatprep.subr.bf16.mxu0 0
    %4811 = vmatpush1.bf16.msra.mxu0 %v3680
    %4812 = vmatprep.subr.bf16.mxu0 0
    %4813 = vmatpush1.bf16.msra.mxu0 %v3681
    %4814 = vmatprep.subr.bf16.mxu0 0
    %4815 = vmatpush1.bf16.msra.mxu0 %v3682
    %4816 = vmatprep.subr.bf16.mxu0 0
    %4817 = vmatpush1.bf16.msra.mxu0 %v3683
    %4818 = vmatprep.subr.bf16.mxu0 0
    %4819 = vmatpush1.bf16.msra.mxu0 %v3684
    %4820 = vmatprep.subr.bf16.mxu0 0
    %4821 = vmatpush1.bf16.msra.mxu0 %v3685
    %4822 = vmatprep.subr.bf16.mxu0 0
    %4823 = vmatpush1.bf16.msra.mxu0 %v3686
    %4824 = vmatprep.subr.bf16.mxu0 0
    %4825 = vmatpush1.bf16.msra.mxu0 %v3687
    %4826 = vmatprep.subr.bf16.mxu0 0
    %4827 = vmatpush1.bf16.msra.mxu0 %v3688
    %4828 = vmatprep.subr.bf16.mxu0 0
    %4829 = vmatpush1.bf16.msra.mxu0 %v3689
    %4830 = vmatprep.subr.bf16.mxu0 0
    %4831 = vmatpush1.bf16.msra.mxu0 %v3690
    %4832 = vmatprep.mubr.bf16.mxu0 %v1476
    %4833 = vmatmul.mubr.bf16.gmra.mrb[0].mxu0 %v1472
    %v4834 = vpop.f32.mrb[0].mxu0
    %v4835 = vadd.f32 %v4794, %v4834
    %v4836 = vpop.f32.mrb[0].mxu0
    %v4837 = vpop.f32.mrb[0].mxu0
    %v4838 = vadd.f32 %v4797, %v4837
    %v4839 = vpop.f32.mrb[0].mxu0
    %4840 = vdwg.mxu0
    %4841 = vmatprep.subr.bf16.mxu0 0
    %4842 = vmatpush1.bf16.msra.mxu0 %v3691
    %4843 = vmatprep.subr.bf16.mxu0 0
    %4844 = vmatpush1.bf16.msra.mxu0 %v3692
    %4845 = vmatprep.subr.bf16.mxu0 0
    %4846 = vmatpush1.bf16.msra.mxu0 %v3693
    %4847 = vmatprep.subr.bf16.mxu0 0
    %4848 = vmatpush1.bf16.msra.mxu0 %v3694
    %4849 = vmatprep.subr.bf16.mxu0 0
    %4850 = vmatpush1.bf16.msra.mxu0 %v3695
    %4851 = vmatprep.subr.bf16.mxu0 0
    %4852 = vmatpush1.bf16.msra.mxu0 %v3696
    %4853 = vmatprep.subr.bf16.mxu0 0
    %4854 = vmatpush1.bf16.msra.mxu0 %v3697
    %4855 = vmatprep.subr.bf16.mxu0 0
    %4856 = vmatpush1.bf16.msra.mxu0 %v3698
    %4857 = vmatprep.subr.bf16.mxu0 0
    %4858 = vmatpush1.bf16.msra.mxu0 %v3699
    %4859 = vmatprep.subr.bf16.mxu0 0
    %4860 = vmatpush1.bf16.msra.mxu0 %v3700
    %4861 = vmatprep.subr.bf16.mxu0 0
    %4862 = vmatpush1.bf16.msra.mxu0 %v3701
    %4863 = vmatprep.subr.bf16.mxu0 0
    %4864 = vmatpush1.bf16.msra.mxu0 %v3702
    %4865 = vmatprep.subr.bf16.mxu0 0
    %4866 = vmatpush1.bf16.msra.mxu0 %v3703
    %4867 = vmatprep.subr.bf16.mxu0 0
    %4868 = vmatpush1.bf16.msra.mxu0 %v3704
    %4869 = vmatprep.subr.bf16.mxu0 0
    %4870 = vmatpush1.bf16.msra.mxu0 %v3705
    %4871 = vmatprep.subr.bf16.mxu0 0
    %4872 = vmatpush1.bf16.msra.mxu0 %v3706
    %4873 = vmatprep.mubr.bf16.mxu0 %v1477
    %4874 = vmatmul.mubr.bf16.gmra.mrb[0].mxu0 %v1473
    %v4875 = vpop.f32.mrb[0].mxu0
    %v4876 = vadd.f32 %v4835, %v4875
    %v4877 = vpop.f32.mrb[0].mxu0
    %v4878 = vpop.f32.mrb[0].mxu0
    %v4879 = vadd.f32 %v4838, %v4878
    %v4880 = vpop.f32.mrb[0].mxu0
    %4881 = vdwg.mxu0
    %4882 = vmatprep.subr.bf16.mxu0 0
    %4883 = vmatpush1.bf16.msra.mxu0 %v3707
    %4884 = vmatprep.subr.bf16.mxu0 0
    %4885 = vmatpush1.bf16.msra.mxu0 %v3708
    %4886 = vmatprep.subr.bf16.mxu0 0
    %4887 = vmatpush1.bf16.msra.mxu0 %v3709
    %4888 = vmatprep.subr.bf16.mxu0 0
    %4889 = vmatpush1.bf16.msra.mxu0 %v3710
    %4890 = vmatprep.subr.bf16.mxu0 0
    %4891 = vmatpush1.bf16.msra.mxu0 %v3711
    %4892 = vmatprep.subr.bf16.mxu0 0
    %4893 = vmatpush1.bf16.msra.mxu0 %v3712
    %4894 = vmatprep.subr.bf16.mxu0 0
    %4895 = vmatpush1.bf16.msra.mxu0 %v3713
    %4896 = vmatprep.subr.bf16.mxu0 0
    %4897 = vmatpush1.bf16.msra.mxu0 %v3714
    %4898 = vmatprep.subr.bf16.mxu0 0
    %4899 = vmatpush1.bf16.msra.mxu0 %v3715
    %4900 = vmatprep.subr.bf16.mxu0 0
    %4901 = vmatpush1.bf16.msra.mxu0 %v3716
    %4902 = vmatprep.subr.bf16.mxu0 0
    %4903 = vmatpush1.bf16.msra.mxu0 %v3717
    %4904 = vmatprep.subr.bf16.mxu0 0
    %4905 = vmatpush1.bf16.msra.mxu0 %v3718
    %4906 = vmatprep.subr.bf16.mxu0 0
    %4907 = vmatpush1.bf16.msra.mxu0 %v3719
    %4908 = vmatprep.subr.bf16.mxu0 0
    %4909 = vmatpush1.bf16.msra.mxu0 %v3720
    %4910 = vmatprep.subr.bf16.mxu0 0
    %4911 = vmatpush1.bf16.msra.mxu0 %v3721
    %4912 = vmatprep.subr.bf16.mxu0 0
    %4913 = vmatpush1.bf16.msra.mxu0 %v3722
    %4914 = vmatprep.mubr.bf16.mxu0 %v1478
    %4915 = vmatmul.mubr.bf16.gmra.mrb[0].mxu0 %v1474
    %v4916 = vpop.f32.mrb[0].mxu0
    %v4917 = vadd.f32 %v4876, %v4916
    %v4918 = vpop.f32.mrb[0].mxu0
    %v4919 = vpop.f32.mrb[0].mxu0
    %v4920 = vadd.f32 %v4879, %v4919
    %v4921 = vpop.f32.mrb[0].mxu0
    %4922 = vdwg.mxu0
    %4923 = vmatprep.subr.bf16.mxu0 0
    %4924 = vmatpush1.bf16.msra.mxu0 %v3723
    %4925 = vmatprep.subr.bf16.mxu0 0
    %4926 = vmatpush1.bf16.msra.mxu0 %v3724
    %4927 = vmatprep.subr.bf16.mxu0 0
    %4928 = vmatpush1.bf16.msra.mxu0 %v3725
    %4929 = vmatprep.subr.bf16.mxu0 0
    %4930 = vmatpush1.bf16.msra.mxu0 %v3726
    %4931 = vmatprep.subr.bf16.mxu0 0
    %4932 = vmatpush1.bf16.msra.mxu0 %v3727
    %4933 = vmatprep.subr.bf16.mxu0 0
    %4934 = vmatpush1.bf16.msra.mxu0 %v3728
    %4935 = vmatprep.subr.bf16.mxu0 0
    %4936 = vmatpush1.bf16.msra.mxu0 %v3729
    %4937 = vmatprep.subr.bf16.mxu0 0
    %4938 = vmatpush1.bf16.msra.mxu0 %v3730
    %4939 = vmatprep.subr.bf16.mxu0 0
    %4940 = vmatpush1.bf16.msra.mxu0 %v3731
    %4941 = vmatprep.subr.bf16.mxu0 0
    %4942 = vmatpush1.bf16.msra.mxu0 %v3732
    %4943 = vmatprep.subr.bf16.mxu0 0
    %4944 = vmatpush1.bf16.msra.mxu0 %v3733
    %4945 = vmatprep.subr.bf16.mxu0 0
    %4946 = vmatpush1.bf16.msra.mxu0 %v3734
    %4947 = vmatprep.subr.bf16.mxu0 0
    %4948 = vmatpush1.bf16.msra.mxu0 %v3735
    %4949 = vmatprep.subr.bf16.mxu0 0
    %4950 = vmatpush1.bf16.msra.mxu0 %v3736
    %4951 = vmatprep.subr.bf16.mxu0 0
    %4952 = vmatpush1.bf16.msra.mxu0 %v3737
    %4953 = vmatprep.subr.bf16.mxu0 0
    %4954 = vmatpush1.bf16.msra.mxu0 %v3738
    %4955 = vmatprep.mubr.bf16.mxu0 %v1611
    %4956 = vmatmul.mubr.bf16.gmra.mrb[0].mxu0 %v1607
    %v4957 = vpop.f32.mrb[0].mxu0
    %v4958 = vadd.f32 %v4917, %v4957
    %v4959 = vpop.f32.mrb[0].mxu0
    %v4960 = vpop.f32.mrb[0].mxu0
    %v4961 = vadd.f32 %v4920, %v4960
    %v4962 = vpop.f32.mrb[0].mxu0
    %4963 = vdwg.mxu0
    %4964 = vmatprep.subr.bf16.mxu0 0
    %4965 = vmatpush1.bf16.msra.mxu0 %v3739
    %4966 = vmatprep.subr.bf16.mxu0 0
    %4967 = vmatpush1.bf16.msra.mxu0 %v3740
    %4968 = vmatprep.subr.bf16.mxu0 0
    %4969 = vmatpush1.bf16.msra.mxu0 %v3741
    %4970 = vmatprep.subr.bf16.mxu0 0
    %4971 = vmatpush1.bf16.msra.mxu0 %v3742
    %4972 = vmatprep.subr.bf16.mxu0 0
    %4973 = vmatpush1.bf16.msra.mxu0 %v3743
    %4974 = vmatprep.subr.bf16.mxu0 0
    %4975 = vmatpush1.bf16.msra.mxu0 %v3744
    %4976 = vmatprep.subr.bf16.mxu0 0
    %4977 = vmatpush1.bf16.msra.mxu0 %v3745
    %4978 = vmatprep.subr.bf16.mxu0 0
    %4979 = vmatpush1.bf16.msra.mxu0 %v3746
    %4980 = vmatprep.subr.bf16.mxu0 0
    %4981 = vmatpush1.bf16.msra.mxu0 %v3747
    %4982 = vmatprep.subr.bf16.mxu0 0
    %4983 = vmatpush1.bf16.msra.mxu0 %v3748
    %4984 = vmatprep.subr.bf16.mxu0 0
    %4985 = vmatpush1.bf16.msra.mxu0 %v3749
    %4986 = vmatprep.subr.bf16.mxu0 0
    %4987 = vmatpush1.bf16.msra.mxu0 %v3750
    %4988 = vmatprep.subr.bf16.mxu0 0
    %4989 = vmatpush1.bf16.msra.mxu0 %v3751
    %4990 = vmatprep.subr.bf16.mxu0 0
    %4991 = vmatpush1.bf16.msra.mxu0 %v3752
    %4992 = vmatprep.subr.bf16.mxu0 0
    %4993 = vmatpush1.bf16.msra.mxu0 %v3753
    %4994 = vmatprep.subr.bf16.mxu0 0
    %4995 = vmatpush1.bf16.msra.mxu0 %v3754
    %4996 = vmatprep.mubr.bf16.mxu0 %v1612
    %4997 = vmatmul.mubr.bf16.gmra.mrb[0].mxu0 %v1608
    %v4998 = vpop.f32.mrb[0].mxu0
    %v4999 = vadd.f32 %v4958, %v4998
    %v5000 = vpop.f32.mrb[0].mxu0
    %v5001 = vpop.f32.mrb[0].mxu0
    %v5002 = vadd.f32 %v4961, %v5001
    %v5003 = vpop.f32.mrb[0].mxu0
    %5004 = vdwg.mxu0
    %5005 = vmatprep.subr.bf16.mxu0 0
    %5006 = vmatpush1.bf16.msra.mxu0 %v3755
    %5007 = vmatprep.subr.bf16.mxu0 0
    %5008 = vmatpush1.bf16.msra.mxu0 %v3756
    %5009 = vmatprep.subr.bf16.mxu0 0
    %5010 = vmatpush1.bf16.msra.mxu0 %v3757
    %5011 = vmatprep.subr.bf16.mxu0 0
    %5012 = vmatpush1.bf16.msra.mxu0 %v3758
    %5013 = vmatprep.subr.bf16.mxu0 0
    %5014 = vmatpush1.bf16.msra.mxu0 %v3759
    %5015 = vmatprep.subr.bf16.mxu0 0
    %5016 = vmatpush1.bf16.msra.mxu0 %v3760
    %5017 = vmatprep.subr.bf16.mxu0 0
    %5018 = vmatpush1.bf16.msra.mxu0 %v3761
    %5019 = vmatprep.subr.bf16.mxu0 0
    %5020 = vmatpush1.bf16.msra.mxu0 %v3762
    %5021 = vmatprep.subr.bf16.mxu0 0
    %5022 = vmatpush1.bf16.msra.mxu0 %v3763
    %5023 = vmatprep.subr.bf16.mxu0 0
    %5024 = vmatpush1.bf16.msra.mxu0 %v3764
    %5025 = vmatprep.subr.bf16.mxu0 0
    %5026 = vmatpush1.bf16.msra.mxu0 %v3765
    %5027 = vmatprep.subr.bf16.mxu0 0
    %5028 = vmatpush1.bf16.msra.mxu0 %v3766
    %5029 = vmatprep.subr.bf16.mxu0 0
    %5030 = vmatpush1.bf16.msra.mxu0 %v3767
    %5031 = vmatprep.subr.bf16.mxu0 0
    %5032 = vmatpush1.bf16.msra.mxu0 %v3768
    %5033 = vmatprep.subr.bf16.mxu0 0
    %5034 = vmatpush1.bf16.msra.mxu0 %v3769
    %5035 = vmatprep.subr.bf16.mxu0 0
    %5036 = vmatpush1.bf16.msra.mxu0 %v3770
    %5037 = vmatprep.mubr.bf16.mxu0 %v1613
    %5038 = vmatmul.mubr.bf16.gmra.mrb[0].mxu0 %v1609
    %v5039 = vpop.f32.mrb[0].mxu0
    %v5040 = vadd.f32 %v4999, %v5039
    %v5041 = vpop.f32.mrb[0].mxu0
    %v5042 = vpop.f32.mrb[0].mxu0
    %v5043 = vadd.f32 %v5002, %v5042
    %v5044 = vpop.f32.mrb[0].mxu0
    %5045 = vdwg.mxu0
    %5046 = vmatprep.subr.bf16.mxu0 0
    %5047 = vmatpush1.bf16.msra.mxu0 %v3771
    %5048 = vmatprep.subr.bf16.mxu0 0
    %5049 = vmatpush1.bf16.msra.mxu0 %v3772
    %5050 = vmatprep.subr.bf16.mxu0 0
    %5051 = vmatpush1.bf16.msra.mxu0 %v3773
    %5052 = vmatprep.subr.bf16.mxu0 0
    %5053 = vmatpush1.bf16.msra.mxu0 %v3774
    %5054 = vmatprep.subr.bf16.mxu0 0
    %5055 = vmatpush1.bf16.msra.mxu0 %v3775
    %5056 = vmatprep.subr.bf16.mxu0 0
    %5057 = vmatpush1.bf16.msra.mxu0 %v3776
    %5058 = vmatprep.subr.bf16.mxu0 0
    %5059 = vmatpush1.bf16.msra.mxu0 %v3777
    %5060 = vmatprep.subr.bf16.mxu0 0
    %5061 = vmatpush1.bf16.msra.mxu0 %v3778
    %5062 = vmatprep.subr.bf16.mxu0 0
    %5063 = vmatpush1.bf16.msra.mxu0 %v3779
    %5064 = vmatprep.subr.bf16.mxu0 0
    %5065 = vmatpush1.bf16.msra.mxu0 %v3780
    %5066 = vmatprep.subr.bf16.mxu0 0
    %5067 = vmatpush1.bf16.msra.mxu0 %v3781
    %5068 = vmatprep.subr.bf16.mxu0 0
    %5069 = vmatpush1.bf16.msra.mxu0 %v3782
    %5070 = vmatprep.subr.bf16.mxu0 0
    %5071 = vmatpush1.bf16.msra.mxu0 %v3783
    %5072 = vmatprep.subr.bf16.mxu0 0
    %5073 = vmatpush1.bf16.msra.mxu0 %v3784
    %5074 = vmatprep.subr.bf16.mxu0 0
    %5075 = vmatpush1.bf16.msra.mxu0 %v3785
    %5076 = vmatprep.subr.bf16.mxu0 0
    %5077 = vmatpush1.bf16.msra.mxu0 %v3786
    %5078 = vmatprep.mubr.bf16.mxu0 %v1614
    %5079 = vmatmul.mubr.bf16.gmra.mrb[0].mxu0 %v1610
    %v5080 = vpop.f32.mrb[0].mxu0
    %v5081 = vadd.f32 %v5040, %v5080
    %v5082 = vpop.f32.mrb[0].mxu0
    %v5083 = vpop.f32.mrb[0].mxu0
    %v5084 = vadd.f32 %v5043, %v5083
    %v5085 = vpop.f32.mrb[0].mxu0
    %5086 = vdwg.mxu0
    %5087 = vmatprep.subr.bf16.mxu0 0
    %5088 = vmatpush1.bf16.msra.mxu0 %v3787
    %5089 = vmatprep.subr.bf16.mxu0 0
    %5090 = vmatpush1.bf16.msra.mxu0 %v3788
    %5091 = vmatprep.subr.bf16.mxu0 0
    %5092 = vmatpush1.bf16.msra.mxu0 %v3789
    %5093 = vmatprep.subr.bf16.mxu0 0
    %5094 = vmatpush1.bf16.msra.mxu0 %v3790
    %5095 = vmatprep.subr.bf16.mxu0 0
    %5096 = vmatpush1.bf16.msra.mxu0 %v3791
    %5097 = vmatprep.subr.bf16.mxu0 0
    %5098 = vmatpush1.bf16.msra.mxu0 %v3792
    %5099 = vmatprep.subr.bf16.mxu0 0
    %5100 = vmatpush1.bf16.msra.mxu0 %v3793
    %5101 = vmatprep.subr.bf16.mxu0 0
    %5102 = vmatpush1.bf16.msra.mxu0 %v3794
    %5103 = vmatprep.subr.bf16.mxu0 0
    %5104 = vmatpush1.bf16.msra.mxu0 %v3795
    %5105 = vmatprep.subr.bf16.mxu0 0
    %5106 = vmatpush1.bf16.msra.mxu0 %v3796
    %5107 = vmatprep.subr.bf16.mxu0 0
    %5108 = vmatpush1.bf16.msra.mxu0 %v3797
    %5109 = vmatprep.subr.bf16.mxu0 0
    %5110 = vmatpush1.bf16.msra.mxu0 %v3798
    %5111 = vmatprep.subr.bf16.mxu0 0
    %5112 = vmatpush1.bf16.msra.mxu0 %v3799
    %5113 = vmatprep.subr.bf16.mxu0 0
    %5114 = vmatpush1.bf16.msra.mxu0 %v3800
    %5115 = vmatprep.subr.bf16.mxu0 0
    %5116 = vmatpush1.bf16.msra.mxu0 %v3801
    %5117 = vmatprep.subr.bf16.mxu0 0
    %5118 = vmatpush1.bf16.msra.mxu0 %v3802
    %5119 = vmatprep.mubr.bf16.mxu0 %v1747
    %5120 = vmatmul.mubr.bf16.gmra.mrb[0].mxu0 %v1743
    %v5121 = vpop.f32.mrb[0].mxu0
    %v5122 = vadd.f32 %v5081, %v5121
    %v5123 = vpop.f32.mrb[0].mxu0
    %v5124 = vpop.f32.mrb[0].mxu0
    %v5125 = vadd.f32 %v5084, %v5124
    %v5126 = vpop.f32.mrb[0].mxu0
    %5127 = vdwg.mxu0
    %5128 = vmatprep.subr.bf16.mxu0 0
    %5129 = vmatpush1.bf16.msra.mxu0 %v3803
    %5130 = vmatprep.subr.bf16.mxu0 0
    %5131 = vmatpush1.bf16.msra.mxu0 %v3804
    %5132 = vmatprep.subr.bf16.mxu0 0
    %5133 = vmatpush1.bf16.msra.mxu0 %v3805
    %5134 = vmatprep.subr.bf16.mxu0 0
    %5135 = vmatpush1.bf16.msra.mxu0 %v3806
    %5136 = vmatprep.subr.bf16.mxu0 0
    %5137 = vmatpush1.bf16.msra.mxu0 %v3807
    %5138 = vmatprep.subr.bf16.mxu0 0
    %5139 = vmatpush1.bf16.msra.mxu0 %v3808
    %5140 = vmatprep.subr.bf16.mxu0 0
    %5141 = vmatpush1.bf16.msra.mxu0 %v3809
    %5142 = vmatprep.subr.bf16.mxu0 0
    %5143 = vmatpush1.bf16.msra.mxu0 %v3810
    %5144 = vmatprep.subr.bf16.mxu0 0
    %5145 = vmatpush1.bf16.msra.mxu0 %v3811
    %5146 = vmatprep.subr.bf16.mxu0 0
    %5147 = vmatpush1.bf16.msra.mxu0 %v3812
    %5148 = vmatprep.subr.bf16.mxu0 0
    %5149 = vmatpush1.bf16.msra.mxu0 %v3813
    %5150 = vmatprep.subr.bf16.mxu0 0
    %5151 = vmatpush1.bf16.msra.mxu0 %v3814
    %5152 = vmatprep.subr.bf16.mxu0 0
    %5153 = vmatpush1.bf16.msra.mxu0 %v3815
    %5154 = vmatprep.subr.bf16.mxu0 0
    %5155 = vmatpush1.bf16.msra.mxu0 %v3816
    %5156 = vmatprep.subr.bf16.mxu0 0
    %5157 = vmatpush1.bf16.msra.mxu0 %v3817
    %5158 = vmatprep.subr.bf16.mxu0 0
    %5159 = vmatpush1.bf16.msra.mxu0 %v3818
    %5160 = vmatprep.mubr.bf16.mxu0 %v1748
    %5161 = vmatmul.mubr.bf16.gmra.mrb[0].mxu0 %v1744
    %v5162 = vpop.f32.mrb[0].mxu0
    %v5163 = vadd.f32 %v5122, %v5162
    %v5164 = vpop.f32.mrb[0].mxu0
    %v5165 = vpop.f32.mrb[0].mxu0
    %v5166 = vadd.f32 %v5125, %v5165
    %v5167 = vpop.f32.mrb[0].mxu0
    %5168 = vdwg.mxu0
    %5169 = vmatprep.subr.bf16.mxu0 0
    %5170 = vmatpush1.bf16.msra.mxu0 %v3819
    %5171 = vmatprep.subr.bf16.mxu0 0
    %5172 = vmatpush1.bf16.msra.mxu0 %v3820
    %5173 = vmatprep.subr.bf16.mxu0 0
    %5174 = vmatpush1.bf16.msra.mxu0 %v3821
    %5175 = vmatprep.subr.bf16.mxu0 0
    %5176 = vmatpush1.bf16.msra.mxu0 %v3822
    %5177 = vmatprep.subr.bf16.mxu0 0
    %5178 = vmatpush1.bf16.msra.mxu0 %v3823
    %5179 = vmatprep.subr.bf16.mxu0 0
    %5180 = vmatpush1.bf16.msra.mxu0 %v3824
    %5181 = vmatprep.subr.bf16.mxu0 0
    %5182 = vmatpush1.bf16.msra.mxu0 %v3825
    %5183 = vmatprep.subr.bf16.mxu0 0
    %5184 = vmatpush1.bf16.msra.mxu0 %v3826
    %5185 = vmatprep.subr.bf16.mxu0 0
    %5186 = vmatpush1.bf16.msra.mxu0 %v3827
    %5187 = vmatprep.subr.bf16.mxu0 0
    %5188 = vmatpush1.bf16.msra.mxu0 %v3828
    %5189 = vmatprep.subr.bf16.mxu0 0
    %5190 = vmatpush1.bf16.msra.mxu0 %v3829
    %5191 = vmatprep.subr.bf16.mxu0 0
    %5192 = vmatpush1.bf16.msra.mxu0 %v3830
    %5193 = vmatprep.subr.bf16.mxu0 0
    %5194 = vmatpush1.bf16.msra.mxu0 %v3831
    %5195 = vmatprep.subr.bf16.mxu0 0
    %5196 = vmatpush1.bf16.msra.mxu0 %v3832
    %5197 = vmatprep.subr.bf16.mxu0 0
    %5198 = vmatpush1.bf16.msra.mxu0 %v3833
    %5199 = vmatprep.subr.bf16.mxu0 0
    %5200 = vmatpush1.bf16.msra.mxu0 %v3834
    %5201 = vmatprep.mubr.bf16.mxu0 %v1749
    %5202 = vmatmul.mubr.bf16.gmra.mrb[0].mxu0 %v1745
    %v5203 = vpop.f32.mrb[0].mxu0
    %v5204 = vadd.f32 %v5163, %v5203
    %v5205 = vpop.f32.mrb[0].mxu0
    %v5206 = vpop.f32.mrb[0].mxu0
    %v5207 = vadd.f32 %v5166, %v5206
    %v5208 = vpop.f32.mrb[0].mxu0
    %5209 = vdwg.mxu0
    %5210 = vmatprep.subr.bf16.mxu0 0
    %5211 = vmatpush1.bf16.msra.mxu0 %v3835
    %5212 = vmatprep.subr.bf16.mxu0 0
    %5213 = vmatpush1.bf16.msra.mxu0 %v3836
    %5214 = vmatprep.subr.bf16.mxu0 0
    %5215 = vmatpush1.bf16.msra.mxu0 %v3837
    %5216 = vmatprep.subr.bf16.mxu0 0
    %5217 = vmatpush1.bf16.msra.mxu0 %v3838
    %5218 = vmatprep.subr.bf16.mxu0 0
    %5219 = vmatpush1.bf16.msra.mxu0 %v3839
    %5220 = vmatprep.subr.bf16.mxu0 0
    %5221 = vmatpush1.bf16.msra.mxu0 %v3840
    %5222 = vmatprep.subr.bf16.mxu0 0
    %5223 = vmatpush1.bf16.msra.mxu0 %v3841
    %5224 = vmatprep.subr.bf16.mxu0 0
    %5225 = vmatpush1.bf16.msra.mxu0 %v3842
    %5226 = vmatprep.subr.bf16.mxu0 0
    %5227 = vmatpush1.bf16.msra.mxu0 %v3843
    %5228 = vmatprep.subr.bf16.mxu0 0
    %5229 = vmatpush1.bf16.msra.mxu0 %v3844
    %5230 = vmatprep.subr.bf16.mxu0 0
    %5231 = vmatpush1.bf16.msra.mxu0 %v3845
    %5232 = vmatprep.subr.bf16.mxu0 0
    %5233 = vmatpush1.bf16.msra.mxu0 %v3846
    %5234 = vmatprep.subr.bf16.mxu0 0
    %5235 = vmatpush1.bf16.msra.mxu0 %v3847
    %5236 = vmatprep.subr.bf16.mxu0 0
    %5237 = vmatpush1.bf16.msra.mxu0 %v3848
    %5238 = vmatprep.subr.bf16.mxu0 0
    %5239 = vmatpush1.bf16.msra.mxu0 %v3849
    %5240 = vmatprep.subr.bf16.mxu0 0
    %5241 = vmatpush1.bf16.msra.mxu0 %v3850
    %5242 = vmatprep.mubr.bf16.mxu0 %v1750
    %5243 = vmatmul.mubr.bf16.gmra.mrb[0].mxu0 %v1746
    %v5244 = vpop.f32.mrb[0].mxu0
    %v5245 = vadd.f32 %v5204, %v5244
    %v5246 = vpop.f32.mrb[0].mxu0
    %v5247 = vpop.f32.mrb[0].mxu0
    %v5248 = vadd.f32 %v5207, %v5247
    %v5249 = vpop.f32.mrb[0].mxu0
    %5250 = vdwg.mxu0
    %5251 = vmatprep.subr.bf16.mxu0 0
    %5252 = vmatpush1.bf16.msra.mxu0 %v3851
    %5253 = vmatprep.subr.bf16.mxu0 0
    %5254 = vmatpush1.bf16.msra.mxu0 %v3852
    %5255 = vmatprep.subr.bf16.mxu0 0
    %5256 = vmatpush1.bf16.msra.mxu0 %v3853
    %5257 = vmatprep.subr.bf16.mxu0 0
    %5258 = vmatpush1.bf16.msra.mxu0 %v3854
    %5259 = vmatprep.subr.bf16.mxu0 0
    %5260 = vmatpush1.bf16.msra.mxu0 %v3855
    %5261 = vmatprep.subr.bf16.mxu0 0
    %5262 = vmatpush1.bf16.msra.mxu0 %v3856
    %5263 = vmatprep.subr.bf16.mxu0 0
    %5264 = vmatpush1.bf16.msra.mxu0 %v3857
    %5265 = vmatprep.subr.bf16.mxu0 0
    %5266 = vmatpush1.bf16.msra.mxu0 %v3858
    %5267 = vmatprep.subr.bf16.mxu0 0
    %5268 = vmatpush1.bf16.msra.mxu0 %v3859
    %5269 = vmatprep.subr.bf16.mxu0 0
    %5270 = vmatpush1.bf16.msra.mxu0 %v3860
    %5271 = vmatprep.subr.bf16.mxu0 0
    %5272 = vmatpush1.bf16.msra.mxu0 %v3861
    %5273 = vmatprep.subr.bf16.mxu0 0
    %5274 = vmatpush1.bf16.msra.mxu0 %v3862
    %5275 = vmatprep.subr.bf16.mxu0 0
    %5276 = vmatpush1.bf16.msra.mxu0 %v3863
    %5277 = vmatprep.subr.bf16.mxu0 0
    %5278 = vmatpush1.bf16.msra.mxu0 %v3864
    %5279 = vmatprep.subr.bf16.mxu0 0
    %5280 = vmatpush1.bf16.msra.mxu0 %v3865
    %5281 = vmatprep.subr.bf16.mxu0 0
    %5282 = vmatpush1.bf16.msra.mxu0 %v3866
    %5283 = vmatprep.mubr.bf16.mxu0 %v1816
    %5284 = vmatmul.mubr.bf16.gmra.mrb[0].mxu0 %v1815
    %v5285 = vpop.f32.mrb[0].mxu0
    %v5286 = vadd.f32 %v5245, %v5285
    %v5287 = vpop.f32.mrb[0].mxu0
    %v5288 = vpop.f32.mrb[0].mxu0
    %v5289 = vadd.f32 %v5248, %v5288
    %v5290 = vpop.f32.mrb[0].mxu0
    %5291 = vdwg.mxu0
    %vm5292 = vcmask 80896
    %v5293 = vsel %vm5292, %v5286, -inf
    %5294 = vmax.xlane.f32.xlu0 %v5293
    %v5295 = vpop.xlane.xlu0 %5294
    %v5296 = vsel %vm5292, %v5289, -inf
    %5297 = vmax.xlane.f32.xlu0 %v5296
    %v5298 = vpop.xlane.xlu0 %5297
    %v5299 = vsub.f32 %v5286, %v5295
    %v5300 = vsub.f32 %v5289, %v5298
    %v5301 = vmul.f32 %v5299, 1.442695
    %v5302 = vpow.pop %v5301
    %v5303 = vmul.f32 %v5300, 1.442695
    %v5304 = vpow.pop %v5303
    %v5305 = vsel %vm5292, %v5302, 0.0
    %5306 = vadd.xlane.f32.xlu0 %v5305
    %v5307 = vpop.xlane.xlu0 %5306
    %v5308 = vsel %vm5292, %v5304, 0.0
    %5309 = vadd.xlane.f32.xlu0 %v5308
    %v5310 = vpop.xlane.xlu0 %5309
    %v5311 = vrcp.pop %v5307
    %v5312 = vmul.f32 %v5302, %v5311
    %v5313 = vrcp.pop %v5310
    %v5314 = vmul.f32 %v5304, %v5313
    %5315 = vst.msk [vmem:[#allocation2] sm:$0xff] %vm5292, %v5312
    %5316 = vst.msk [vmem:[#allocation2 + $0x8] sm:$0xff] %vm5292, %v5314
    // Predicated region
    $region14: #{tpu_custom_call.1} parent=1 // pred_check
      _
    $region15: #{tpu_custom_call.1} parent=1 // pred_check_branch
      %5318 = sbr.rel (0) target = $region17
    $region16: #{tpu_custom_call.1} parent=1 // pred_region
      %s5320 = ssub.s32 256, 32
      %5321 = vsyncadd [#allocation3], %s5320
      %s5322 = sshll.u32 [#allocation2], 4
      %s5323 = int_to_ptr.vmem [resolvable:$true] %s5322
      %5328 = dma.vmem_to_hbm [thread:$0]  %s5323, 32, %s3, [#allocation3], 32, 32, 2
    $region17: #{tpu_custom_call.1} parent=1 // pred_fallthru
      _
    // Predicated region
    $region18: #{tpu_custom_call.1} parent=1 // pred_check
      _
    $region19: #{tpu_custom_call.1} parent=1 // pred_check_branch
      %5330 = sbr.rel (0) target = $region21
    $region20: #{tpu_custom_call.1} parent=1 // pred_region
      %5331 = dma.done [#allocation3], 256
    $region21: #{tpu_custom_call.1} parent=1 // pred_fallthru
      _
    %5332 = vsyncpa [#allocation3], 1

</llo_original>
